<compile_context>
chip_gen: v6e
topology: v6e:2x2x1
jax: 0.10.0
libtpu: 0.0.40
codegen_flags: <defaults>
</compile_context>

<pallas_src>
import functools

import jax
import jax.numpy as jnp
import numpy as np
from jax.experimental import pallas as pl
from jax.experimental.pallas import tpu as pltpu

EPS = 1e-5  # torch.nn.InstanceNorm2d default eps


def _resnet_block_kernel(x_ref, w1_ref, w2_ref, out_ref, *, compute_dtype):
    """Fused (pad -> conv -> IN -> ReLU -> pad -> conv -> IN) for one image.

    x_ref  : (1, H, W, C)      unpadded input tile (NHWC)
    w1_ref : (3, 3*C, C)       conv1 weights, row kh = [w[kh,0]; w[kh,1]; w[kh,2]]
    w2_ref : (3, 3*C, C)       conv2 weights, same packing
    out_ref: (1, H, W, C)      block output
    """
    _, H, W, C = out_ref.shape

    def reflect_pad(v):  # (H, W, C) -> (H+2, W+2, C), == ReflectionPad2d(1)
        v = jnp.concatenate([v[:, 1:2, :], v, v[:, W - 2:W - 1, :]], axis=1)
        v = jnp.concatenate([v[1:2, :, :], v, v[H - 2:H - 1, :, :]], axis=0)
        return v

    def conv3x3_instnorm(vp, w3_ref, apply_relu):
        # vp: (H+2, W+2, C) reflect-padded activation, f32.
        # Stack the 3 width-shifted taps along the lane (channel) axis once;
        # then the conv is 3 large MXU matmuls (one per kh) instead of 9
        # per-tap slice+reshape+dots.
        xs = jnp.concatenate(
            [vp[:, 0:W, :], vp[:, 1:W + 1, :], vp[:, 2:W + 2, :]], axis=-1)
        acc = jnp.zeros((H * W, C), jnp.float32)
        for kh in range(3):
            patch = xs[kh:kh + H].reshape(H * W, 3 * C).astype(compute_dtype)
            acc = acc + jnp.dot(patch, w3_ref[kh].astype(compute_dtype),
                                preferred_element_type=jnp.float32)
        # NOTE: conv bias intentionally omitted — it cancels under the
        # affine=False InstanceNorm below.
        mean = jnp.mean(acc, axis=0, keepdims=True)                 # (1, C)
        var = jnp.mean(jnp.square(acc - mean), axis=0, keepdims=True)
        y = (acc - mean) * jax.lax.rsqrt(var + EPS)
        if apply_relu:
            y = jnp.maximum(y, 0.0)
        return y.reshape(H, W, C)

    x = x_ref[0].astype(jnp.float32)                                # (H, W, C)
    y = conv3x3_instnorm(reflect_pad(x), w1_ref, apply_relu=True)   # stays on-chip
    out = conv3x3_instnorm(reflect_pad(y), w2_ref, apply_relu=False)
    out_ref[0] = out.astype(out_ref.dtype)


def resnet_block_forward(x_nchw, w1, b1, w2, b2, *, compute_dtype=jnp.float32):
    """Equivalent of ResnetBlock.forward; x_nchw is (N, C, H, W).

    Biases are accepted for API parity with Conv2d(bias=True) but unused: a
    per-channel constant bias is exactly cancelled by the affine=False
    InstanceNorm that follows each conv.
    """
    del b1, b2
    N, C, H, W = x_nchw.shape
    x = jnp.transpose(x_nchw, (0, 2, 3, 1))        # NCHW -> NHWC
    w1r = w1.reshape(3, 3 * C, C)                  # (kh, kw*Cin, Cout)
    w2r = w2.reshape(3, 3 * C, C)

    kernel = functools.partial(_resnet_block_kernel, compute_dtype=compute_dtype)
    out = pl.pallas_call(
        kernel,
        out_shape=jax.ShapeDtypeStruct((N, H, W, C), jnp.float32),
        grid=(N,),
        in_specs=[
            pl.BlockSpec((1, H, W, C), lambda n: (n, 0, 0, 0)),
            # Constant index_map: weight tiles are DMA'd once and reused
            # across the whole grid (no per-step re-fetch / double buffering
            # pressure for a constant operand).
            pl.BlockSpec((3, 3 * C, C), lambda n: (0, 0, 0)),
            pl.BlockSpec((3, 3 * C, C), lambda n: (0, 0, 0)),
        ],
        out_specs=pl.BlockSpec((1, H, W, C), lambda n: (n, 0, 0, 0)),
        compiler_params=pltpu.CompilerParams(
            dimension_semantics=("parallel",),      # both TCs on v7x when N>=2
            vmem_limit_bytes=32 * 1024 * 1024,      # safe on v5e/v6e/v7x
        ),
    )(x, w1r, w2r)
    return jnp.transpose(out, (0, 3, 1, 2))         # NHWC -> NCHW


def _reference_forward(x_nchw, w1, b1, w2, b2):
    """Pure-JAX reference (XLA conv, WITH bias) for the correctness check."""
    def block(x, w, b, relu):
        xp = jnp.pad(x, ((0, 0), (1, 1), (1, 1), (0, 0)), mode="reflect")
        y = jax.lax.conv_general_dilated(
            xp, w, window_strides=(1, 1), padding="VALID",
            dimension_numbers=("NHWC", "HWIO", "NHWC"))
        y = y + b.reshape(1, 1, 1, -1)
        m = jnp.mean(y, axis=(1, 2), keepdims=True)
        v = jnp.mean((y - m) ** 2, axis=(1, 2), keepdims=True)
        y = (y - m) / jnp.sqrt(v + EPS)
        return jnp.maximum(y, 0.0) if relu else y

    x = jnp.transpose(x_nchw, (0, 2, 3, 1))
    y = block(x, w1, b1, True)
    y = block(y, w2, b2, False)
    return jnp.transpose(y, (0, 3, 1, 2))


if __name__ == "__main__":
    N, C, H, W = 2, 4, 16, 16  # num_filter = 4

    key = jax.random.PRNGKey(0)
    kx, kw1, kb1, kw2, kb2 = jax.random.split(key, 5)

    # Deterministic synthetic parameters (Conv2d(C, C, 3) weights/biases, HWIO).
    x = jax.random.normal(kx, (N, C, H, W), jnp.float32)
    w1 = jax.random.normal(kw1, (3, 3, C, C), jnp.float32) * 0.2
    b1 = jax.random.normal(kb1, (C,), jnp.float32) * 0.1
    w2 = jax.random.normal(kw2, (3, 3, C, C), jnp.float32) * 0.2
    b2 = jax.random.normal(kb2, (C,), jnp.float32) * 0.1

    ref = jax.block_until_ready(_reference_forward(x, w1, b1, w2, b2))

    # f32 MXU operands: exact-semantics check (also verifies bias cancellation).
    out_f32 = jax.block_until_ready(
        jax.jit(resnet_block_forward)(x, w1, b1, w2, b2))
    np.testing.assert_allclose(np.asarray(out_f32), np.asarray(ref),
                               rtol=2e-4, atol=2e-4)

    # bf16 MXU operands with f32 accumulation (fast MXU path on v5e/v6e/v7x).
    bf16_fwd = jax.jit(functools.partial(resnet_block_forward,
                                         compute_dtype=jnp.bfloat16))
    out_bf16 = jax.block_until_ready(bf16_fwd(x, w1, b1, w2, b2))
    np.testing.assert_allclose(np.asarray(out_bf16), np.asarray(ref),
                               rtol=5e-2, atol=5e-2)

    print("KERNEL_OK")
</pallas_src>

<mosaic_0001>
module attributes {stable_mosaic.version = 11 : i64} {
  func.func @_resnet_block_kernel(%arg0: i32, %arg1: memref<1x16x16x4xf32, #tpu.memory_space<vmem>>, %arg2: memref<3x12x4xf32, #tpu.memory_space<vmem>>, %arg3: memref<3x12x4xf32, #tpu.memory_space<vmem>>, %arg4: memref<1x16x16x4xf32, #tpu.memory_space<vmem>>) attributes {dimension_semantics = [#tpu.dimension_semantics<parallel>], iteration_bounds = array<i64: 2>, scalar_prefetch = 0 : i64, scratch_operands = 0 : i64, tpu.core_type = #tpu.core_type<tc>, window_params = [{transform_indices = @transform_0, window_bounds = array<i64: 1, 16, 16, 4>}, {pipeline_mode = #tpu.pipeline_mode<synchronous>, transform_indices = @transform_1, window_bounds = array<i64: 3, 12, 4>}, {pipeline_mode = #tpu.pipeline_mode<synchronous>, transform_indices = @transform_2, window_bounds = array<i64: 3, 12, 4>}, {transform_indices = @transform_3, window_bounds = array<i64: 1, 16, 16, 4>}]} {
    %c0 = arith.constant 0 : index
    %c0_0 = arith.constant 0 : index
    %c0_1 = arith.constant 0 : index
    %c0_2 = arith.constant 0 : index
    %0 = vector.load %arg1[%c0, %c0_0, %c0_1, %c0_2] : memref<1x16x16x4xf32, #tpu.memory_space<vmem>>, vector<1x16x16x4xf32>
    %1 = vector.shape_cast %0 : vector<1x16x16x4xf32> to vector<16x16x4xf32>
    %2 = vector.extract_strided_slice %1 {offsets = [0, 1, 0], sizes = [16, 1, 4], strides = [1, 1, 1]} : vector<16x16x4xf32> to vector<16x1x4xf32>
    %3 = vector.extract_strided_slice %1 {offsets = [0, 14, 0], sizes = [16, 1, 4], strides = [1, 1, 1]} : vector<16x16x4xf32> to vector<16x1x4xf32>
    %4 = tpu.concatenate %2, %1, %3 in 1 : vector<16x1x4xf32>, vector<16x16x4xf32>, vector<16x1x4xf32> -> vector<16x18x4xf32>
    %5 = vector.extract_strided_slice %4 {offsets = [1, 0, 0], sizes = [1, 18, 4], strides = [1, 1, 1]} : vector<16x18x4xf32> to vector<1x18x4xf32>
    %6 = vector.extract_strided_slice %4 {offsets = [14, 0, 0], sizes = [1, 18, 4], strides = [1, 1, 1]} : vector<16x18x4xf32> to vector<1x18x4xf32>
    %7 = tpu.concatenate %5, %4, %6 in 0 : vector<1x18x4xf32>, vector<16x18x4xf32>, vector<1x18x4xf32> -> vector<18x18x4xf32>
    %8 = vector.extract_strided_slice %7 {offsets = [0, 0, 0], sizes = [18, 16, 4], strides = [1, 1, 1]} : vector<18x18x4xf32> to vector<18x16x4xf32>
    %9 = vector.extract_strided_slice %7 {offsets = [0, 1, 0], sizes = [18, 16, 4], strides = [1, 1, 1]} : vector<18x18x4xf32> to vector<18x16x4xf32>
    %10 = vector.extract_strided_slice %7 {offsets = [0, 2, 0], sizes = [18, 16, 4], strides = [1, 1, 1]} : vector<18x18x4xf32> to vector<18x16x4xf32>
    %11 = tpu.concatenate %8, %9, %10 in 2 : vector<18x16x4xf32>, vector<18x16x4xf32>, vector<18x16x4xf32> -> vector<18x16x12xf32>
    %cst = arith.constant 0.000000e+00 : f32
    %12 = vector.broadcast %cst : f32 to vector<256x4xf32>
    %13 = vector.extract_strided_slice %11 {offsets = [0, 0, 0], sizes = [16, 16, 12], strides = [1, 1, 1]} : vector<18x16x12xf32> to vector<16x16x12xf32>
    %14 = vector.shape_cast %13 : vector<16x16x12xf32> to vector<256x12xf32>
    %c0_3 = arith.constant 0 : index
    %c0_4 = arith.constant 0 : index
    %c0_5 = arith.constant 0 : index
    %15 = vector.load %arg2[%c0_3, %c0_4, %c0_5] : memref<3x12x4xf32, #tpu.memory_space<vmem>>, vector<1x12x4xf32>
    %16 = vector.shape_cast %15 : vector<1x12x4xf32> to vector<12x4xf32>
    %cst_6 = arith.constant dense<0.000000e+00> : vector<256x4xf32>
    %17 = tpu.matmul %14, %16, %cst_6 {dimension_numbers = #tpu.dot_dimension_numbers<[1], [0], [0], [1], [0, 0, 1, 1], [], []>} : vector<256x12xf32>, vector<12x4xf32>, vector<256x4xf32> -> vector<256x4xf32>
    %18 = arith.addf %12, %17 : vector<256x4xf32>
    %19 = vector.extract_strided_slice %11 {offsets = [1, 0, 0], sizes = [16, 16, 12], strides = [1, 1, 1]} : vector<18x16x12xf32> to vector<16x16x12xf32>
    %20 = vector.shape_cast %19 : vector<16x16x12xf32> to vector<256x12xf32>
    %c1 = arith.constant 1 : index
    %c0_7 = arith.constant 0 : index
    %c0_8 = arith.constant 0 : index
    %21 = vector.load %arg2[%c1, %c0_7, %c0_8] : memref<3x12x4xf32, #tpu.memory_space<vmem>>, vector<1x12x4xf32>
    %22 = vector.shape_cast %21 : vector<1x12x4xf32> to vector<12x4xf32>
    %cst_9 = arith.constant dense<0.000000e+00> : vector<256x4xf32>
    %23 = tpu.matmul %20, %22, %cst_9 {dimension_numbers = #tpu.dot_dimension_numbers<[1], [0], [0], [1], [0, 0, 1, 1], [], []>} : vector<256x12xf32>, vector<12x4xf32>, vector<256x4xf32> -> vector<256x4xf32>
    %24 = arith.addf %18, %23 : vector<256x4xf32>
    %25 = vector.extract_strided_slice %11 {offsets = [2, 0, 0], sizes = [16, 16, 12], strides = [1, 1, 1]} : vector<18x16x12xf32> to vector<16x16x12xf32>
    %26 = vector.shape_cast %25 : vector<16x16x12xf32> to vector<256x12xf32>
    %c2 = arith.constant 2 : index
    %c0_10 = arith.constant 0 : index
    %c0_11 = arith.constant 0 : index
    %27 = vector.load %arg2[%c2, %c0_10, %c0_11] : memref<3x12x4xf32, #tpu.memory_space<vmem>>, vector<1x12x4xf32>
    %28 = vector.shape_cast %27 : vector<1x12x4xf32> to vector<12x4xf32>
    %cst_12 = arith.constant dense<0.000000e+00> : vector<256x4xf32>
    %29 = tpu.matmul %26, %28, %cst_12 {dimension_numbers = #tpu.dot_dimension_numbers<[1], [0], [0], [1], [0, 0, 1, 1], [], []>} : vector<256x12xf32>, vector<12x4xf32>, vector<256x4xf32> -> vector<256x4xf32>
    %30 = arith.addf %24, %29 : vector<256x4xf32>
    %cst_13 = arith.constant dense<0.000000e+00> : vector<4xf32>
    %31 = vector.multi_reduction <add>, %30, %cst_13 [0] : vector<256x4xf32> to vector<4xf32>
    %32 = vector.shape_cast %31 : vector<4xf32> to vector<1x4xf32>
    %cst_14 = arith.constant 2.560000e+02 : f32
    %33 = vector.broadcast %cst_14 : f32 to vector<1x4xf32>
    %34 = arith.divf %32, %33 : vector<1x4xf32>
    %35 = vector.broadcast %34 : vector<1x4xf32> to vector<256x4xf32>
    %36 = arith.subf %30, %35 : vector<256x4xf32>
    %37 = arith.mulf %36, %36 : vector<256x4xf32>
    %cst_15 = arith.constant dense<0.000000e+00> : vector<4xf32>
    %38 = vector.multi_reduction <add>, %37, %cst_15 [0] : vector<256x4xf32> to vector<4xf32>
    %39 = vector.shape_cast %38 : vector<4xf32> to vector<1x4xf32>
    %cst_16 = arith.constant 2.560000e+02 : f32
    %40 = vector.broadcast %cst_16 : f32 to vector<1x4xf32>
    %41 = arith.divf %39, %40 : vector<1x4xf32>
    %42 = vector.broadcast %34 : vector<1x4xf32> to vector<256x4xf32>
    %43 = arith.subf %30, %42 : vector<256x4xf32>
    %cst_17 = arith.constant 9.99999974E-6 : f32
    %44 = vector.broadcast %cst_17 : f32 to vector<1x4xf32>
    %45 = arith.addf %41, %44 : vector<1x4xf32>
    %46 = math.rsqrt %45 : vector<1x4xf32>
    %47 = vector.broadcast %46 : vector<1x4xf32> to vector<256x4xf32>
    %48 = arith.mulf %43, %47 : vector<256x4xf32>
    %cst_18 = arith.constant 0.000000e+00 : f32
    %49 = vector.broadcast %cst_18 : f32 to vector<256x4xf32>
    %50 = arith.maximumf %48, %49 : vector<256x4xf32>
    %51 = vector.shape_cast %50 : vector<256x4xf32> to vector<16x16x4xf32>
    %52 = vector.extract_strided_slice %51 {offsets = [0, 1, 0], sizes = [16, 1, 4], strides = [1, 1, 1]} : vector<16x16x4xf32> to vector<16x1x4xf32>
    %53 = vector.extract_strided_slice %51 {offsets = [0, 14, 0], sizes = [16, 1, 4], strides = [1, 1, 1]} : vector<16x16x4xf32> to vector<16x1x4xf32>
    %54 = tpu.concatenate %52, %51, %53 in 1 : vector<16x1x4xf32>, vector<16x16x4xf32>, vector<16x1x4xf32> -> vector<16x18x4xf32>
    %55 = vector.extract_strided_slice %54 {offsets = [1, 0, 0], sizes = [1, 18, 4], strides = [1, 1, 1]} : vector<16x18x4xf32> to vector<1x18x4xf32>
    %56 = vector.extract_strided_slice %54 {offsets = [14, 0, 0], sizes = [1, 18, 4], strides = [1, 1, 1]} : vector<16x18x4xf32> to vector<1x18x4xf32>
    %57 = tpu.concatenate %55, %54, %56 in 0 : vector<1x18x4xf32>, vector<16x18x4xf32>, vector<1x18x4xf32> -> vector<18x18x4xf32>
    %58 = vector.extract_strided_slice %57 {offsets = [0, 0, 0], sizes = [18, 16, 4], strides = [1, 1, 1]} : vector<18x18x4xf32> to vector<18x16x4xf32>
    %59 = vector.extract_strided_slice %57 {offsets = [0, 1, 0], sizes = [18, 16, 4], strides = [1, 1, 1]} : vector<18x18x4xf32> to vector<18x16x4xf32>
    %60 = vector.extract_strided_slice %57 {offsets = [0, 2, 0], sizes = [18, 16, 4], strides = [1, 1, 1]} : vector<18x18x4xf32> to vector<18x16x4xf32>
    %61 = tpu.concatenate %58, %59, %60 in 2 : vector<18x16x4xf32>, vector<18x16x4xf32>, vector<18x16x4xf32> -> vector<18x16x12xf32>
    %cst_19 = arith.constant 0.000000e+00 : f32
    %62 = vector.broadcast %cst_19 : f32 to vector<256x4xf32>
    %63 = vector.extract_strided_slice %61 {offsets = [0, 0, 0], sizes = [16, 16, 12], strides = [1, 1, 1]} : vector<18x16x12xf32> to vector<16x16x12xf32>
    %64 = vector.shape_cast %63 : vector<16x16x12xf32> to vector<256x12xf32>
    %c0_20 = arith.constant 0 : index
    %c0_21 = arith.constant 0 : index
    %c0_22 = arith.constant 0 : index
    %65 = vector.load %arg3[%c0_20, %c0_21, %c0_22] : memref<3x12x4xf32, #tpu.memory_space<vmem>>, vector<1x12x4xf32>
    %66 = vector.shape_cast %65 : vector<1x12x4xf32> to vector<12x4xf32>
    %cst_23 = arith.constant dense<0.000000e+00> : vector<256x4xf32>
    %67 = tpu.matmul %64, %66, %cst_23 {dimension_numbers = #tpu.dot_dimension_numbers<[1], [0], [0], [1], [0, 0, 1, 1], [], []>} : vector<256x12xf32>, vector<12x4xf32>, vector<256x4xf32> -> vector<256x4xf32>
    %68 = arith.addf %62, %67 : vector<256x4xf32>
    %69 = vector.extract_strided_slice %61 {offsets = [1, 0, 0], sizes = [16, 16, 12], strides = [1, 1, 1]} : vector<18x16x12xf32> to vector<16x16x12xf32>
    %70 = vector.shape_cast %69 : vector<16x16x12xf32> to vector<256x12xf32>
    %c1_24 = arith.constant 1 : index
    %c0_25 = arith.constant 0 : index
    %c0_26 = arith.constant 0 : index
    %71 = vector.load %arg3[%c1_24, %c0_25, %c0_26] : memref<3x12x4xf32, #tpu.memory_space<vmem>>, vector<1x12x4xf32>
    %72 = vector.shape_cast %71 : vector<1x12x4xf32> to vector<12x4xf32>
    %cst_27 = arith.constant dense<0.000000e+00> : vector<256x4xf32>
    %73 = tpu.matmul %70, %72, %cst_27 {dimension_numbers = #tpu.dot_dimension_numbers<[1], [0], [0], [1], [0, 0, 1, 1], [], []>} : vector<256x12xf32>, vector<12x4xf32>, vector<256x4xf32> -> vector<256x4xf32>
    %74 = arith.addf %68, %73 : vector<256x4xf32>
    %75 = vector.extract_strided_slice %61 {offsets = [2, 0, 0], sizes = [16, 16, 12], strides = [1, 1, 1]} : vector<18x16x12xf32> to vector<16x16x12xf32>
    %76 = vector.shape_cast %75 : vector<16x16x12xf32> to vector<256x12xf32>
    %c2_28 = arith.constant 2 : index
    %c0_29 = arith.constant 0 : index
    %c0_30 = arith.constant 0 : index
    %77 = vector.load %arg3[%c2_28, %c0_29, %c0_30] : memref<3x12x4xf32, #tpu.memory_space<vmem>>, vector<1x12x4xf32>
    %78 = vector.shape_cast %77 : vector<1x12x4xf32> to vector<12x4xf32>
    %cst_31 = arith.constant dense<0.000000e+00> : vector<256x4xf32>
    %79 = tpu.matmul %76, %78, %cst_31 {dimension_numbers = #tpu.dot_dimension_numbers<[1], [0], [0], [1], [0, 0, 1, 1], [], []>} : vector<256x12xf32>, vector<12x4xf32>, vector<256x4xf32> -> vector<256x4xf32>
    %80 = arith.addf %74, %79 : vector<256x4xf32>
    %cst_32 = arith.constant dense<0.000000e+00> : vector<4xf32>
    %81 = vector.multi_reduction <add>, %80, %cst_32 [0] : vector<256x4xf32> to vector<4xf32>
    %82 = vector.shape_cast %81 : vector<4xf32> to vector<1x4xf32>
    %cst_33 = arith.constant 2.560000e+02 : f32
    %83 = vector.broadcast %cst_33 : f32 to vector<1x4xf32>
    %84 = arith.divf %82, %83 : vector<1x4xf32>
    %85 = vector.broadcast %84 : vector<1x4xf32> to vector<256x4xf32>
    %86 = arith.subf %80, %85 : vector<256x4xf32>
    %87 = arith.mulf %86, %86 : vector<256x4xf32>
    %cst_34 = arith.constant dense<0.000000e+00> : vector<4xf32>
    %88 = vector.multi_reduction <add>, %87, %cst_34 [0] : vector<256x4xf32> to vector<4xf32>
    %89 = vector.shape_cast %88 : vector<4xf32> to vector<1x4xf32>
    %cst_35 = arith.constant 2.560000e+02 : f32
    %90 = vector.broadcast %cst_35 : f32 to vector<1x4xf32>
    %91 = arith.divf %89, %90 : vector<1x4xf32>
    %92 = vector.broadcast %84 : vector<1x4xf32> to vector<256x4xf32>
    %93 = arith.subf %80, %92 : vector<256x4xf32>
    %cst_36 = arith.constant 9.99999974E-6 : f32
    %94 = vector.broadcast %cst_36 : f32 to vector<1x4xf32>
    %95 = arith.addf %91, %94 : vector<1x4xf32>
    %96 = math.rsqrt %95 : vector<1x4xf32>
    %97 = vector.broadcast %96 : vector<1x4xf32> to vector<256x4xf32>
    %98 = arith.mulf %93, %97 : vector<256x4xf32>
    %99 = vector.shape_cast %98 : vector<256x4xf32> to vector<16x16x4xf32>
    %c0_37 = arith.constant 0 : index
    %c0_38 = arith.constant 0 : index
    %c0_39 = arith.constant 0 : index
    %c0_40 = arith.constant 0 : index
    %100 = vector.load %arg4[%c0_37, %c0_38, %c0_39, %c0_40] : memref<1x16x16x4xf32, #tpu.memory_space<vmem>>, vector<1x16x16x4xf32>
    %101 = vector.shape_cast %100 : vector<1x16x16x4xf32> to vector<16x16x4xf32>
    %102 = vector.shape_cast %99 : vector<16x16x4xf32> to vector<1x16x16x4xf32>
    tpu.vector_store %arg4[%c0_37, %c0_38, %c0_39, %c0_40], %102 {strides = array<i32>} : memref<1x16x16x4xf32, #tpu.memory_space<vmem>>, vector<1x16x16x4xf32>,
    return
  }
  func.func @transform_0(%arg0: i32) -> (i32, i32, i32, i32) {
    %c0_i32 = arith.constant 0 : i32
    %c0_i32_0 = arith.constant 0 : i32
    %c0_i32_1 = arith.constant 0 : i32
    %c0_i32_2 = arith.constant 0 : i32
    return %arg0, %c0_i32, %c0_i32_0, %c0_i32_1 : i32, i32, i32, i32
  }
  func.func @transform_1(%arg0: i32) -> (i32, i32, i32) {
    %c0_i32 = arith.constant 0 : i32
    %c0_i32_0 = arith.constant 0 : i32
    %c0_i32_1 = arith.constant 0 : i32
    %c0_i32_2 = arith.constant 0 : i32
    return %c0_i32, %c0_i32_0, %c0_i32_1 : i32, i32, i32
  }
  func.func @transform_2(%arg0: i32) -> (i32, i32, i32) {
    %c0_i32 = arith.constant 0 : i32
    %c0_i32_0 = arith.constant 0 : i32
    %c0_i32_1 = arith.constant 0 : i32
    %c0_i32_2 = arith.constant 0 : i32
    return %c0_i32, %c0_i32_0, %c0_i32_1 : i32, i32, i32
  }
  func.func @transform_3(%arg0: i32) -> (i32, i32, i32, i32) {
    %c0_i32 = arith.constant 0 : i32
    %c0_i32_0 = arith.constant 0 : i32
    %c0_i32_1 = arith.constant 0 : i32
    %c0_i32_2 = arith.constant 0 : i32
    return %arg0, %c0_i32, %c0_i32_0, %c0_i32_1 : i32, i32, i32, i32
  }
}

</mosaic_0001>

<llo_original>
// kernel: resnet_block_forward.1
$region0: #{resnet_block_forward.1}
  #allocation0 [shape = 'u32[]', space=smem, size = 0x4, offset = 0x4, fixed_abs, tag = 'smem constant byte address 0x4 - core index']
  #allocation1 [shape = 'u32[144,128]{1,0:T(1,128)}', space=vmem, size = 0x12000, scoped, tag = 'internal scratch']
  %s0 = inlined_call_operand.vmem [shape: f32[2,16,16,4], index: 0, kind: input, shape index: {}]
  %s1 = inlined_call_operand.vmem [shape: f32[3,12,4], index: 1, kind: input, shape index: {}]
  %s2 = inlined_call_operand.vmem [shape: f32[3,12,4], index: 2, kind: input, shape index: {}]
  %s3 = inlined_call_operand.vmem [shape: f32[2,16,16,4], index: 3, kind: output, shape index: {}]
  %s4 = sld [smem:[#allocation0]]
  $region45: #{resnet_block_forward.1} parent=0
    _
  %s6 = ssub.s32 1, %s4
  %s7 = scalar_select 0, %s6, %s4
  loop: start=0, step=1, limit=4
  $region2: #{resnet_block_forward.1} parent=0 // loop_pre_header
    _
  $region3: #{resnet_block_forward.1} parent=0 // loop_header
    %s9 = sphi 0, %s13
    %p10 = scmp.ge.s32.totalorder %s9, 4
    %s19 = sphi 0, %s21
    %s22 = sphi 0, %s19
    %s23 = sphi 0, %s22
    %s39 = sphi 0, %s23
    %s43 = sphi 0, %s43
    %s45 = sphi 0, %s43
    %s46 = sphi 0, %s45
    %s60 = sphi 0, %s46
    %s64 = sphi 0, %s64
    %s66 = sphi 0, %s64
    %s67 = sphi 0, %s66
    %s81 = sphi 0, %s67
    %s87 = sphi 0, %s89
    %s90 = sphi 0, %s87
    %s91 = sphi 0, %s90
    %s107 = sphi 0, %s91
  $region4: #{resnet_block_forward.1} parent=0 // loop_header_branch
    %12 = sbr.rel (%p10) target = $region8
  $region5: #{resnet_block_forward.1} parent=0 // loop_body
    %s14 = ssub.s32 %s9, 1
    %s15 = ssub.s32 %s9, 2
    %s16 = sadd.s32 %s9, 1
    %s17 = ssub.s32 %s9, %s16
    %p18 = scmp.eq.s32.totalorder %s17, 0
    %s20 = sadd.s32 %s19, 1
    %s21 = scalar_select %p18, %s19, %s20
    %p24 = pneg %p18
    %p25 = scmp.eq.s32.totalorder %s9, 1
    %p26 = por %p24, %p25
    %p27 = scmp.ne.s32.totalorder %s19, %s22
    %p28 = scmp.eq.s32.totalorder %s9, 0
    %p29 = por %p27, %p28
    %p30 = scmp.ne.s32.totalorder %s19, %s22
    %p31 = scmp.eq.s32.totalorder %s14, 1
    %p32 = por %p30, %p31
    %p33 = scmp.ne.s32.totalorder %s22, %s23
    %p34 = scmp.eq.s32.totalorder %s14, 0
    %p35 = por %p33, %p34
    %p36 = scmp.ne.s32.totalorder %s22, %s23
    %p37 = scmp.eq.s32.totalorder %s15, 1
    %p38 = por %p36, %p37
    %p40 = scmp.ne.s32.totalorder %s23, %s39
    %p41 = scmp.eq.s32.totalorder %s15, 0
    %p42 = por %p40, %p41
    %s44 = sadd.s32 %s43, 1
    %p47 = scmp.eq.s32.totalorder %s9, 1
    %p48 = scmp.ne.s32.totalorder %s43, %s45
    %p49 = scmp.eq.s32.totalorder %s9, 0
    %p50 = por %p48, %p49
    %p51 = scmp.ne.s32.totalorder %s43, %s45
    %p52 = scmp.eq.s32.totalorder %s14, 1
    %p53 = por %p51, %p52
    %p54 = scmp.ne.s32.totalorder %s45, %s46
    %p55 = scmp.eq.s32.totalorder %s14, 0
    %p56 = por %p54, %p55
    %p57 = scmp.ne.s32.totalorder %s45, %s46
    %p58 = scmp.eq.s32.totalorder %s15, 1
    %p59 = por %p57, %p58
    %p61 = scmp.ne.s32.totalorder %s46, %s60
    %p62 = scmp.eq.s32.totalorder %s15, 0
    %p63 = por %p61, %p62
    %s65 = sadd.s32 %s64, 1
    %p68 = scmp.eq.s32.totalorder %s9, 1
    %p69 = scmp.ne.s32.totalorder %s64, %s66
    %p70 = scmp.eq.s32.totalorder %s9, 0
    %p71 = por %p69, %p70
    %p72 = scmp.ne.s32.totalorder %s64, %s66
    %p73 = scmp.eq.s32.totalorder %s14, 1
    %p74 = por %p72, %p73
    %p75 = scmp.ne.s32.totalorder %s66, %s67
    %p76 = scmp.eq.s32.totalorder %s14, 0
    %p77 = por %p75, %p76
    %p78 = scmp.ne.s32.totalorder %s66, %s67
    %p79 = scmp.eq.s32.totalorder %s15, 1
    %p80 = por %p78, %p79
    %p82 = scmp.ne.s32.totalorder %s67, %s81
    %p83 = scmp.eq.s32.totalorder %s15, 0
    %p84 = por %p82, %p83
    %s85 = ssub.s32 %s9, %s16
    %p86 = scmp.eq.s32.totalorder %s85, 0
    %s88 = sadd.s32 %s87, 1
    %s89 = scalar_select %p86, %s87, %s88
    %p92 = pneg %p86
    %p93 = scmp.eq.s32.totalorder %s9, 1
    %p94 = por %p92, %p93
    %p95 = scmp.ne.s32.totalorder %s87, %s90
    %p96 = scmp.eq.s32.totalorder %s9, 0
    %p97 = por %p95, %p96
    %p98 = scmp.ne.s32.totalorder %s87, %s90
    %p99 = scmp.eq.s32.totalorder %s14, 1
    %p100 = por %p98, %p99
    %p101 = scmp.ne.s32.totalorder %s90, %s91
    %p102 = scmp.eq.s32.totalorder %s14, 0
    %p103 = por %p101, %p102
    %p104 = scmp.ne.s32.totalorder %s90, %s91
    %p105 = scmp.eq.s32.totalorder %s15, 1
    %p106 = por %p104, %p105
    %p108 = scmp.ne.s32.totalorder %s91, %s107
    %p109 = scmp.eq.s32.totalorder %s15, 0
    %p110 = por %p108, %p109
    %p111 = scmp.le.s32.totalorder 1, %s9
    %p112 = scmp.lt.s32.totalorder %s9, 3
    %p113 = pnand %p111, %p112
    %p114 = pneg %p113
    // Predicated region
    $region9: #{resnet_block_forward.1} parent=5 // pred_check
      _
    $region10: #{resnet_block_forward.1} parent=5 // pred_check_branch
      %116 = sbr.rel (%p113) target = $region12
    $region11: #{resnet_block_forward.1} parent=5 // pred_region
      %s117 = ssub.s32 %s9, 1
      // Predicated region
      $region13: #{resnet_block_forward.1} parent=11 // pred_check
        %p118 = pneg %p56
      $region14: #{resnet_block_forward.1} parent=11 // pred_check_branch
        %120 = sbr.rel (%p118) target = $region16
      $region15: #{resnet_block_forward.1} parent=11 // pred_region
        _
      $region16: #{resnet_block_forward.1} parent=11 // pred_fallthru
        _
      // Predicated region
      $region17: #{resnet_block_forward.1} parent=11 // pred_check
        %p121 = pneg %p77
      $region18: #{resnet_block_forward.1} parent=11 // pred_check_branch
        %123 = sbr.rel (%p121) target = $region20
      $region19: #{resnet_block_forward.1} parent=11 // pred_region
        _
      $region20: #{resnet_block_forward.1} parent=11 // pred_fallthru
        _
    $region12: #{resnet_block_forward.1} parent=5 // pred_fallthru
      _
    %p124 = scmp.lt.s32.totalorder %s9, 2
    // Predicated region
    $region21: #{resnet_block_forward.1} parent=5 // pred_check
      %p125 = pneg %p124
    $region22: #{resnet_block_forward.1} parent=5 // pred_check_branch
      %127 = sbr.rel (%p125) target = $region24
    $region23: #{resnet_block_forward.1} parent=5 // pred_region
      // Predicated region
      $region25: #{resnet_block_forward.1} parent=23 // pred_check
        %p128 = pneg %p29
      $region26: #{resnet_block_forward.1} parent=23 // pred_check_branch
        %130 = sbr.rel (%p128) target = $region28
      $region27: #{resnet_block_forward.1} parent=23 // pred_region
        %p131 = scmp.lt.s32.totalorder %s9, 1
        %s132 = scalar_select %p131, %s9, 1
        %s133 = smul.addr %s132, 32
        %s134 = smul.addr %s133, 8
        %s135 = scalar_lea.vmem %s0, %s134
      $region28: #{resnet_block_forward.1} parent=23 // pred_fallthru
        _
    $region24: #{resnet_block_forward.1} parent=5 // pred_fallthru
      _
    %p136 = scmp.le.s32.totalorder 1, %s9
    %p137 = scmp.lt.s32.totalorder %s9, 3
    %p138 = pnand %p136, %p137
    %p139 = pneg %p138
    // Predicated region
    $region29: #{resnet_block_forward.1} parent=5 // pred_check
      _
    $region30: #{resnet_block_forward.1} parent=5 // pred_check_branch
      %141 = sbr.rel (%p138) target = $region32
    $region31: #{resnet_block_forward.1} parent=5 // pred_region
      %s142 = ssub.s32 %s9, 1
      %p143 = scmp.lt.s32.totalorder %s14, 1
      %s144 = scalar_select %p143, %s14, 1
      %s145 = smul.addr %s144, 32
      %s146 = smul.addr %s145, 8
      %s147 = scalar_lea.vmem %s0, %s146
      %p148 = pneg %p35
      %p149 = pneg %p32
      %p150 = pneg %p56
      %p151 = pneg %p53
      %p152 = pneg %p77
      %p153 = pneg %p74
      %p154 = pneg %p103
      %p155 = pneg %p100
      %p156 = scmp.lt.s32.totalorder %s14, 1
      %s157 = scalar_select %p156, %s14, 1
      %s158 = smul.addr %s157, 32
      %s159 = smul.addr %s158, 8
      %s160 = scalar_lea.vmem %s3, %s159
      %p161 = scmp.lt.s32.totalorder %s14, 1
      %s162 = scalar_select %p161, %s14, 1
      %s163 = smul.addr %s162, 32
      %s164 = smul.addr %s163, 8
      %s165 = scalar_lea.vmem %s0, %s164
      %p166 = scmp.lt.s32.totalorder %s14, 1
      %s167 = scalar_select %p166, %s14, 1
      %s168 = smul.addr %s167, 32
      %s169 = smul.addr %s168, 8
      %s170 = scalar_lea.vmem %s3, %s169
      %v171 = vld [vmem:[%s165] sm:$0xff]
      %v172 = vld [vmem:[%s165 + $0x8] sm:$0xff]
      %v173 = vld [vmem:[%s165 + $0x10] sm:$0xff]
      %v174 = vld [vmem:[%s165 + $0x18] sm:$0xff]
      %v175 = vld [vmem:[%s165 + $0x20] sm:$0xff]
      %v176 = vld [vmem:[%s165 + $0x28] sm:$0xff]
      %v177 = vld [vmem:[%s165 + $0x30] sm:$0xff]
      %v178 = vld [vmem:[%s165 + $0x38] sm:$0xff]
      %v179 = vld [vmem:[%s165 + $0x40] sm:$0xff]
      %v180 = vld [vmem:[%s165 + $0x48] sm:$0xff]
      %v181 = vld [vmem:[%s165 + $0x50] sm:$0xff]
      %v182 = vld [vmem:[%s165 + $0x58] sm:$0xff]
      %v183 = vld [vmem:[%s165 + $0x60] sm:$0xff]
      %v184 = vld [vmem:[%s165 + $0x68] sm:$0xff]
      %v185 = vld [vmem:[%s165 + $0x70] sm:$0xff]
      %v186 = vld [vmem:[%s165 + $0x78] sm:$0xff]
      %v187 = vld [vmem:[%s165 + $0x80] sm:$0xff]
      %v188 = vld [vmem:[%s165 + $0x88] sm:$0xff]
      %v189 = vld [vmem:[%s165 + $0x90] sm:$0xff]
      %v190 = vld [vmem:[%s165 + $0x98] sm:$0xff]
      %v191 = vld [vmem:[%s165 + $0xa0] sm:$0xff]
      %v192 = vld [vmem:[%s165 + $0xa8] sm:$0xff]
      %v193 = vld [vmem:[%s165 + $0xb0] sm:$0xff]
      %v194 = vld [vmem:[%s165 + $0xb8] sm:$0xff]
      %v195 = vld [vmem:[%s165 + $0xc0] sm:$0xff]
      %v196 = vld [vmem:[%s165 + $0xc8] sm:$0xff]
      %v197 = vld [vmem:[%s165 + $0xd0] sm:$0xff]
      %v198 = vld [vmem:[%s165 + $0xd8] sm:$0xff]
      %v199 = vld [vmem:[%s165 + $0xe0] sm:$0xff]
      %v200 = vld [vmem:[%s165 + $0xe8] sm:$0xff]
      %v201 = vld [vmem:[%s165 + $0xf0] sm:$0xff]
      %v202 = vld [vmem:[%s165 + $0xf8] sm:$0xff]
      %v219 = vrot.slane %v171, 1
      %v220 = vrot.slane %v173, 1
      %v221 = vrot.slane %v175, 1
      %v222 = vrot.slane %v177, 1
      %v223 = vrot.slane %v179, 1
      %v224 = vrot.slane %v181, 1
      %v225 = vrot.slane %v183, 1
      %v226 = vrot.slane %v185, 1
      %v227 = vrot.slane %v187, 1
      %v228 = vrot.slane %v189, 1
      %v229 = vrot.slane %v191, 1
      %v230 = vrot.slane %v193, 1
      %v231 = vrot.slane %v195, 1
      %v232 = vrot.slane %v197, 1
      %v233 = vrot.slane %v199, 1
      %v234 = vrot.slane %v201, 1
      %vm267 = vcmask 1040384
      %v268 = vrot.slane %v171, 7
      %v269 = vrot.slane %v172, 7
      %v270 = vsel %vm267, %v268, %v269
      %v271 = vrot.slane %v173, 7
      %v272 = vrot.slane %v174, 7
      %v273 = vsel %vm267, %v271, %v272
      %v274 = vrot.slane %v175, 7
      %v275 = vrot.slane %v176, 7
      %v276 = vsel %vm267, %v274, %v275
      %v277 = vrot.slane %v177, 7
      %v278 = vrot.slane %v178, 7
      %v279 = vsel %vm267, %v277, %v278
      %v280 = vrot.slane %v179, 7
      %v281 = vrot.slane %v180, 7
      %v282 = vsel %vm267, %v280, %v281
      %v283 = vrot.slane %v181, 7
      %v284 = vrot.slane %v182, 7
      %v285 = vsel %vm267, %v283, %v284
      %v286 = vrot.slane %v183, 7
      %v287 = vrot.slane %v184, 7
      %v288 = vsel %vm267, %v286, %v287
      %v289 = vrot.slane %v185, 7
      %v290 = vrot.slane %v186, 7
      %v291 = vsel %vm267, %v289, %v290
      %v292 = vrot.slane %v187, 7
      %v293 = vrot.slane %v188, 7
      %v294 = vsel %vm267, %v292, %v293
      %v295 = vrot.slane %v189, 7
      %v296 = vrot.slane %v190, 7
      %v297 = vsel %vm267, %v295, %v296
      %v298 = vrot.slane %v191, 7
      %v299 = vrot.slane %v192, 7
      %v300 = vsel %vm267, %v298, %v299
      %v301 = vrot.slane %v193, 7
      %v302 = vrot.slane %v194, 7
      %v303 = vsel %vm267, %v301, %v302
      %v304 = vrot.slane %v195, 7
      %v305 = vrot.slane %v196, 7
      %v306 = vsel %vm267, %v304, %v305
      %v307 = vrot.slane %v197, 7
      %v308 = vrot.slane %v198, 7
      %v309 = vsel %vm267, %v307, %v308
      %v310 = vrot.slane %v199, 7
      %v311 = vrot.slane %v200, 7
      %v312 = vsel %vm267, %v310, %v311
      %v313 = vrot.slane %v201, 7
      %v314 = vrot.slane %v202, 7
      %v315 = vsel %vm267, %v313, %v314
      %v364 = vrot.slane %v172, 5
      %v365 = vrot.slane %v174, 5
      %v366 = vrot.slane %v176, 5
      %v367 = vrot.slane %v178, 5
      %v368 = vrot.slane %v180, 5
      %v369 = vrot.slane %v182, 5
      %v370 = vrot.slane %v184, 5
      %v371 = vrot.slane %v186, 5
      %v372 = vrot.slane %v188, 5
      %v373 = vrot.slane %v190, 5
      %v374 = vrot.slane %v192, 5
      %v375 = vrot.slane %v194, 5
      %v376 = vrot.slane %v196, 5
      %v377 = vrot.slane %v198, 5
      %v378 = vrot.slane %v200, 5
      %v379 = vrot.slane %v202, 5
      %v396 = vsel %vm267, %v219, %v268
      %v397 = vsel %vm267, %v220, %v271
      %v398 = vsel %vm267, %v221, %v274
      %v399 = vsel %vm267, %v222, %v277
      %v400 = vsel %vm267, %v223, %v280
      %v401 = vsel %vm267, %v224, %v283
      %v402 = vsel %vm267, %v225, %v286
      %v403 = vsel %vm267, %v226, %v289
      %v404 = vsel %vm267, %v227, %v292
      %v405 = vsel %vm267, %v228, %v295
      %v406 = vsel %vm267, %v229, %v298
      %v407 = vsel %vm267, %v230, %v301
      %v408 = vsel %vm267, %v231, %v304
      %v409 = vsel %vm267, %v232, %v307
      %v410 = vsel %vm267, %v233, %v310
      %v411 = vsel %vm267, %v234, %v313
      %v412 = vsel %vm267, %v269, %v364
      %v413 = vsel %vm267, %v272, %v365
      %v414 = vsel %vm267, %v275, %v366
      %v415 = vsel %vm267, %v278, %v367
      %v416 = vsel %vm267, %v281, %v368
      %v417 = vsel %vm267, %v284, %v369
      %v418 = vsel %vm267, %v287, %v370
      %v419 = vsel %vm267, %v290, %v371
      %v420 = vsel %vm267, %v293, %v372
      %v421 = vsel %vm267, %v296, %v373
      %v422 = vsel %vm267, %v299, %v374
      %v423 = vsel %vm267, %v302, %v375
      %v424 = vsel %vm267, %v305, %v376
      %v425 = vsel %vm267, %v308, %v377
      %v426 = vsel %vm267, %v311, %v378
      %v427 = vsel %vm267, %v314, %v379
      %vm460 = vcmask 1046528
      %v461 = vrot.slane %v397, 1
      %v462 = vrot.slane %v273, 1
      %v463 = vsel %vm460, %v461, %v462
      %v464 = vrot.slane %v413, 1
      %v465 = vsel %vm460, %v462, %v464
      %v466 = vrot.slane %v396, 1
      %v467 = vrot.slane %v270, 1
      %v468 = vsel %vm460, %v466, %v467
      %v469 = vrot.slane %v412, 1
      %v470 = vsel %vm460, %v467, %v469
      %v471 = vrot.slane %v398, 1
      %v472 = vrot.slane %v276, 1
      %v473 = vsel %vm460, %v471, %v472
      %v474 = vrot.slane %v414, 1
      %v475 = vsel %vm460, %v472, %v474
      %v476 = vrot.slane %v399, 1
      %v477 = vrot.slane %v279, 1
      %v478 = vsel %vm460, %v476, %v477
      %v479 = vrot.slane %v415, 1
      %v480 = vsel %vm460, %v477, %v479
      %v481 = vrot.slane %v400, 1
      %v482 = vrot.slane %v282, 1
      %v483 = vsel %vm460, %v481, %v482
      %v484 = vrot.slane %v416, 1
      %v485 = vsel %vm460, %v482, %v484
      %v486 = vrot.slane %v401, 1
      %v487 = vrot.slane %v285, 1
      %v488 = vsel %vm460, %v486, %v487
      %v489 = vrot.slane %v417, 1
      %v490 = vsel %vm460, %v487, %v489
      %v491 = vrot.slane %v402, 1
      %v492 = vrot.slane %v288, 1
      %v493 = vsel %vm460, %v491, %v492
      %v494 = vrot.slane %v418, 1
      %v495 = vsel %vm460, %v492, %v494
      %v496 = vrot.slane %v403, 1
      %v497 = vrot.slane %v291, 1
      %v498 = vsel %vm460, %v496, %v497
      %v499 = vrot.slane %v419, 1
      %v500 = vsel %vm460, %v497, %v499
      %v501 = vrot.slane %v404, 1
      %v502 = vrot.slane %v294, 1
      %v503 = vsel %vm460, %v501, %v502
      %v504 = vrot.slane %v420, 1
      %v505 = vsel %vm460, %v502, %v504
      %v506 = vrot.slane %v405, 1
      %v507 = vrot.slane %v297, 1
      %v508 = vsel %vm460, %v506, %v507
      %v509 = vrot.slane %v421, 1
      %v510 = vsel %vm460, %v507, %v509
      %v511 = vrot.slane %v406, 1
      %v512 = vrot.slane %v300, 1
      %v513 = vsel %vm460, %v511, %v512
      %v514 = vrot.slane %v422, 1
      %v515 = vsel %vm460, %v512, %v514
      %v516 = vrot.slane %v407, 1
      %v517 = vrot.slane %v303, 1
      %v518 = vsel %vm460, %v516, %v517
      %v519 = vrot.slane %v423, 1
      %v520 = vsel %vm460, %v517, %v519
      %v521 = vrot.slane %v408, 1
      %v522 = vrot.slane %v306, 1
      %v523 = vsel %vm460, %v521, %v522
      %v524 = vrot.slane %v424, 1
      %v525 = vsel %vm460, %v522, %v524
      %v526 = vrot.slane %v409, 1
      %v527 = vrot.slane %v309, 1
      %v528 = vsel %vm460, %v526, %v527
      %v529 = vrot.slane %v425, 1
      %v530 = vsel %vm460, %v527, %v529
      %v531 = vrot.slane %v410, 1
      %v532 = vrot.slane %v312, 1
      %v533 = vsel %vm460, %v531, %v532
      %v534 = vrot.slane %v426, 1
      %v535 = vsel %vm460, %v532, %v534
      %v536 = vrot.slane %v411, 1
      %v537 = vrot.slane %v315, 1
      %v538 = vsel %vm460, %v536, %v537
      %v539 = vrot.slane %v427, 1
      %v540 = vsel %vm460, %v537, %v539
      %541 = vrot.lane.b32.xlu0 %v463, 4
      %v542 = vpop.permute.xlu0 %541
      %543 = vrot.lane.b32.xlu0 %v465, 4
      %v544 = vpop.permute.xlu0 %543
      %545 = vrot.lane.b32.xlu0 %v468, 4
      %v546 = vpop.permute.xlu0 %545
      %547 = vrot.lane.b32.xlu0 %v470, 4
      %v548 = vpop.permute.xlu0 %547
      %549 = vrot.lane.b32.xlu0 %v473, 4
      %v550 = vpop.permute.xlu0 %549
      %551 = vrot.lane.b32.xlu0 %v475, 4
      %v552 = vpop.permute.xlu0 %551
      %553 = vrot.lane.b32.xlu0 %v478, 4
      %v554 = vpop.permute.xlu0 %553
      %555 = vrot.lane.b32.xlu0 %v480, 4
      %v556 = vpop.permute.xlu0 %555
      %557 = vrot.lane.b32.xlu0 %v483, 4
      %v558 = vpop.permute.xlu0 %557
      %559 = vrot.lane.b32.xlu0 %v485, 4
      %v560 = vpop.permute.xlu0 %559
      %561 = vrot.lane.b32.xlu0 %v488, 4
      %v562 = vpop.permute.xlu0 %561
      %563 = vrot.lane.b32.xlu0 %v490, 4
      %v564 = vpop.permute.xlu0 %563
      %565 = vrot.lane.b32.xlu0 %v493, 4
      %v566 = vpop.permute.xlu0 %565
      %567 = vrot.lane.b32.xlu0 %v495, 4
      %v568 = vpop.permute.xlu0 %567
      %569 = vrot.lane.b32.xlu0 %v498, 4
      %v570 = vpop.permute.xlu0 %569
      %571 = vrot.lane.b32.xlu0 %v500, 4
      %v572 = vpop.permute.xlu0 %571
      %573 = vrot.lane.b32.xlu0 %v503, 4
      %v574 = vpop.permute.xlu0 %573
      %575 = vrot.lane.b32.xlu0 %v505, 4
      %v576 = vpop.permute.xlu0 %575
      %577 = vrot.lane.b32.xlu0 %v508, 4
      %v578 = vpop.permute.xlu0 %577
      %579 = vrot.lane.b32.xlu0 %v510, 4
      %v580 = vpop.permute.xlu0 %579
      %581 = vrot.lane.b32.xlu0 %v513, 4
      %v582 = vpop.permute.xlu0 %581
      %583 = vrot.lane.b32.xlu0 %v515, 4
      %v584 = vpop.permute.xlu0 %583
      %585 = vrot.lane.b32.xlu0 %v518, 4
      %v586 = vpop.permute.xlu0 %585
      %587 = vrot.lane.b32.xlu0 %v520, 4
      %v588 = vpop.permute.xlu0 %587
      %589 = vrot.lane.b32.xlu0 %v523, 4
      %v590 = vpop.permute.xlu0 %589
      %591 = vrot.lane.b32.xlu0 %v525, 4
      %v592 = vpop.permute.xlu0 %591
      %593 = vrot.lane.b32.xlu0 %v528, 4
      %v594 = vpop.permute.xlu0 %593
      %595 = vrot.lane.b32.xlu0 %v530, 4
      %v596 = vpop.permute.xlu0 %595
      %597 = vrot.lane.b32.xlu0 %v533, 4
      %v598 = vpop.permute.xlu0 %597
      %599 = vrot.lane.b32.xlu0 %v535, 4
      %v600 = vpop.permute.xlu0 %599
      %601 = vrot.lane.b32.xlu0 %v538, 4
      %v602 = vpop.permute.xlu0 %601
      %603 = vrot.lane.b32.xlu0 %v540, 4
      %v604 = vpop.permute.xlu0 %603
      %vm637 = vcmask 1045504
      %v638 = vrot.slane %v397, 2
      %v639 = vrot.slane %v273, 2
      %v640 = vsel %vm637, %v638, %v639
      %v641 = vrot.slane %v413, 2
      %v642 = vsel %vm637, %v639, %v641
      %v643 = vrot.slane %v396, 2
      %v644 = vrot.slane %v270, 2
      %v645 = vsel %vm637, %v643, %v644
      %v646 = vrot.slane %v412, 2
      %v647 = vsel %vm637, %v644, %v646
      %v648 = vrot.slane %v398, 2
      %v649 = vrot.slane %v276, 2
      %v650 = vsel %vm637, %v648, %v649
      %v651 = vrot.slane %v414, 2
      %v652 = vsel %vm637, %v649, %v651
      %v653 = vrot.slane %v399, 2
      %v654 = vrot.slane %v279, 2
      %v655 = vsel %vm637, %v653, %v654
      %v656 = vrot.slane %v415, 2
      %v657 = vsel %vm637, %v654, %v656
      %v658 = vrot.slane %v400, 2
      %v659 = vrot.slane %v282, 2
      %v660 = vsel %vm637, %v658, %v659
      %v661 = vrot.slane %v416, 2
      %v662 = vsel %vm637, %v659, %v661
      %v663 = vrot.slane %v401, 2
      %v664 = vrot.slane %v285, 2
      %v665 = vsel %vm637, %v663, %v664
      %v666 = vrot.slane %v417, 2
      %v667 = vsel %vm637, %v664, %v666
      %v668 = vrot.slane %v402, 2
      %v669 = vrot.slane %v288, 2
      %v670 = vsel %vm637, %v668, %v669
      %v671 = vrot.slane %v418, 2
      %v672 = vsel %vm637, %v669, %v671
      %v673 = vrot.slane %v403, 2
      %v674 = vrot.slane %v291, 2
      %v675 = vsel %vm637, %v673, %v674
      %v676 = vrot.slane %v419, 2
      %v677 = vsel %vm637, %v674, %v676
      %v678 = vrot.slane %v404, 2
      %v679 = vrot.slane %v294, 2
      %v680 = vsel %vm637, %v678, %v679
      %v681 = vrot.slane %v420, 2
      %v682 = vsel %vm637, %v679, %v681
      %v683 = vrot.slane %v405, 2
      %v684 = vrot.slane %v297, 2
      %v685 = vsel %vm637, %v683, %v684
      %v686 = vrot.slane %v421, 2
      %v687 = vsel %vm637, %v684, %v686
      %v688 = vrot.slane %v406, 2
      %v689 = vrot.slane %v300, 2
      %v690 = vsel %vm637, %v688, %v689
      %v691 = vrot.slane %v422, 2
      %v692 = vsel %vm637, %v689, %v691
      %v693 = vrot.slane %v407, 2
      %v694 = vrot.slane %v303, 2
      %v695 = vsel %vm637, %v693, %v694
      %v696 = vrot.slane %v423, 2
      %v697 = vsel %vm637, %v694, %v696
      %v698 = vrot.slane %v408, 2
      %v699 = vrot.slane %v306, 2
      %v700 = vsel %vm637, %v698, %v699
      %v701 = vrot.slane %v424, 2
      %v702 = vsel %vm637, %v699, %v701
      %v703 = vrot.slane %v409, 2
      %v704 = vrot.slane %v309, 2
      %v705 = vsel %vm637, %v703, %v704
      %v706 = vrot.slane %v425, 2
      %v707 = vsel %vm637, %v704, %v706
      %v708 = vrot.slane %v410, 2
      %v709 = vrot.slane %v312, 2
      %v710 = vsel %vm637, %v708, %v709
      %v711 = vrot.slane %v426, 2
      %v712 = vsel %vm637, %v709, %v711
      %v713 = vrot.slane %v411, 2
      %v714 = vrot.slane %v315, 2
      %v715 = vsel %vm637, %v713, %v714
      %v716 = vrot.slane %v427, 2
      %v717 = vsel %vm637, %v714, %v716
      %718 = vrot.lane.b32.xlu0 %v640, 8
      %v719 = vpop.permute.xlu0 %718
      %720 = vrot.lane.b32.xlu0 %v642, 8
      %v721 = vpop.permute.xlu0 %720
      %722 = vrot.lane.b32.xlu0 %v645, 8
      %v723 = vpop.permute.xlu0 %722
      %724 = vrot.lane.b32.xlu0 %v647, 8
      %v725 = vpop.permute.xlu0 %724
      %726 = vrot.lane.b32.xlu0 %v650, 8
      %v727 = vpop.permute.xlu0 %726
      %728 = vrot.lane.b32.xlu0 %v652, 8
      %v729 = vpop.permute.xlu0 %728
      %730 = vrot.lane.b32.xlu0 %v655, 8
      %v731 = vpop.permute.xlu0 %730
      %732 = vrot.lane.b32.xlu0 %v657, 8
      %v733 = vpop.permute.xlu0 %732
      %734 = vrot.lane.b32.xlu0 %v660, 8
      %v735 = vpop.permute.xlu0 %734
      %736 = vrot.lane.b32.xlu0 %v662, 8
      %v737 = vpop.permute.xlu0 %736
      %738 = vrot.lane.b32.xlu0 %v665, 8
      %v739 = vpop.permute.xlu0 %738
      %740 = vrot.lane.b32.xlu0 %v667, 8
      %v741 = vpop.permute.xlu0 %740
      %742 = vrot.lane.b32.xlu0 %v670, 8
      %v743 = vpop.permute.xlu0 %742
      %744 = vrot.lane.b32.xlu0 %v672, 8
      %v745 = vpop.permute.xlu0 %744
      %746 = vrot.lane.b32.xlu0 %v675, 8
      %v747 = vpop.permute.xlu0 %746
      %748 = vrot.lane.b32.xlu0 %v677, 8
      %v749 = vpop.permute.xlu0 %748
      %750 = vrot.lane.b32.xlu0 %v680, 8
      %v751 = vpop.permute.xlu0 %750
      %752 = vrot.lane.b32.xlu0 %v682, 8
      %v753 = vpop.permute.xlu0 %752
      %754 = vrot.lane.b32.xlu0 %v685, 8
      %v755 = vpop.permute.xlu0 %754
      %756 = vrot.lane.b32.xlu0 %v687, 8
      %v757 = vpop.permute.xlu0 %756
      %758 = vrot.lane.b32.xlu0 %v690, 8
      %v759 = vpop.permute.xlu0 %758
      %760 = vrot.lane.b32.xlu0 %v692, 8
      %v761 = vpop.permute.xlu0 %760
      %762 = vrot.lane.b32.xlu0 %v695, 8
      %v763 = vpop.permute.xlu0 %762
      %764 = vrot.lane.b32.xlu0 %v697, 8
      %v765 = vpop.permute.xlu0 %764
      %766 = vrot.lane.b32.xlu0 %v700, 8
      %v767 = vpop.permute.xlu0 %766
      %768 = vrot.lane.b32.xlu0 %v702, 8
      %v769 = vpop.permute.xlu0 %768
      %770 = vrot.lane.b32.xlu0 %v705, 8
      %v771 = vpop.permute.xlu0 %770
      %772 = vrot.lane.b32.xlu0 %v707, 8
      %v773 = vpop.permute.xlu0 %772
      %774 = vrot.lane.b32.xlu0 %v710, 8
      %v775 = vpop.permute.xlu0 %774
      %776 = vrot.lane.b32.xlu0 %v712, 8
      %v777 = vpop.permute.xlu0 %776
      %778 = vrot.lane.b32.xlu0 %v715, 8
      %v779 = vpop.permute.xlu0 %778
      %780 = vrot.lane.b32.xlu0 %v717, 8
      %v781 = vpop.permute.xlu0 %780
      %vm814 = vcmask 31744
      %v815 = vsel %vm814, %v397, %v542
      %v816 = vsel %vm814, %v273, %v544
      %v817 = vsel %vm814, %v396, %v546
      %v818 = vsel %vm814, %v270, %v548
      %v819 = vsel %vm814, %v398, %v550
      %v820 = vsel %vm814, %v276, %v552
      %v821 = vsel %vm814, %v399, %v554
      %v822 = vsel %vm814, %v279, %v556
      %v823 = vsel %vm814, %v400, %v558
      %v824 = vsel %vm814, %v282, %v560
      %v825 = vsel %vm814, %v401, %v562
      %v826 = vsel %vm814, %v285, %v564
      %v827 = vsel %vm814, %v402, %v566
      %v828 = vsel %vm814, %v288, %v568
      %v829 = vsel %vm814, %v403, %v570
      %v830 = vsel %vm814, %v291, %v572
      %v831 = vsel %vm814, %v404, %v574
      %v832 = vsel %vm814, %v294, %v576
      %v833 = vsel %vm814, %v405, %v578
      %v834 = vsel %vm814, %v297, %v580
      %v835 = vsel %vm814, %v406, %v582
      %v836 = vsel %vm814, %v300, %v584
      %v837 = vsel %vm814, %v407, %v586
      %v838 = vsel %vm814, %v303, %v588
      %v839 = vsel %vm814, %v408, %v590
      %v840 = vsel %vm814, %v306, %v592
      %v841 = vsel %vm814, %v409, %v594
      %v842 = vsel %vm814, %v309, %v596
      %v843 = vsel %vm814, %v410, %v598
      %v844 = vsel %vm814, %v312, %v600
      %v845 = vsel %vm814, %v411, %v602
      %v846 = vsel %vm814, %v315, %v604
      %vm847 = vcmask 64512
      %v848 = vsel %vm847, %v815, %v719
      %v849 = vsel %vm847, %v816, %v721
      %v850 = vsel %vm847, %v817, %v723
      %v851 = vsel %vm847, %v818, %v725
      %v852 = vsel %vm847, %v819, %v727
      %v853 = vsel %vm847, %v820, %v729
      %v854 = vsel %vm847, %v821, %v731
      %v855 = vsel %vm847, %v822, %v733
      %v856 = vsel %vm847, %v823, %v735
      %v857 = vsel %vm847, %v824, %v737
      %v858 = vsel %vm847, %v825, %v739
      %v859 = vsel %vm847, %v826, %v741
      %v860 = vsel %vm847, %v827, %v743
      %v861 = vsel %vm847, %v828, %v745
      %v862 = vsel %vm847, %v829, %v747
      %v863 = vsel %vm847, %v830, %v749
      %v864 = vsel %vm847, %v831, %v751
      %v865 = vsel %vm847, %v832, %v753
      %v866 = vsel %vm847, %v833, %v755
      %v867 = vsel %vm847, %v834, %v757
      %v868 = vsel %vm847, %v835, %v759
      %v869 = vsel %vm847, %v836, %v761
      %v870 = vsel %vm847, %v837, %v763
      %v871 = vsel %vm847, %v838, %v765
      %v872 = vsel %vm847, %v839, %v767
      %v873 = vsel %vm847, %v840, %v769
      %v874 = vsel %vm847, %v841, %v771
      %v875 = vsel %vm847, %v842, %v773
      %v876 = vsel %vm847, %v843, %v775
      %v877 = vsel %vm847, %v844, %v777
      %v878 = vsel %vm847, %v845, %v779
      %v879 = vsel %vm847, %v846, %v781
      %v880 = vld [vmem:[%s1] sm:$0xff]
      %v881 = vld [vmem:[%s1 + $0x8] sm:$0xf]
      %s882 = scalar_lea.vmem %s1, 16
      %v883 = vld [vmem:[%s882] sm:$0xff]
      %v884 = vld [vmem:[%s882 + $0x8] sm:$0xf]
      %vm885 = vcmask 97280
      %v887 = vsel %vm885, %v850, 0
      %v890 = vsel %vm885, %v851, 0
      %v893 = vsel %vm885, %v848, 0
      %v896 = vsel %vm885, %v849, 0
      %v899 = vsel %vm885, %v852, 0
      %v902 = vsel %vm885, %v853, 0
      %v905 = vsel %vm885, %v854, 0
      %v908 = vsel %vm885, %v855, 0
      %v911 = vsel %vm885, %v856, 0
      %v914 = vsel %vm885, %v857, 0
      %v917 = vsel %vm885, %v858, 0
      %v920 = vsel %vm885, %v859, 0
      %v923 = vsel %vm885, %v860, 0
      %v926 = vsel %vm885, %v861, 0
      %v929 = vsel %vm885, %v862, 0
      %v932 = vsel %vm885, %v863, 0
      %v935 = vsel %vm885, %v864, 0
      %v938 = vsel %vm885, %v865, 0
      %v941 = vsel %vm885, %v866, 0
      %v944 = vsel %vm885, %v867, 0
      %v947 = vsel %vm885, %v868, 0
      %v950 = vsel %vm885, %v869, 0
      %v953 = vsel %vm885, %v870, 0
      %v956 = vsel %vm885, %v871, 0
      %v959 = vsel %vm885, %v872, 0
      %v962 = vsel %vm885, %v873, 0
      %v965 = vsel %vm885, %v874, 0
      %v968 = vsel %vm885, %v875, 0
      %v971 = vsel %vm885, %v876, 0
      %v974 = vsel %vm885, %v877, 0
      %v977 = vsel %vm885, %v878, 0
      %v980 = vsel %vm885, %v879, 0
      %vm982 = vcmask 1043456
      %v984 = vsel %vm982, %v884, 0
      %986 = vmatprep.subr.mxu0 0.0
      %987 = vmatpush1.msra.mxu0 0.0
      %988 = vmatprep.subr.mxu0 0.0
      %989 = vmatpush1.msra.mxu0 0.0
      %990 = vmatprep.subr.mxu0 0.0
      %991 = vmatpush1.msra.mxu0 0.0
      %992 = vmatprep.subr.mxu0 0.0
      %993 = vmatpush1.msra.mxu0 0.0
      %994 = vmatprep.subr.mxu0 0.0
      %995 = vmatpush1.msra.mxu0 0.0
      %996 = vmatprep.subr.mxu0 0.0
      %997 = vmatpush1.msra.mxu0 0.0
      %998 = vmatprep.subr.mxu0 0.0
      %999 = vmatpush1.msra.mxu0 0.0
      %1000 = vmatprep.subr.mxu0 0.0
      %1001 = vmatpush1.msra.mxu0 0.0
      %1002 = vmatprep.subr.mxu0 0.0
      %1003 = vmatpush1.msra.mxu0 0.0
      %1004 = vmatprep.subr.mxu0 0.0
      %1005 = vmatpush1.msra.mxu0 0.0
      %1006 = vmatprep.subr.mxu0 0.0
      %1007 = vmatpush1.msra.mxu0 0.0
      %1008 = vmatprep.subr.mxu0 0.0
      %1009 = vmatpush1.msra.mxu0 0.0
      %1010 = vmatprep.subr.mxu0 0.0
      %1011 = vmatpush1.msra.mxu0 0.0
      %1012 = vmatprep.subr.mxu0 0.0
      %1013 = vmatpush1.msra.mxu0 0.0
      %1014 = vmatprep.subr.mxu0 0.0
      %1015 = vmatpush1.msra.mxu0 %v984
      %1016 = vmatprep.subr.mxu0 0.0
      %1017 = vmatpush1.msra.mxu0 %v883
      %1018 = vmatprep.subr.mxu0 0.0
      %1019 = vmatpush2.msra.mxu0 0.0
      %1020 = vmatprep.subr.mxu0 0.0
      %1021 = vmatpush2.msra.mxu0 0.0
      %1022 = vmatprep.subr.mxu0 0.0
      %1023 = vmatpush2.msra.mxu0 0.0
      %1024 = vmatprep.subr.mxu0 0.0
      %1025 = vmatpush2.msra.mxu0 0.0
      %1026 = vmatprep.subr.mxu0 0.0
      %1027 = vmatpush2.msra.mxu0 0.0
      %1028 = vmatprep.subr.mxu0 0.0
      %1029 = vmatpush2.msra.mxu0 0.0
      %1030 = vmatprep.subr.mxu0 0.0
      %1031 = vmatpush2.msra.mxu0 0.0
      %1032 = vmatprep.subr.mxu0 0.0
      %1033 = vmatpush2.msra.mxu0 0.0
      %1034 = vmatprep.subr.mxu0 0.0
      %1035 = vmatpush2.msra.mxu0 0.0
      %1036 = vmatprep.subr.mxu0 0.0
      %1037 = vmatpush2.msra.mxu0 0.0
      %1038 = vmatprep.subr.mxu0 0.0
      %1039 = vmatpush2.msra.mxu0 0.0
      %1040 = vmatprep.subr.mxu0 0.0
      %1041 = vmatpush2.msra.mxu0 0.0
      %1042 = vmatprep.subr.mxu0 0.0
      %1043 = vmatpush2.msra.mxu0 0.0
      %1044 = vmatprep.subr.mxu0 0.0
      %1045 = vmatpush2.msra.mxu0 0.0
      %1046 = vmatprep.subr.mxu0 0.0
      %1047 = vmatpush2.msra.mxu0 0.0
      %1048 = vmatprep.subr.mxu0 0.0
      %1049 = vmatpush2.msra.mxu0 0.0
      %1050 = vmatprep.mubr.f32.mxu0 0.0
      %1051 = vmatmul.mubr.f32.gmra.mxu0 %v887
      %v1052 = vpop.f32.mrf.mxu0
      %v1053 = vadd.f32 0.0, %v1052
      %v1054 = vpop.f32.mrf.mxu0
      %1055 = vmatprep.mubr.f32.mxu0 0.0
      %1056 = vmatmul.mubr.f32.gmra.mxu0 %v890
      %v1057 = vpop.f32.mrf.mxu0
      %v1058 = vadd.f32 0.0, %v1057
      %v1059 = vpop.f32.mrf.mxu0
      %1060 = vmatprep.mubr.f32.mxu0 0.0
      %1061 = vmatmul.mubr.f32.gmra.mxu0 %v893
      %v1062 = vpop.f32.mrf.mxu0
      %v1063 = vadd.f32 0.0, %v1062
      %v1064 = vpop.f32.mrf.mxu0
      %1065 = vmatprep.mubr.f32.mxu0 0.0
      %1066 = vmatmul.mubr.f32.gmra.mxu0 %v896
      %v1067 = vpop.f32.mrf.mxu0
      %v1068 = vadd.f32 0.0, %v1067
      %v1069 = vpop.f32.mrf.mxu0
      %1070 = vmatprep.mubr.f32.mxu0 0.0
      %1071 = vmatmul.mubr.f32.gmra.mxu0 %v899
      %v1072 = vpop.f32.mrf.mxu0
      %v1073 = vadd.f32 0.0, %v1072
      %v1074 = vpop.f32.mrf.mxu0
      %1075 = vmatprep.mubr.f32.mxu0 0.0
      %1076 = vmatmul.mubr.f32.gmra.mxu0 %v902
      %v1077 = vpop.f32.mrf.mxu0
      %v1078 = vadd.f32 0.0, %v1077
      %v1079 = vpop.f32.mrf.mxu0
      %1080 = vmatprep.mubr.f32.mxu0 0.0
      %1081 = vmatmul.mubr.f32.gmra.mxu0 %v905
      %v1082 = vpop.f32.mrf.mxu0
      %v1083 = vadd.f32 0.0, %v1082
      %v1084 = vpop.f32.mrf.mxu0
      %1085 = vmatprep.mubr.f32.mxu0 0.0
      %1086 = vmatmul.mubr.f32.gmra.mxu0 %v908
      %v1087 = vpop.f32.mrf.mxu0
      %v1088 = vadd.f32 0.0, %v1087
      %v1089 = vpop.f32.mrf.mxu0
      %1090 = vmatprep.mubr.f32.mxu0 0.0
      %1091 = vmatmul.mubr.f32.gmra.mxu0 %v911
      %v1092 = vpop.f32.mrf.mxu0
      %v1093 = vadd.f32 0.0, %v1092
      %v1094 = vpop.f32.mrf.mxu0
      %1095 = vmatprep.mubr.f32.mxu0 0.0
      %1096 = vmatmul.mubr.f32.gmra.mxu0 %v914
      %v1097 = vpop.f32.mrf.mxu0
      %v1098 = vadd.f32 0.0, %v1097
      %v1099 = vpop.f32.mrf.mxu0
      %1100 = vmatprep.mubr.f32.mxu0 0.0
      %1101 = vmatmul.mubr.f32.gmra.mxu0 %v917
      %v1102 = vpop.f32.mrf.mxu0
      %v1103 = vadd.f32 0.0, %v1102
      %v1104 = vpop.f32.mrf.mxu0
      %1105 = vmatprep.mubr.f32.mxu0 0.0
      %1106 = vmatmul.mubr.f32.gmra.mxu0 %v920
      %v1107 = vpop.f32.mrf.mxu0
      %v1108 = vadd.f32 0.0, %v1107
      %v1109 = vpop.f32.mrf.mxu0
      %1110 = vmatprep.mubr.f32.mxu0 0.0
      %1111 = vmatmul.mubr.f32.gmra.mxu0 %v923
      %v1112 = vpop.f32.mrf.mxu0
      %v1113 = vadd.f32 0.0, %v1112
      %v1114 = vpop.f32.mrf.mxu0
      %1115 = vmatprep.mubr.f32.mxu0 0.0
      %1116 = vmatmul.mubr.f32.gmra.mxu0 %v926
      %v1117 = vpop.f32.mrf.mxu0
      %v1118 = vadd.f32 0.0, %v1117
      %v1119 = vpop.f32.mrf.mxu0
      %1120 = vmatprep.mubr.f32.mxu0 0.0
      %1121 = vmatmul.mubr.f32.gmra.mxu0 %v929
      %v1122 = vpop.f32.mrf.mxu0
      %v1123 = vadd.f32 0.0, %v1122
      %v1124 = vpop.f32.mrf.mxu0
      %1125 = vmatprep.mubr.f32.mxu0 0.0
      %1126 = vmatmul.mubr.f32.gmra.mxu0 %v932
      %v1127 = vpop.f32.mrf.mxu0
      %v1128 = vadd.f32 0.0, %v1127
      %v1129 = vpop.f32.mrf.mxu0
      %1130 = vmatprep.mubr.f32.mxu0 0.0
      %1131 = vmatmul.mubr.f32.gmra.mxu0 %v935
      %v1132 = vpop.f32.mrf.mxu0
      %v1133 = vadd.f32 0.0, %v1132
      %v1134 = vpop.f32.mrf.mxu0
      %1135 = vmatprep.mubr.f32.mxu0 0.0
      %1136 = vmatmul.mubr.f32.gmra.mxu0 %v938
      %v1137 = vpop.f32.mrf.mxu0
      %v1138 = vadd.f32 0.0, %v1137
      %v1139 = vpop.f32.mrf.mxu0
      %1140 = vmatprep.mubr.f32.mxu0 0.0
      %1141 = vmatmul.mubr.f32.gmra.mxu0 %v941
      %v1142 = vpop.f32.mrf.mxu0
      %v1143 = vadd.f32 0.0, %v1142
      %v1144 = vpop.f32.mrf.mxu0
      %1145 = vmatprep.mubr.f32.mxu0 0.0
      %1146 = vmatmul.mubr.f32.gmra.mxu0 %v944
      %v1147 = vpop.f32.mrf.mxu0
      %v1148 = vadd.f32 0.0, %v1147
      %v1149 = vpop.f32.mrf.mxu0
      %1150 = vmatprep.mubr.f32.mxu0 0.0
      %1151 = vmatmul.mubr.f32.gmra.mxu0 %v947
      %v1152 = vpop.f32.mrf.mxu0
      %v1153 = vadd.f32 0.0, %v1152
      %v1154 = vpop.f32.mrf.mxu0
      %1155 = vmatprep.mubr.f32.mxu0 0.0
      %1156 = vmatmul.mubr.f32.gmra.mxu0 %v950
      %v1157 = vpop.f32.mrf.mxu0
      %v1158 = vadd.f32 0.0, %v1157
      %v1159 = vpop.f32.mrf.mxu0
      %1160 = vmatprep.mubr.f32.mxu0 0.0
      %1161 = vmatmul.mubr.f32.gmra.mxu0 %v953
      %v1162 = vpop.f32.mrf.mxu0
      %v1163 = vadd.f32 0.0, %v1162
      %v1164 = vpop.f32.mrf.mxu0
      %1165 = vmatprep.mubr.f32.mxu0 0.0
      %1166 = vmatmul.mubr.f32.gmra.mxu0 %v956
      %v1167 = vpop.f32.mrf.mxu0
      %v1168 = vadd.f32 0.0, %v1167
      %v1169 = vpop.f32.mrf.mxu0
      %1170 = vmatprep.mubr.f32.mxu0 0.0
      %1171 = vmatmul.mubr.f32.gmra.mxu0 %v959
      %v1172 = vpop.f32.mrf.mxu0
      %v1173 = vadd.f32 0.0, %v1172
      %v1174 = vpop.f32.mrf.mxu0
      %1175 = vmatprep.mubr.f32.mxu0 0.0
      %1176 = vmatmul.mubr.f32.gmra.mxu0 %v962
      %v1177 = vpop.f32.mrf.mxu0
      %v1178 = vadd.f32 0.0, %v1177
      %v1179 = vpop.f32.mrf.mxu0
      %1180 = vmatprep.mubr.f32.mxu0 0.0
      %1181 = vmatmul.mubr.f32.gmra.mxu0 %v965
      %v1182 = vpop.f32.mrf.mxu0
      %v1183 = vadd.f32 0.0, %v1182
      %v1184 = vpop.f32.mrf.mxu0
      %1185 = vmatprep.mubr.f32.mxu0 0.0
      %1186 = vmatmul.mubr.f32.gmra.mxu0 %v968
      %v1187 = vpop.f32.mrf.mxu0
      %v1188 = vadd.f32 0.0, %v1187
      %v1189 = vpop.f32.mrf.mxu0
      %1190 = vmatprep.mubr.f32.mxu0 0.0
      %1191 = vmatmul.mubr.f32.gmra.mxu0 %v971
      %v1192 = vpop.f32.mrf.mxu0
      %v1193 = vadd.f32 0.0, %v1192
      %v1194 = vpop.f32.mrf.mxu0
      %1195 = vmatprep.mubr.f32.mxu0 0.0
      %1196 = vmatmul.mubr.f32.gmra.mxu0 %v974
      %v1197 = vpop.f32.mrf.mxu0
      %v1198 = vadd.f32 0.0, %v1197
      %v1199 = vpop.f32.mrf.mxu0
      %1200 = vmatprep.mubr.f32.mxu0 0.0
      %1201 = vmatmul.mubr.f32.gmra.mxu0 %v977
      %v1202 = vpop.f32.mrf.mxu0
      %v1203 = vadd.f32 0.0, %v1202
      %v1204 = vpop.f32.mrf.mxu0
      %1205 = vmatprep.mubr.f32.mxu0 0.0
      %1206 = vmatmul.mubr.f32.gmra.mxu0 %v980
      %v1207 = vpop.f32.mrf.mxu0
      %v1208 = vadd.f32 0.0, %v1207
      %v1209 = vpop.f32.mrf.mxu0
      %1210 = vdwg.mxu0
      %v1212 = vsel %vm982, %v881, 0
      %1214 = vmatprep.subr.mxu0 0.0
      %1215 = vmatpush1.msra.mxu0 0.0
      %1216 = vmatprep.subr.mxu0 0.0
      %1217 = vmatpush1.msra.mxu0 0.0
      %1218 = vmatprep.subr.mxu0 0.0
      %1219 = vmatpush1.msra.mxu0 0.0
      %1220 = vmatprep.subr.mxu0 0.0
      %1221 = vmatpush1.msra.mxu0 0.0
      %1222 = vmatprep.subr.mxu0 0.0
      %1223 = vmatpush1.msra.mxu0 0.0
      %1224 = vmatprep.subr.mxu0 0.0
      %1225 = vmatpush1.msra.mxu0 0.0
      %1226 = vmatprep.subr.mxu0 0.0
      %1227 = vmatpush1.msra.mxu0 0.0
      %1228 = vmatprep.subr.mxu0 0.0
      %1229 = vmatpush1.msra.mxu0 0.0
      %1230 = vmatprep.subr.mxu0 0.0
      %1231 = vmatpush1.msra.mxu0 0.0
      %1232 = vmatprep.subr.mxu0 0.0
      %1233 = vmatpush1.msra.mxu0 0.0
      %1234 = vmatprep.subr.mxu0 0.0
      %1235 = vmatpush1.msra.mxu0 0.0
      %1236 = vmatprep.subr.mxu0 0.0
      %1237 = vmatpush1.msra.mxu0 0.0
      %1238 = vmatprep.subr.mxu0 0.0
      %1239 = vmatpush1.msra.mxu0 0.0
      %1240 = vmatprep.subr.mxu0 0.0
      %1241 = vmatpush1.msra.mxu0 0.0
      %1242 = vmatprep.subr.mxu0 0.0
      %1243 = vmatpush1.msra.mxu0 %v1212
      %1244 = vmatprep.subr.mxu0 0.0
      %1245 = vmatpush1.msra.mxu0 %v880
      %1246 = vmatprep.subr.mxu0 0.0
      %1247 = vmatpush2.msra.mxu0 0.0
      %1248 = vmatprep.subr.mxu0 0.0
      %1249 = vmatpush2.msra.mxu0 0.0
      %1250 = vmatprep.subr.mxu0 0.0
      %1251 = vmatpush2.msra.mxu0 0.0
      %1252 = vmatprep.subr.mxu0 0.0
      %1253 = vmatpush2.msra.mxu0 0.0
      %1254 = vmatprep.subr.mxu0 0.0
      %1255 = vmatpush2.msra.mxu0 0.0
      %1256 = vmatprep.subr.mxu0 0.0
      %1257 = vmatpush2.msra.mxu0 0.0
      %1258 = vmatprep.subr.mxu0 0.0
      %1259 = vmatpush2.msra.mxu0 0.0
      %1260 = vmatprep.subr.mxu0 0.0
      %1261 = vmatpush2.msra.mxu0 0.0
      %1262 = vmatprep.subr.mxu0 0.0
      %1263 = vmatpush2.msra.mxu0 0.0
      %1264 = vmatprep.subr.mxu0 0.0
      %1265 = vmatpush2.msra.mxu0 0.0
      %1266 = vmatprep.subr.mxu0 0.0
      %1267 = vmatpush2.msra.mxu0 0.0
      %1268 = vmatprep.subr.mxu0 0.0
      %1269 = vmatpush2.msra.mxu0 0.0
      %1270 = vmatprep.subr.mxu0 0.0
      %1271 = vmatpush2.msra.mxu0 0.0
      %1272 = vmatprep.subr.mxu0 0.0
      %1273 = vmatpush2.msra.mxu0 0.0
      %1274 = vmatprep.subr.mxu0 0.0
      %1275 = vmatpush2.msra.mxu0 0.0
      %1276 = vmatprep.subr.mxu0 0.0
      %1277 = vmatpush2.msra.mxu0 0.0
      %1278 = vmatprep.mubr.f32.mxu0 0.0
      %1279 = vmatmul.mubr.f32.gmra.mxu0 %v893
      %v1280 = vpop.f32.mrf.mxu0
      %v1281 = vadd.f32 %v1053, %v1280
      %v1282 = vpop.f32.mrf.mxu0
      %1283 = vmatprep.mubr.f32.mxu0 0.0
      %1284 = vmatmul.mubr.f32.gmra.mxu0 %v896
      %v1285 = vpop.f32.mrf.mxu0
      %v1286 = vadd.f32 %v1058, %v1285
      %v1287 = vpop.f32.mrf.mxu0
      %1288 = vmatprep.mubr.f32.mxu0 0.0
      %1289 = vmatmul.mubr.f32.gmra.mxu0 %v887
      %v1290 = vpop.f32.mrf.mxu0
      %v1291 = vadd.f32 %v1063, %v1290
      %v1292 = vpop.f32.mrf.mxu0
      %1293 = vmatprep.mubr.f32.mxu0 0.0
      %1294 = vmatmul.mubr.f32.gmra.mxu0 %v890
      %v1295 = vpop.f32.mrf.mxu0
      %v1296 = vadd.f32 %v1068, %v1295
      %v1297 = vpop.f32.mrf.mxu0
      %1298 = vmatprep.mubr.f32.mxu0 0.0
      %1299 = vmatmul.mubr.f32.gmra.mxu0 %v893
      %v1300 = vpop.f32.mrf.mxu0
      %v1301 = vadd.f32 %v1073, %v1300
      %v1302 = vpop.f32.mrf.mxu0
      %1303 = vmatprep.mubr.f32.mxu0 0.0
      %1304 = vmatmul.mubr.f32.gmra.mxu0 %v896
      %v1305 = vpop.f32.mrf.mxu0
      %v1306 = vadd.f32 %v1078, %v1305
      %v1307 = vpop.f32.mrf.mxu0
      %1308 = vmatprep.mubr.f32.mxu0 0.0
      %1309 = vmatmul.mubr.f32.gmra.mxu0 %v899
      %v1310 = vpop.f32.mrf.mxu0
      %v1311 = vadd.f32 %v1083, %v1310
      %v1312 = vpop.f32.mrf.mxu0
      %1313 = vmatprep.mubr.f32.mxu0 0.0
      %1314 = vmatmul.mubr.f32.gmra.mxu0 %v902
      %v1315 = vpop.f32.mrf.mxu0
      %v1316 = vadd.f32 %v1088, %v1315
      %v1317 = vpop.f32.mrf.mxu0
      %1318 = vmatprep.mubr.f32.mxu0 0.0
      %1319 = vmatmul.mubr.f32.gmra.mxu0 %v905
      %v1320 = vpop.f32.mrf.mxu0
      %v1321 = vadd.f32 %v1093, %v1320
      %v1322 = vpop.f32.mrf.mxu0
      %1323 = vmatprep.mubr.f32.mxu0 0.0
      %1324 = vmatmul.mubr.f32.gmra.mxu0 %v908
      %v1325 = vpop.f32.mrf.mxu0
      %v1326 = vadd.f32 %v1098, %v1325
      %v1327 = vpop.f32.mrf.mxu0
      %1328 = vmatprep.mubr.f32.mxu0 0.0
      %1329 = vmatmul.mubr.f32.gmra.mxu0 %v911
      %v1330 = vpop.f32.mrf.mxu0
      %v1331 = vadd.f32 %v1103, %v1330
      %v1332 = vpop.f32.mrf.mxu0
      %1333 = vmatprep.mubr.f32.mxu0 0.0
      %1334 = vmatmul.mubr.f32.gmra.mxu0 %v914
      %v1335 = vpop.f32.mrf.mxu0
      %v1336 = vadd.f32 %v1108, %v1335
      %v1337 = vpop.f32.mrf.mxu0
      %1338 = vmatprep.mubr.f32.mxu0 0.0
      %1339 = vmatmul.mubr.f32.gmra.mxu0 %v917
      %v1340 = vpop.f32.mrf.mxu0
      %v1341 = vadd.f32 %v1113, %v1340
      %v1342 = vpop.f32.mrf.mxu0
      %1343 = vmatprep.mubr.f32.mxu0 0.0
      %1344 = vmatmul.mubr.f32.gmra.mxu0 %v920
      %v1345 = vpop.f32.mrf.mxu0
      %v1346 = vadd.f32 %v1118, %v1345
      %v1347 = vpop.f32.mrf.mxu0
      %1348 = vmatprep.mubr.f32.mxu0 0.0
      %1349 = vmatmul.mubr.f32.gmra.mxu0 %v923
      %v1350 = vpop.f32.mrf.mxu0
      %v1351 = vadd.f32 %v1123, %v1350
      %v1352 = vpop.f32.mrf.mxu0
      %1353 = vmatprep.mubr.f32.mxu0 0.0
      %1354 = vmatmul.mubr.f32.gmra.mxu0 %v926
      %v1355 = vpop.f32.mrf.mxu0
      %v1356 = vadd.f32 %v1128, %v1355
      %v1357 = vpop.f32.mrf.mxu0
      %1358 = vmatprep.mubr.f32.mxu0 0.0
      %1359 = vmatmul.mubr.f32.gmra.mxu0 %v929
      %v1360 = vpop.f32.mrf.mxu0
      %v1361 = vadd.f32 %v1133, %v1360
      %v1362 = vpop.f32.mrf.mxu0
      %1363 = vmatprep.mubr.f32.mxu0 0.0
      %1364 = vmatmul.mubr.f32.gmra.mxu0 %v932
      %v1365 = vpop.f32.mrf.mxu0
      %v1366 = vadd.f32 %v1138, %v1365
      %v1367 = vpop.f32.mrf.mxu0
      %1368 = vmatprep.mubr.f32.mxu0 0.0
      %1369 = vmatmul.mubr.f32.gmra.mxu0 %v935
      %v1370 = vpop.f32.mrf.mxu0
      %v1371 = vadd.f32 %v1143, %v1370
      %v1372 = vpop.f32.mrf.mxu0
      %1373 = vmatprep.mubr.f32.mxu0 0.0
      %1374 = vmatmul.mubr.f32.gmra.mxu0 %v938
      %v1375 = vpop.f32.mrf.mxu0
      %v1376 = vadd.f32 %v1148, %v1375
      %v1377 = vpop.f32.mrf.mxu0
      %1378 = vmatprep.mubr.f32.mxu0 0.0
      %1379 = vmatmul.mubr.f32.gmra.mxu0 %v941
      %v1380 = vpop.f32.mrf.mxu0
      %v1381 = vadd.f32 %v1153, %v1380
      %v1382 = vpop.f32.mrf.mxu0
      %1383 = vmatprep.mubr.f32.mxu0 0.0
      %1384 = vmatmul.mubr.f32.gmra.mxu0 %v944
      %v1385 = vpop.f32.mrf.mxu0
      %v1386 = vadd.f32 %v1158, %v1385
      %v1387 = vpop.f32.mrf.mxu0
      %1388 = vmatprep.mubr.f32.mxu0 0.0
      %1389 = vmatmul.mubr.f32.gmra.mxu0 %v947
      %v1390 = vpop.f32.mrf.mxu0
      %v1391 = vadd.f32 %v1163, %v1390
      %v1392 = vpop.f32.mrf.mxu0
      %1393 = vmatprep.mubr.f32.mxu0 0.0
      %1394 = vmatmul.mubr.f32.gmra.mxu0 %v950
      %v1395 = vpop.f32.mrf.mxu0
      %v1396 = vadd.f32 %v1168, %v1395
      %v1397 = vpop.f32.mrf.mxu0
      %1398 = vmatprep.mubr.f32.mxu0 0.0
      %1399 = vmatmul.mubr.f32.gmra.mxu0 %v953
      %v1400 = vpop.f32.mrf.mxu0
      %v1401 = vadd.f32 %v1173, %v1400
      %v1402 = vpop.f32.mrf.mxu0
      %1403 = vmatprep.mubr.f32.mxu0 0.0
      %1404 = vmatmul.mubr.f32.gmra.mxu0 %v956
      %v1405 = vpop.f32.mrf.mxu0
      %v1406 = vadd.f32 %v1178, %v1405
      %v1407 = vpop.f32.mrf.mxu0
      %1408 = vmatprep.mubr.f32.mxu0 0.0
      %1409 = vmatmul.mubr.f32.gmra.mxu0 %v959
      %v1410 = vpop.f32.mrf.mxu0
      %v1411 = vadd.f32 %v1183, %v1410
      %v1412 = vpop.f32.mrf.mxu0
      %1413 = vmatprep.mubr.f32.mxu0 0.0
      %1414 = vmatmul.mubr.f32.gmra.mxu0 %v962
      %v1415 = vpop.f32.mrf.mxu0
      %v1416 = vadd.f32 %v1188, %v1415
      %v1417 = vpop.f32.mrf.mxu0
      %1418 = vmatprep.mubr.f32.mxu0 0.0
      %1419 = vmatmul.mubr.f32.gmra.mxu0 %v965
      %v1420 = vpop.f32.mrf.mxu0
      %v1421 = vadd.f32 %v1193, %v1420
      %v1422 = vpop.f32.mrf.mxu0
      %1423 = vmatprep.mubr.f32.mxu0 0.0
      %1424 = vmatmul.mubr.f32.gmra.mxu0 %v968
      %v1425 = vpop.f32.mrf.mxu0
      %v1426 = vadd.f32 %v1198, %v1425
      %v1427 = vpop.f32.mrf.mxu0
      %1428 = vmatprep.mubr.f32.mxu0 0.0
      %1429 = vmatmul.mubr.f32.gmra.mxu0 %v971
      %v1430 = vpop.f32.mrf.mxu0
      %v1431 = vadd.f32 %v1203, %v1430
      %v1432 = vpop.f32.mrf.mxu0
      %1433 = vmatprep.mubr.f32.mxu0 0.0
      %1434 = vmatmul.mubr.f32.gmra.mxu0 %v974
      %v1435 = vpop.f32.mrf.mxu0
      %v1436 = vadd.f32 %v1208, %v1435
      %v1437 = vpop.f32.mrf.mxu0
      %1438 = vdwg.mxu0
      %s1439 = scalar_lea.vmem %s1, 32
      %v1440 = vld [vmem:[%s1439] sm:$0xff]
      %v1441 = vld [vmem:[%s1439 + $0x8] sm:$0xf]
      %v1443 = vsel %vm982, %v1441, 0
      %1445 = vmatprep.subr.mxu0 0.0
      %1446 = vmatpush1.msra.mxu0 0.0
      %1447 = vmatprep.subr.mxu0 0.0
      %1448 = vmatpush1.msra.mxu0 0.0
      %1449 = vmatprep.subr.mxu0 0.0
      %1450 = vmatpush1.msra.mxu0 0.0
      %1451 = vmatprep.subr.mxu0 0.0
      %1452 = vmatpush1.msra.mxu0 0.0
      %1453 = vmatprep.subr.mxu0 0.0
      %1454 = vmatpush1.msra.mxu0 0.0
      %1455 = vmatprep.subr.mxu0 0.0
      %1456 = vmatpush1.msra.mxu0 0.0
      %1457 = vmatprep.subr.mxu0 0.0
      %1458 = vmatpush1.msra.mxu0 0.0
      %1459 = vmatprep.subr.mxu0 0.0
      %1460 = vmatpush1.msra.mxu0 0.0
      %1461 = vmatprep.subr.mxu0 0.0
      %1462 = vmatpush1.msra.mxu0 0.0
      %1463 = vmatprep.subr.mxu0 0.0
      %1464 = vmatpush1.msra.mxu0 0.0
      %1465 = vmatprep.subr.mxu0 0.0
      %1466 = vmatpush1.msra.mxu0 0.0
      %1467 = vmatprep.subr.mxu0 0.0
      %1468 = vmatpush1.msra.mxu0 0.0
      %1469 = vmatprep.subr.mxu0 0.0
      %1470 = vmatpush1.msra.mxu0 0.0
      %1471 = vmatprep.subr.mxu0 0.0
      %1472 = vmatpush1.msra.mxu0 0.0
      %1473 = vmatprep.subr.mxu0 0.0
      %1474 = vmatpush1.msra.mxu0 %v1443
      %1475 = vmatprep.subr.mxu0 0.0
      %1476 = vmatpush1.msra.mxu0 %v1440
      %1477 = vmatprep.subr.mxu0 0.0
      %1478 = vmatpush2.msra.mxu0 0.0
      %1479 = vmatprep.subr.mxu0 0.0
      %1480 = vmatpush2.msra.mxu0 0.0
      %1481 = vmatprep.subr.mxu0 0.0
      %1482 = vmatpush2.msra.mxu0 0.0
      %1483 = vmatprep.subr.mxu0 0.0
      %1484 = vmatpush2.msra.mxu0 0.0
      %1485 = vmatprep.subr.mxu0 0.0
      %1486 = vmatpush2.msra.mxu0 0.0
      %1487 = vmatprep.subr.mxu0 0.0
      %1488 = vmatpush2.msra.mxu0 0.0
      %1489 = vmatprep.subr.mxu0 0.0
      %1490 = vmatpush2.msra.mxu0 0.0
      %1491 = vmatprep.subr.mxu0 0.0
      %1492 = vmatpush2.msra.mxu0 0.0
      %1493 = vmatprep.subr.mxu0 0.0
      %1494 = vmatpush2.msra.mxu0 0.0
      %1495 = vmatprep.subr.mxu0 0.0
      %1496 = vmatpush2.msra.mxu0 0.0
      %1497 = vmatprep.subr.mxu0 0.0
      %1498 = vmatpush2.msra.mxu0 0.0
      %1499 = vmatprep.subr.mxu0 0.0
      %1500 = vmatpush2.msra.mxu0 0.0
      %1501 = vmatprep.subr.mxu0 0.0
      %1502 = vmatpush2.msra.mxu0 0.0
      %1503 = vmatprep.subr.mxu0 0.0
      %1504 = vmatpush2.msra.mxu0 0.0
      %1505 = vmatprep.subr.mxu0 0.0
      %1506 = vmatpush2.msra.mxu0 0.0
      %1507 = vmatprep.subr.mxu0 0.0
      %1508 = vmatpush2.msra.mxu0 0.0
      %1509 = vmatprep.mubr.f32.mxu0 0.0
      %1510 = vmatmul.mubr.f32.gmra.mxu0 %v893
      %v1511 = vpop.f32.mrf.mxu0
      %v1512 = vadd.f32 0.0, %v1511
      %v1513 = vpop.f32.mrf.mxu0
      %1514 = vmatprep.mubr.f32.mxu0 0.0
      %1515 = vmatmul.mubr.f32.gmra.mxu0 %v896
      %v1516 = vpop.f32.mrf.mxu0
      %v1517 = vadd.f32 0.0, %v1516
      %v1518 = vpop.f32.mrf.mxu0
      %1519 = vmatprep.mubr.f32.mxu0 0.0
      %1520 = vmatmul.mubr.f32.gmra.mxu0 %v899
      %v1521 = vpop.f32.mrf.mxu0
      %v1522 = vadd.f32 0.0, %v1521
      %v1523 = vpop.f32.mrf.mxu0
      %1524 = vmatprep.mubr.f32.mxu0 0.0
      %1525 = vmatmul.mubr.f32.gmra.mxu0 %v902
      %v1526 = vpop.f32.mrf.mxu0
      %v1527 = vadd.f32 0.0, %v1526
      %v1528 = vpop.f32.mrf.mxu0
      %1529 = vmatprep.mubr.f32.mxu0 0.0
      %1530 = vmatmul.mubr.f32.gmra.mxu0 %v905
      %v1531 = vpop.f32.mrf.mxu0
      %v1532 = vadd.f32 0.0, %v1531
      %v1533 = vpop.f32.mrf.mxu0
      %1534 = vmatprep.mubr.f32.mxu0 0.0
      %1535 = vmatmul.mubr.f32.gmra.mxu0 %v908
      %v1536 = vpop.f32.mrf.mxu0
      %v1537 = vadd.f32 0.0, %v1536
      %v1538 = vpop.f32.mrf.mxu0
      %1539 = vmatprep.mubr.f32.mxu0 0.0
      %1540 = vmatmul.mubr.f32.gmra.mxu0 %v911
      %v1541 = vpop.f32.mrf.mxu0
      %v1542 = vadd.f32 0.0, %v1541
      %v1543 = vpop.f32.mrf.mxu0
      %1544 = vmatprep.mubr.f32.mxu0 0.0
      %1545 = vmatmul.mubr.f32.gmra.mxu0 %v914
      %v1546 = vpop.f32.mrf.mxu0
      %v1547 = vadd.f32 0.0, %v1546
      %v1548 = vpop.f32.mrf.mxu0
      %1549 = vmatprep.mubr.f32.mxu0 0.0
      %1550 = vmatmul.mubr.f32.gmra.mxu0 %v917
      %v1551 = vpop.f32.mrf.mxu0
      %v1552 = vadd.f32 0.0, %v1551
      %v1553 = vpop.f32.mrf.mxu0
      %1554 = vmatprep.mubr.f32.mxu0 0.0
      %1555 = vmatmul.mubr.f32.gmra.mxu0 %v920
      %v1556 = vpop.f32.mrf.mxu0
      %v1557 = vadd.f32 0.0, %v1556
      %v1558 = vpop.f32.mrf.mxu0
      %1559 = vmatprep.mubr.f32.mxu0 0.0
      %1560 = vmatmul.mubr.f32.gmra.mxu0 %v923
      %v1561 = vpop.f32.mrf.mxu0
      %v1562 = vadd.f32 0.0, %v1561
      %v1563 = vpop.f32.mrf.mxu0
      %1564 = vmatprep.mubr.f32.mxu0 0.0
      %1565 = vmatmul.mubr.f32.gmra.mxu0 %v926
      %v1566 = vpop.f32.mrf.mxu0
      %v1567 = vadd.f32 0.0, %v1566
      %v1568 = vpop.f32.mrf.mxu0
      %1569 = vmatprep.mubr.f32.mxu0 0.0
      %1570 = vmatmul.mubr.f32.gmra.mxu0 %v929
      %v1571 = vpop.f32.mrf.mxu0
      %v1572 = vadd.f32 0.0, %v1571
      %v1573 = vpop.f32.mrf.mxu0
      %1574 = vmatprep.mubr.f32.mxu0 0.0
      %1575 = vmatmul.mubr.f32.gmra.mxu0 %v932
      %v1576 = vpop.f32.mrf.mxu0
      %v1577 = vadd.f32 0.0, %v1576
      %v1578 = vpop.f32.mrf.mxu0
      %1579 = vmatprep.mubr.f32.mxu0 0.0
      %1580 = vmatmul.mubr.f32.gmra.mxu0 %v935
      %v1581 = vpop.f32.mrf.mxu0
      %v1582 = vadd.f32 0.0, %v1581
      %v1583 = vpop.f32.mrf.mxu0
      %1584 = vmatprep.mubr.f32.mxu0 0.0
      %1585 = vmatmul.mubr.f32.gmra.mxu0 %v938
      %v1586 = vpop.f32.mrf.mxu0
      %v1587 = vadd.f32 0.0, %v1586
      %v1588 = vpop.f32.mrf.mxu0
      %1589 = vmatprep.mubr.f32.mxu0 0.0
      %1590 = vmatmul.mubr.f32.gmra.mxu0 %v941
      %v1591 = vpop.f32.mrf.mxu0
      %v1592 = vadd.f32 0.0, %v1591
      %v1593 = vpop.f32.mrf.mxu0
      %1594 = vmatprep.mubr.f32.mxu0 0.0
      %1595 = vmatmul.mubr.f32.gmra.mxu0 %v944
      %v1596 = vpop.f32.mrf.mxu0
      %v1597 = vadd.f32 0.0, %v1596
      %v1598 = vpop.f32.mrf.mxu0
      %1599 = vmatprep.mubr.f32.mxu0 0.0
      %1600 = vmatmul.mubr.f32.gmra.mxu0 %v947
      %v1601 = vpop.f32.mrf.mxu0
      %v1602 = vadd.f32 0.0, %v1601
      %v1603 = vpop.f32.mrf.mxu0
      %1604 = vmatprep.mubr.f32.mxu0 0.0
      %1605 = vmatmul.mubr.f32.gmra.mxu0 %v950
      %v1606 = vpop.f32.mrf.mxu0
      %v1607 = vadd.f32 0.0, %v1606
      %v1608 = vpop.f32.mrf.mxu0
      %1609 = vmatprep.mubr.f32.mxu0 0.0
      %1610 = vmatmul.mubr.f32.gmra.mxu0 %v953
      %v1611 = vpop.f32.mrf.mxu0
      %v1612 = vadd.f32 0.0, %v1611
      %v1613 = vpop.f32.mrf.mxu0
      %1614 = vmatprep.mubr.f32.mxu0 0.0
      %1615 = vmatmul.mubr.f32.gmra.mxu0 %v956
      %v1616 = vpop.f32.mrf.mxu0
      %v1617 = vadd.f32 0.0, %v1616
      %v1618 = vpop.f32.mrf.mxu0
      %1619 = vmatprep.mubr.f32.mxu0 0.0
      %1620 = vmatmul.mubr.f32.gmra.mxu0 %v959
      %v1621 = vpop.f32.mrf.mxu0
      %v1622 = vadd.f32 0.0, %v1621
      %v1623 = vpop.f32.mrf.mxu0
      %1624 = vmatprep.mubr.f32.mxu0 0.0
      %1625 = vmatmul.mubr.f32.gmra.mxu0 %v962
      %v1626 = vpop.f32.mrf.mxu0
      %v1627 = vadd.f32 0.0, %v1626
      %v1628 = vpop.f32.mrf.mxu0
      %1629 = vmatprep.mubr.f32.mxu0 0.0
      %1630 = vmatmul.mubr.f32.gmra.mxu0 %v965
      %v1631 = vpop.f32.mrf.mxu0
      %v1632 = vadd.f32 0.0, %v1631
      %v1633 = vpop.f32.mrf.mxu0
      %1634 = vmatprep.mubr.f32.mxu0 0.0
      %1635 = vmatmul.mubr.f32.gmra.mxu0 %v968
      %v1636 = vpop.f32.mrf.mxu0
      %v1637 = vadd.f32 0.0, %v1636
      %v1638 = vpop.f32.mrf.mxu0
      %1639 = vmatprep.mubr.f32.mxu0 0.0
      %1640 = vmatmul.mubr.f32.gmra.mxu0 %v971
      %v1641 = vpop.f32.mrf.mxu0
      %v1642 = vadd.f32 0.0, %v1641
      %v1643 = vpop.f32.mrf.mxu0
      %1644 = vmatprep.mubr.f32.mxu0 0.0
      %1645 = vmatmul.mubr.f32.gmra.mxu0 %v974
      %v1646 = vpop.f32.mrf.mxu0
      %v1647 = vadd.f32 0.0, %v1646
      %v1648 = vpop.f32.mrf.mxu0
      %1649 = vmatprep.mubr.f32.mxu0 0.0
      %1650 = vmatmul.mubr.f32.gmra.mxu0 %v977
      %v1651 = vpop.f32.mrf.mxu0
      %v1652 = vadd.f32 0.0, %v1651
      %v1653 = vpop.f32.mrf.mxu0
      %1654 = vmatprep.mubr.f32.mxu0 0.0
      %1655 = vmatmul.mubr.f32.gmra.mxu0 %v980
      %v1656 = vpop.f32.mrf.mxu0
      %v1657 = vadd.f32 0.0, %v1656
      %v1658 = vpop.f32.mrf.mxu0
      %1659 = vmatprep.mubr.f32.mxu0 0.0
      %1660 = vmatmul.mubr.f32.gmra.mxu0 %v971
      %v1661 = vpop.f32.mrf.mxu0
      %v1662 = vadd.f32 0.0, %v1661
      %v1663 = vpop.f32.mrf.mxu0
      %1664 = vmatprep.mubr.f32.mxu0 0.0
      %1665 = vmatmul.mubr.f32.gmra.mxu0 %v974
      %v1666 = vpop.f32.mrf.mxu0
      %v1667 = vadd.f32 0.0, %v1666
      %v1668 = vpop.f32.mrf.mxu0
      %1669 = vdwg.mxu0
      %v1670 = vadd.f32 %v1281, %v1512
      %v1671 = vadd.f32 %v1286, %v1517
      %v1672 = vadd.f32 %v1291, %v1522
      %v1673 = vadd.f32 %v1296, %v1527
      %v1674 = vadd.f32 %v1301, %v1532
      %v1675 = vadd.f32 %v1306, %v1537
      %v1676 = vadd.f32 %v1311, %v1542
      %v1677 = vadd.f32 %v1316, %v1547
      %v1678 = vadd.f32 %v1321, %v1552
      %v1679 = vadd.f32 %v1326, %v1557
      %v1680 = vadd.f32 %v1331, %v1562
      %v1681 = vadd.f32 %v1336, %v1567
      %v1682 = vadd.f32 %v1341, %v1572
      %v1683 = vadd.f32 %v1346, %v1577
      %v1684 = vadd.f32 %v1351, %v1582
      %v1685 = vadd.f32 %v1356, %v1587
      %v1686 = vadd.f32 %v1361, %v1592
      %v1687 = vadd.f32 %v1366, %v1597
      %v1688 = vadd.f32 %v1371, %v1602
      %v1689 = vadd.f32 %v1376, %v1607
      %v1690 = vadd.f32 %v1381, %v1612
      %v1691 = vadd.f32 %v1386, %v1617
      %v1692 = vadd.f32 %v1391, %v1622
      %v1693 = vadd.f32 %v1396, %v1627
      %v1694 = vadd.f32 %v1401, %v1632
      %v1695 = vadd.f32 %v1406, %v1637
      %v1696 = vadd.f32 %v1411, %v1642
      %v1697 = vadd.f32 %v1416, %v1647
      %v1698 = vadd.f32 %v1421, %v1652
      %v1699 = vadd.f32 %v1426, %v1657
      %v1700 = vadd.f32 %v1431, %v1662
      %v1701 = vadd.f32 %v1436, %v1667
      %v1702 = vsel %vm814, %v1670, 0.0
      %v1703 = vsel %vm814, %v1671, 0.0
      %v1704 = vadd.f32 %v1702, %v1703
      %v1705 = vsel %vm814, %v1672, 0.0
      %v1706 = vadd.f32 %v1704, %v1705
      %v1707 = vsel %vm814, %v1673, 0.0
      %v1708 = vadd.f32 %v1706, %v1707
      %v1709 = vsel %vm814, %v1674, 0.0
      %v1710 = vadd.f32 %v1708, %v1709
      %v1711 = vsel %vm814, %v1675, 0.0
      %v1712 = vadd.f32 %v1710, %v1711
      %v1713 = vsel %vm814, %v1676, 0.0
      %v1714 = vadd.f32 %v1712, %v1713
      %v1715 = vsel %vm814, %v1677, 0.0
      %v1716 = vadd.f32 %v1714, %v1715
      %v1717 = vsel %vm814, %v1678, 0.0
      %v1718 = vadd.f32 %v1716, %v1717
      %v1719 = vsel %vm814, %v1679, 0.0
      %v1720 = vadd.f32 %v1718, %v1719
      %v1721 = vsel %vm814, %v1680, 0.0
      %v1722 = vadd.f32 %v1720, %v1721
      %v1723 = vsel %vm814, %v1681, 0.0
      %v1724 = vadd.f32 %v1722, %v1723
      %v1725 = vsel %vm814, %v1682, 0.0
      %v1726 = vadd.f32 %v1724, %v1725
      %v1727 = vsel %vm814, %v1683, 0.0
      %v1728 = vadd.f32 %v1726, %v1727
      %v1729 = vsel %vm814, %v1684, 0.0
      %v1730 = vadd.f32 %v1728, %v1729
      %v1731 = vsel %vm814, %v1685, 0.0
      %v1732 = vadd.f32 %v1730, %v1731
      %v1733 = vsel %vm814, %v1686, 0.0
      %v1734 = vadd.f32 %v1732, %v1733
      %v1735 = vsel %vm814, %v1687, 0.0
      %v1736 = vadd.f32 %v1734, %v1735
      %v1737 = vsel %vm814, %v1688, 0.0
      %v1738 = vadd.f32 %v1736, %v1737
      %v1739 = vsel %vm814, %v1689, 0.0
      %v1740 = vadd.f32 %v1738, %v1739
      %v1741 = vsel %vm814, %v1690, 0.0
      %v1742 = vadd.f32 %v1740, %v1741
      %v1743 = vsel %vm814, %v1691, 0.0
      %v1744 = vadd.f32 %v1742, %v1743
      %v1745 = vsel %vm814, %v1692, 0.0
      %v1746 = vadd.f32 %v1744, %v1745
      %v1747 = vsel %vm814, %v1693, 0.0
      %v1748 = vadd.f32 %v1746, %v1747
      %v1749 = vsel %vm814, %v1694, 0.0
      %v1750 = vadd.f32 %v1748, %v1749
      %v1751 = vsel %vm814, %v1695, 0.0
      %v1752 = vadd.f32 %v1750, %v1751
      %v1753 = vsel %vm814, %v1696, 0.0
      %v1754 = vadd.f32 %v1752, %v1753
      %v1755 = vsel %vm814, %v1697, 0.0
      %v1756 = vadd.f32 %v1754, %v1755
      %v1757 = vsel %vm814, %v1698, 0.0
      %v1758 = vadd.f32 %v1756, %v1757
      %v1759 = vsel %vm814, %v1699, 0.0
      %v1760 = vadd.f32 %v1758, %v1759
      %v1761 = vsel %vm814, %v1700, 0.0
      %v1762 = vadd.f32 %v1760, %v1761
      %v1763 = vsel %vm814, %v1701, 0.0
      %v1764 = vadd.f32 %v1762, %v1763
      %v1765 = vrot.slane %v1764, 4
      %v1766 = vadd.f32 %v1764, %v1765
      %v1767 = vrot.slane %v1766, 2
      %v1768 = vadd.f32 %v1766, %v1767
      %v1769 = vrot.slane %v1768, 1
      %v1770 = vadd.f32 %v1768, %v1769
      %v1771 = vrcp.pop 256.0
      %v1772 = vmul.f32 %v1770, %v1771
      %v1773 = vsub.f32 %v1670, %v1772
      %v1774 = vsub.f32 %v1671, %v1772
      %v1775 = vsub.f32 %v1672, %v1772
      %v1776 = vsub.f32 %v1673, %v1772
      %v1777 = vsub.f32 %v1674, %v1772
      %v1778 = vsub.f32 %v1675, %v1772
      %v1779 = vsub.f32 %v1676, %v1772
      %v1780 = vsub.f32 %v1677, %v1772
      %v1781 = vsub.f32 %v1678, %v1772
      %v1782 = vsub.f32 %v1679, %v1772
      %v1783 = vsub.f32 %v1680, %v1772
      %v1784 = vsub.f32 %v1681, %v1772
      %v1785 = vsub.f32 %v1682, %v1772
      %v1786 = vsub.f32 %v1683, %v1772
      %v1787 = vsub.f32 %v1684, %v1772
      %v1788 = vsub.f32 %v1685, %v1772
      %v1789 = vsub.f32 %v1686, %v1772
      %v1790 = vsub.f32 %v1687, %v1772
      %v1791 = vsub.f32 %v1688, %v1772
      %v1792 = vsub.f32 %v1689, %v1772
      %v1793 = vsub.f32 %v1690, %v1772
      %v1794 = vsub.f32 %v1691, %v1772
      %v1795 = vsub.f32 %v1692, %v1772
      %v1796 = vsub.f32 %v1693, %v1772
      %v1797 = vsub.f32 %v1694, %v1772
      %v1798 = vsub.f32 %v1695, %v1772
      %v1799 = vsub.f32 %v1696, %v1772
      %v1800 = vsub.f32 %v1697, %v1772
      %v1801 = vsub.f32 %v1698, %v1772
      %v1802 = vsub.f32 %v1699, %v1772
      %v1803 = vsub.f32 %v1700, %v1772
      %v1804 = vsub.f32 %v1701, %v1772
      %v1805 = vmul.f32 %v1773, %v1773
      %v1806 = vmul.f32 %v1774, %v1774
      %v1807 = vmul.f32 %v1775, %v1775
      %v1808 = vmul.f32 %v1776, %v1776
      %v1809 = vmul.f32 %v1777, %v1777
      %v1810 = vmul.f32 %v1778, %v1778
      %v1811 = vmul.f32 %v1779, %v1779
      %v1812 = vmul.f32 %v1780, %v1780
      %v1813 = vmul.f32 %v1781, %v1781
      %v1814 = vmul.f32 %v1782, %v1782
      %v1815 = vmul.f32 %v1783, %v1783
      %v1816 = vmul.f32 %v1784, %v1784
      %v1817 = vmul.f32 %v1785, %v1785
      %v1818 = vmul.f32 %v1786, %v1786
      %v1819 = vmul.f32 %v1787, %v1787
      %v1820 = vmul.f32 %v1788, %v1788
      %v1821 = vmul.f32 %v1789, %v1789
      %v1822 = vmul.f32 %v1790, %v1790
      %v1823 = vmul.f32 %v1791, %v1791
      %v1824 = vmul.f32 %v1792, %v1792
      %v1825 = vmul.f32 %v1793, %v1793
      %v1826 = vmul.f32 %v1794, %v1794
      %v1827 = vmul.f32 %v1795, %v1795
      %v1828 = vmul.f32 %v1796, %v1796
      %v1829 = vmul.f32 %v1797, %v1797
      %v1830 = vmul.f32 %v1798, %v1798
      %v1831 = vmul.f32 %v1799, %v1799
      %v1832 = vmul.f32 %v1800, %v1800
      %v1833 = vmul.f32 %v1801, %v1801
      %v1834 = vmul.f32 %v1802, %v1802
      %v1835 = vmul.f32 %v1803, %v1803
      %v1836 = vmul.f32 %v1804, %v1804
      %v1837 = vsel %vm814, %v1805, 0.0
      %v1838 = vsel %vm814, %v1806, 0.0
      %v1839 = vadd.f32 %v1837, %v1838
      %v1840 = vsel %vm814, %v1807, 0.0
      %v1841 = vadd.f32 %v1839, %v1840
      %v1842 = vsel %vm814, %v1808, 0.0
      %v1843 = vadd.f32 %v1841, %v1842
      %v1844 = vsel %vm814, %v1809, 0.0
      %v1845 = vadd.f32 %v1843, %v1844
      %v1846 = vsel %vm814, %v1810, 0.0
      %v1847 = vadd.f32 %v1845, %v1846
      %v1848 = vsel %vm814, %v1811, 0.0
      %v1849 = vadd.f32 %v1847, %v1848
      %v1850 = vsel %vm814, %v1812, 0.0
      %v1851 = vadd.f32 %v1849, %v1850
      %v1852 = vsel %vm814, %v1813, 0.0
      %v1853 = vadd.f32 %v1851, %v1852
      %v1854 = vsel %vm814, %v1814, 0.0
      %v1855 = vadd.f32 %v1853, %v1854
      %v1856 = vsel %vm814, %v1815, 0.0
      %v1857 = vadd.f32 %v1855, %v1856
      %v1858 = vsel %vm814, %v1816, 0.0
      %v1859 = vadd.f32 %v1857, %v1858
      %v1860 = vsel %vm814, %v1817, 0.0
      %v1861 = vadd.f32 %v1859, %v1860
      %v1862 = vsel %vm814, %v1818, 0.0
      %v1863 = vadd.f32 %v1861, %v1862
      %v1864 = vsel %vm814, %v1819, 0.0
      %v1865 = vadd.f32 %v1863, %v1864
      %v1866 = vsel %vm814, %v1820, 0.0
      %v1867 = vadd.f32 %v1865, %v1866
      %v1868 = vsel %vm814, %v1821, 0.0
      %v1869 = vadd.f32 %v1867, %v1868
      %v1870 = vsel %vm814, %v1822, 0.0
      %v1871 = vadd.f32 %v1869, %v1870
      %v1872 = vsel %vm814, %v1823, 0.0
      %v1873 = vadd.f32 %v1871, %v1872
      %v1874 = vsel %vm814, %v1824, 0.0
      %v1875 = vadd.f32 %v1873, %v1874
      %v1876 = vsel %vm814, %v1825, 0.0
      %v1877 = vadd.f32 %v1875, %v1876
      %v1878 = vsel %vm814, %v1826, 0.0
      %v1879 = vadd.f32 %v1877, %v1878
      %v1880 = vsel %vm814, %v1827, 0.0
      %v1881 = vadd.f32 %v1879, %v1880
      %v1882 = vsel %vm814, %v1828, 0.0
      %v1883 = vadd.f32 %v1881, %v1882
      %v1884 = vsel %vm814, %v1829, 0.0
      %v1885 = vadd.f32 %v1883, %v1884
      %v1886 = vsel %vm814, %v1830, 0.0
      %v1887 = vadd.f32 %v1885, %v1886
      %v1888 = vsel %vm814, %v1831, 0.0
      %v1889 = vadd.f32 %v1887, %v1888
      %v1890 = vsel %vm814, %v1832, 0.0
      %v1891 = vadd.f32 %v1889, %v1890
      %v1892 = vsel %vm814, %v1833, 0.0
      %v1893 = vadd.f32 %v1891, %v1892
      %v1894 = vsel %vm814, %v1834, 0.0
      %v1895 = vadd.f32 %v1893, %v1894
      %v1896 = vsel %vm814, %v1835, 0.0
      %v1897 = vadd.f32 %v1895, %v1896
      %v1898 = vsel %vm814, %v1836, 0.0
      %v1899 = vadd.f32 %v1897, %v1898
      %v1900 = vrot.slane %v1899, 4
      %v1901 = vadd.f32 %v1899, %v1900
      %v1902 = vrot.slane %v1901, 2
      %v1903 = vadd.f32 %v1901, %v1902
      %v1904 = vrot.slane %v1903, 1
      %v1905 = vadd.f32 %v1903, %v1904
      %v1906 = vmul.f32 %v1905, %v1771
      %v1907 = vadd.f32 %v1906, 1e-05
      %v1908 = vrsqrt.pop %v1907
      %v1909 = vmul.f32 %v1773, %v1908
      %v1910 = vmul.f32 %v1774, %v1908
      %v1911 = vmul.f32 %v1775, %v1908
      %v1912 = vmul.f32 %v1776, %v1908
      %v1913 = vmul.f32 %v1777, %v1908
      %v1914 = vmul.f32 %v1778, %v1908
      %v1915 = vmul.f32 %v1779, %v1908
      %v1916 = vmul.f32 %v1780, %v1908
      %v1917 = vmul.f32 %v1781, %v1908
      %v1918 = vmul.f32 %v1782, %v1908
      %v1919 = vmul.f32 %v1783, %v1908
      %v1920 = vmul.f32 %v1784, %v1908
      %v1921 = vmul.f32 %v1785, %v1908
      %v1922 = vmul.f32 %v1786, %v1908
      %v1923 = vmul.f32 %v1787, %v1908
      %v1924 = vmul.f32 %v1788, %v1908
      %v1925 = vmul.f32 %v1789, %v1908
      %v1926 = vmul.f32 %v1790, %v1908
      %v1927 = vmul.f32 %v1791, %v1908
      %v1928 = vmul.f32 %v1792, %v1908
      %v1929 = vmul.f32 %v1793, %v1908
      %v1930 = vmul.f32 %v1794, %v1908
      %v1931 = vmul.f32 %v1795, %v1908
      %v1932 = vmul.f32 %v1796, %v1908
      %v1933 = vmul.f32 %v1797, %v1908
      %v1934 = vmul.f32 %v1798, %v1908
      %v1935 = vmul.f32 %v1799, %v1908
      %v1936 = vmul.f32 %v1800, %v1908
      %v1937 = vmul.f32 %v1801, %v1908
      %v1938 = vmul.f32 %v1802, %v1908
      %v1939 = vmul.f32 %v1803, %v1908
      %v1940 = vmul.f32 %v1804, %v1908
      %v1941 = vmax.f32 %v1909, 0.0
      %v1942 = vmax.f32 %v1910, 0.0
      %v1943 = vmax.f32 %v1911, 0.0
      %v1944 = vmax.f32 %v1912, 0.0
      %v1945 = vmax.f32 %v1913, 0.0
      %v1946 = vmax.f32 %v1914, 0.0
      %v1947 = vmax.f32 %v1915, 0.0
      %v1948 = vmax.f32 %v1916, 0.0
      %v1949 = vmax.f32 %v1917, 0.0
      %v1950 = vmax.f32 %v1918, 0.0
      %v1951 = vmax.f32 %v1919, 0.0
      %v1952 = vmax.f32 %v1920, 0.0
      %v1953 = vmax.f32 %v1921, 0.0
      %v1954 = vmax.f32 %v1922, 0.0
      %v1955 = vmax.f32 %v1923, 0.0
      %v1956 = vmax.f32 %v1924, 0.0
      %v1957 = vmax.f32 %v1925, 0.0
      %v1958 = vmax.f32 %v1926, 0.0
      %v1959 = vmax.f32 %v1927, 0.0
      %v1960 = vmax.f32 %v1928, 0.0
      %v1961 = vmax.f32 %v1929, 0.0
      %v1962 = vmax.f32 %v1930, 0.0
      %v1963 = vmax.f32 %v1931, 0.0
      %v1964 = vmax.f32 %v1932, 0.0
      %v1965 = vmax.f32 %v1933, 0.0
      %v1966 = vmax.f32 %v1934, 0.0
      %v1967 = vmax.f32 %v1935, 0.0
      %v1968 = vmax.f32 %v1936, 0.0
      %v1969 = vmax.f32 %v1937, 0.0
      %v1970 = vmax.f32 %v1938, 0.0
      %v1971 = vmax.f32 %v1939, 0.0
      %v1972 = vmax.f32 %v1940, 0.0
      %v1989 = vrot.slane %v1941, 1
      %v1990 = vrot.slane %v1943, 1
      %v1991 = vrot.slane %v1945, 1
      %v1992 = vrot.slane %v1947, 1
      %v1993 = vrot.slane %v1949, 1
      %v1994 = vrot.slane %v1951, 1
      %v1995 = vrot.slane %v1953, 1
      %v1996 = vrot.slane %v1955, 1
      %v1997 = vrot.slane %v1957, 1
      %v1998 = vrot.slane %v1959, 1
      %v1999 = vrot.slane %v1961, 1
      %v2000 = vrot.slane %v1963, 1
      %v2001 = vrot.slane %v1965, 1
      %v2002 = vrot.slane %v1967, 1
      %v2003 = vrot.slane %v1969, 1
      %v2004 = vrot.slane %v1971, 1
      %v2037 = vrot.slane %v1941, 7
      %v2038 = vrot.slane %v1942, 7
      %v2039 = vsel %vm267, %v2037, %v2038
      %v2040 = vrot.slane %v1943, 7
      %v2041 = vrot.slane %v1944, 7
      %v2042 = vsel %vm267, %v2040, %v2041
      %v2043 = vrot.slane %v1945, 7
      %v2044 = vrot.slane %v1946, 7
      %v2045 = vsel %vm267, %v2043, %v2044
      %v2046 = vrot.slane %v1947, 7
      %v2047 = vrot.slane %v1948, 7
      %v2048 = vsel %vm267, %v2046, %v2047
      %v2049 = vrot.slane %v1949, 7
      %v2050 = vrot.slane %v1950, 7
      %v2051 = vsel %vm267, %v2049, %v2050
      %v2052 = vrot.slane %v1951, 7
      %v2053 = vrot.slane %v1952, 7
      %v2054 = vsel %vm267, %v2052, %v2053
      %v2055 = vrot.slane %v1953, 7
      %v2056 = vrot.slane %v1954, 7
      %v2057 = vsel %vm267, %v2055, %v2056
      %v2058 = vrot.slane %v1955, 7
      %v2059 = vrot.slane %v1956, 7
      %v2060 = vsel %vm267, %v2058, %v2059
      %v2061 = vrot.slane %v1957, 7
      %v2062 = vrot.slane %v1958, 7
      %v2063 = vsel %vm267, %v2061, %v2062
      %v2064 = vrot.slane %v1959, 7
      %v2065 = vrot.slane %v1960, 7
      %v2066 = vsel %vm267, %v2064, %v2065
      %v2067 = vrot.slane %v1961, 7
      %v2068 = vrot.slane %v1962, 7
      %v2069 = vsel %vm267, %v2067, %v2068
      %v2070 = vrot.slane %v1963, 7
      %v2071 = vrot.slane %v1964, 7
      %v2072 = vsel %vm267, %v2070, %v2071
      %v2073 = vrot.slane %v1965, 7
      %v2074 = vrot.slane %v1966, 7
      %v2075 = vsel %vm267, %v2073, %v2074
      %v2076 = vrot.slane %v1967, 7
      %v2077 = vrot.slane %v1968, 7
      %v2078 = vsel %vm267, %v2076, %v2077
      %v2079 = vrot.slane %v1969, 7
      %v2080 = vrot.slane %v1970, 7
      %v2081 = vsel %vm267, %v2079, %v2080
      %v2082 = vrot.slane %v1971, 7
      %v2083 = vrot.slane %v1972, 7
      %v2084 = vsel %vm267, %v2082, %v2083
      %v2133 = vrot.slane %v1942, 5
      %v2134 = vrot.slane %v1944, 5
      %v2135 = vrot.slane %v1946, 5
      %v2136 = vrot.slane %v1948, 5
      %v2137 = vrot.slane %v1950, 5
      %v2138 = vrot.slane %v1952, 5
      %v2139 = vrot.slane %v1954, 5
      %v2140 = vrot.slane %v1956, 5
      %v2141 = vrot.slane %v1958, 5
      %v2142 = vrot.slane %v1960, 5
      %v2143 = vrot.slane %v1962, 5
      %v2144 = vrot.slane %v1964, 5
      %v2145 = vrot.slane %v1966, 5
      %v2146 = vrot.slane %v1968, 5
      %v2147 = vrot.slane %v1970, 5
      %v2148 = vrot.slane %v1972, 5
      %v2165 = vsel %vm267, %v1989, %v2037
      %v2166 = vsel %vm267, %v1990, %v2040
      %v2167 = vsel %vm267, %v1991, %v2043
      %v2168 = vsel %vm267, %v1992, %v2046
      %v2169 = vsel %vm267, %v1993, %v2049
      %v2170 = vsel %vm267, %v1994, %v2052
      %v2171 = vsel %vm267, %v1995, %v2055
      %v2172 = vsel %vm267, %v1996, %v2058
      %v2173 = vsel %vm267, %v1997, %v2061
      %v2174 = vsel %vm267, %v1998, %v2064
      %v2175 = vsel %vm267, %v1999, %v2067
      %v2176 = vsel %vm267, %v2000, %v2070
      %v2177 = vsel %vm267, %v2001, %v2073
      %v2178 = vsel %vm267, %v2002, %v2076
      %v2179 = vsel %vm267, %v2003, %v2079
      %v2180 = vsel %vm267, %v2004, %v2082
      %v2181 = vsel %vm267, %v2038, %v2133
      %v2182 = vsel %vm267, %v2041, %v2134
      %v2183 = vsel %vm267, %v2044, %v2135
      %v2184 = vsel %vm267, %v2047, %v2136
      %v2185 = vsel %vm267, %v2050, %v2137
      %v2186 = vsel %vm267, %v2053, %v2138
      %v2187 = vsel %vm267, %v2056, %v2139
      %v2188 = vsel %vm267, %v2059, %v2140
      %v2189 = vsel %vm267, %v2062, %v2141
      %v2190 = vsel %vm267, %v2065, %v2142
      %v2191 = vsel %vm267, %v2068, %v2143
      %v2192 = vsel %vm267, %v2071, %v2144
      %v2193 = vsel %vm267, %v2074, %v2145
      %v2194 = vsel %vm267, %v2077, %v2146
      %v2195 = vsel %vm267, %v2080, %v2147
      %v2196 = vsel %vm267, %v2083, %v2148
      %v2229 = vrot.slane %v2166, 1
      %v2230 = vrot.slane %v2042, 1
      %v2231 = vsel %vm460, %v2229, %v2230
      %v2232 = vrot.slane %v2182, 1
      %v2233 = vsel %vm460, %v2230, %v2232
      %v2234 = vrot.slane %v2165, 1
      %v2235 = vrot.slane %v2039, 1
      %v2236 = vsel %vm460, %v2234, %v2235
      %v2237 = vrot.slane %v2181, 1
      %v2238 = vsel %vm460, %v2235, %v2237
      %v2239 = vrot.slane %v2167, 1
      %v2240 = vrot.slane %v2045, 1
      %v2241 = vsel %vm460, %v2239, %v2240
      %v2242 = vrot.slane %v2183, 1
      %v2243 = vsel %vm460, %v2240, %v2242
      %v2244 = vrot.slane %v2168, 1
      %v2245 = vrot.slane %v2048, 1
      %v2246 = vsel %vm460, %v2244, %v2245
      %v2247 = vrot.slane %v2184, 1
      %v2248 = vsel %vm460, %v2245, %v2247
      %v2249 = vrot.slane %v2169, 1
      %v2250 = vrot.slane %v2051, 1
      %v2251 = vsel %vm460, %v2249, %v2250
      %v2252 = vrot.slane %v2185, 1
      %v2253 = vsel %vm460, %v2250, %v2252
      %v2254 = vrot.slane %v2170, 1
      %v2255 = vrot.slane %v2054, 1
      %v2256 = vsel %vm460, %v2254, %v2255
      %v2257 = vrot.slane %v2186, 1
      %v2258 = vsel %vm460, %v2255, %v2257
      %v2259 = vrot.slane %v2171, 1
      %v2260 = vrot.slane %v2057, 1
      %v2261 = vsel %vm460, %v2259, %v2260
      %v2262 = vrot.slane %v2187, 1
      %v2263 = vsel %vm460, %v2260, %v2262
      %v2264 = vrot.slane %v2172, 1
      %v2265 = vrot.slane %v2060, 1
      %v2266 = vsel %vm460, %v2264, %v2265
      %v2267 = vrot.slane %v2188, 1
      %v2268 = vsel %vm460, %v2265, %v2267
      %v2269 = vrot.slane %v2173, 1
      %v2270 = vrot.slane %v2063, 1
      %v2271 = vsel %vm460, %v2269, %v2270
      %v2272 = vrot.slane %v2189, 1
      %v2273 = vsel %vm460, %v2270, %v2272
      %v2274 = vrot.slane %v2174, 1
      %v2275 = vrot.slane %v2066, 1
      %v2276 = vsel %vm460, %v2274, %v2275
      %v2277 = vrot.slane %v2190, 1
      %v2278 = vsel %vm460, %v2275, %v2277
      %v2279 = vrot.slane %v2175, 1
      %v2280 = vrot.slane %v2069, 1
      %v2281 = vsel %vm460, %v2279, %v2280
      %v2282 = vrot.slane %v2191, 1
      %v2283 = vsel %vm460, %v2280, %v2282
      %v2284 = vrot.slane %v2176, 1
      %v2285 = vrot.slane %v2072, 1
      %v2286 = vsel %vm460, %v2284, %v2285
      %v2287 = vrot.slane %v2192, 1
      %v2288 = vsel %vm460, %v2285, %v2287
      %v2289 = vrot.slane %v2177, 1
      %v2290 = vrot.slane %v2075, 1
      %v2291 = vsel %vm460, %v2289, %v2290
      %v2292 = vrot.slane %v2193, 1
      %v2293 = vsel %vm460, %v2290, %v2292
      %v2294 = vrot.slane %v2178, 1
      %v2295 = vrot.slane %v2078, 1
      %v2296 = vsel %vm460, %v2294, %v2295
      %v2297 = vrot.slane %v2194, 1
      %v2298 = vsel %vm460, %v2295, %v2297
      %v2299 = vrot.slane %v2179, 1
      %v2300 = vrot.slane %v2081, 1
      %v2301 = vsel %vm460, %v2299, %v2300
      %v2302 = vrot.slane %v2195, 1
      %v2303 = vsel %vm460, %v2300, %v2302
      %v2304 = vrot.slane %v2180, 1
      %v2305 = vrot.slane %v2084, 1
      %v2306 = vsel %vm460, %v2304, %v2305
      %v2307 = vrot.slane %v2196, 1
      %v2308 = vsel %vm460, %v2305, %v2307
      %2309 = vrot.lane.b32.xlu0 %v2231, 4
      %v2310 = vpop.permute.xlu0 %2309
      %2311 = vrot.lane.b32.xlu0 %v2233, 4
      %v2312 = vpop.permute.xlu0 %2311
      %2313 = vrot.lane.b32.xlu0 %v2236, 4
      %v2314 = vpop.permute.xlu0 %2313
      %2315 = vrot.lane.b32.xlu0 %v2238, 4
      %v2316 = vpop.permute.xlu0 %2315
      %2317 = vrot.lane.b32.xlu0 %v2241, 4
      %v2318 = vpop.permute.xlu0 %2317
      %2319 = vrot.lane.b32.xlu0 %v2243, 4
      %v2320 = vpop.permute.xlu0 %2319
      %2321 = vrot.lane.b32.xlu0 %v2246, 4
      %v2322 = vpop.permute.xlu0 %2321
      %2323 = vrot.lane.b32.xlu0 %v2248, 4
      %v2324 = vpop.permute.xlu0 %2323
      %2325 = vrot.lane.b32.xlu0 %v2251, 4
      %v2326 = vpop.permute.xlu0 %2325
      %2327 = vrot.lane.b32.xlu0 %v2253, 4
      %v2328 = vpop.permute.xlu0 %2327
      %2329 = vrot.lane.b32.xlu0 %v2256, 4
      %v2330 = vpop.permute.xlu0 %2329
      %2331 = vrot.lane.b32.xlu0 %v2258, 4
      %v2332 = vpop.permute.xlu0 %2331
      %2333 = vrot.lane.b32.xlu0 %v2261, 4
      %v2334 = vpop.permute.xlu0 %2333
      %2335 = vrot.lane.b32.xlu0 %v2263, 4
      %v2336 = vpop.permute.xlu0 %2335
      %2337 = vrot.lane.b32.xlu0 %v2266, 4
      %v2338 = vpop.permute.xlu0 %2337
      %2339 = vrot.lane.b32.xlu0 %v2268, 4
      %v2340 = vpop.permute.xlu0 %2339
      %2341 = vrot.lane.b32.xlu0 %v2271, 4
      %v2342 = vpop.permute.xlu0 %2341
      %2343 = vrot.lane.b32.xlu0 %v2273, 4
      %v2344 = vpop.permute.xlu0 %2343
      %2345 = vrot.lane.b32.xlu0 %v2276, 4
      %v2346 = vpop.permute.xlu0 %2345
      %2347 = vrot.lane.b32.xlu0 %v2278, 4
      %v2348 = vpop.permute.xlu0 %2347
      %2349 = vrot.lane.b32.xlu0 %v2281, 4
      %v2350 = vpop.permute.xlu0 %2349
      %2351 = vrot.lane.b32.xlu0 %v2283, 4
      %v2352 = vpop.permute.xlu0 %2351
      %2353 = vrot.lane.b32.xlu0 %v2286, 4
      %v2354 = vpop.permute.xlu0 %2353
      %2355 = vrot.lane.b32.xlu0 %v2288, 4
      %v2356 = vpop.permute.xlu0 %2355
      %2357 = vrot.lane.b32.xlu0 %v2291, 4
      %v2358 = vpop.permute.xlu0 %2357
      %2359 = vrot.lane.b32.xlu0 %v2293, 4
      %v2360 = vpop.permute.xlu0 %2359
      %2361 = vrot.lane.b32.xlu0 %v2296, 4
      %v2362 = vpop.permute.xlu0 %2361
      %2363 = vrot.lane.b32.xlu0 %v2298, 4
      %v2364 = vpop.permute.xlu0 %2363
      %2365 = vrot.lane.b32.xlu0 %v2301, 4
      %v2366 = vpop.permute.xlu0 %2365
      %2367 = vrot.lane.b32.xlu0 %v2303, 4
      %v2368 = vpop.permute.xlu0 %2367
      %2369 = vrot.lane.b32.xlu0 %v2306, 4
      %v2370 = vpop.permute.xlu0 %2369
      %2371 = vrot.lane.b32.xlu0 %v2308, 4
      %v2372 = vpop.permute.xlu0 %2371
      %v2405 = vrot.slane %v2166, 2
      %v2406 = vrot.slane %v2042, 2
      %v2407 = vsel %vm637, %v2405, %v2406
      %v2408 = vrot.slane %v2182, 2
      %v2409 = vsel %vm637, %v2406, %v2408
      %v2410 = vrot.slane %v2165, 2
      %v2411 = vrot.slane %v2039, 2
      %v2412 = vsel %vm637, %v2410, %v2411
      %v2413 = vrot.slane %v2181, 2
      %v2414 = vsel %vm637, %v2411, %v2413
      %v2415 = vrot.slane %v2167, 2
      %v2416 = vrot.slane %v2045, 2
      %v2417 = vsel %vm637, %v2415, %v2416
      %v2418 = vrot.slane %v2183, 2
      %v2419 = vsel %vm637, %v2416, %v2418
      %v2420 = vrot.slane %v2168, 2
      %v2421 = vrot.slane %v2048, 2
      %v2422 = vsel %vm637, %v2420, %v2421
      %v2423 = vrot.slane %v2184, 2
      %v2424 = vsel %vm637, %v2421, %v2423
      %v2425 = vrot.slane %v2169, 2
      %v2426 = vrot.slane %v2051, 2
      %v2427 = vsel %vm637, %v2425, %v2426
      %v2428 = vrot.slane %v2185, 2
      %v2429 = vsel %vm637, %v2426, %v2428
      %v2430 = vrot.slane %v2170, 2
      %v2431 = vrot.slane %v2054, 2
      %v2432 = vsel %vm637, %v2430, %v2431
      %v2433 = vrot.slane %v2186, 2
      %v2434 = vsel %vm637, %v2431, %v2433
      %v2435 = vrot.slane %v2171, 2
      %v2436 = vrot.slane %v2057, 2
      %v2437 = vsel %vm637, %v2435, %v2436
      %v2438 = vrot.slane %v2187, 2
      %v2439 = vsel %vm637, %v2436, %v2438
      %v2440 = vrot.slane %v2172, 2
      %v2441 = vrot.slane %v2060, 2
      %v2442 = vsel %vm637, %v2440, %v2441
      %v2443 = vrot.slane %v2188, 2
      %v2444 = vsel %vm637, %v2441, %v2443
      %v2445 = vrot.slane %v2173, 2
      %v2446 = vrot.slane %v2063, 2
      %v2447 = vsel %vm637, %v2445, %v2446
      %v2448 = vrot.slane %v2189, 2
      %v2449 = vsel %vm637, %v2446, %v2448
      %v2450 = vrot.slane %v2174, 2
      %v2451 = vrot.slane %v2066, 2
      %v2452 = vsel %vm637, %v2450, %v2451
      %v2453 = vrot.slane %v2190, 2
      %v2454 = vsel %vm637, %v2451, %v2453
      %v2455 = vrot.slane %v2175, 2
      %v2456 = vrot.slane %v2069, 2
      %v2457 = vsel %vm637, %v2455, %v2456
      %v2458 = vrot.slane %v2191, 2
      %v2459 = vsel %vm637, %v2456, %v2458
      %v2460 = vrot.slane %v2176, 2
      %v2461 = vrot.slane %v2072, 2
      %v2462 = vsel %vm637, %v2460, %v2461
      %v2463 = vrot.slane %v2192, 2
      %v2464 = vsel %vm637, %v2461, %v2463
      %v2465 = vrot.slane %v2177, 2
      %v2466 = vrot.slane %v2075, 2
      %v2467 = vsel %vm637, %v2465, %v2466
      %v2468 = vrot.slane %v2193, 2
      %v2469 = vsel %vm637, %v2466, %v2468
      %v2470 = vrot.slane %v2178, 2
      %v2471 = vrot.slane %v2078, 2
      %v2472 = vsel %vm637, %v2470, %v2471
      %v2473 = vrot.slane %v2194, 2
      %v2474 = vsel %vm637, %v2471, %v2473
      %v2475 = vrot.slane %v2179, 2
      %v2476 = vrot.slane %v2081, 2
      %v2477 = vsel %vm637, %v2475, %v2476
      %v2478 = vrot.slane %v2195, 2
      %v2479 = vsel %vm637, %v2476, %v2478
      %v2480 = vrot.slane %v2180, 2
      %v2481 = vrot.slane %v2084, 2
      %v2482 = vsel %vm637, %v2480, %v2481
      %v2483 = vrot.slane %v2196, 2
      %v2484 = vsel %vm637, %v2481, %v2483
      %2485 = vrot.lane.b32.xlu0 %v2407, 8
      %v2486 = vpop.permute.xlu0 %2485
      %2487 = vrot.lane.b32.xlu0 %v2409, 8
      %v2488 = vpop.permute.xlu0 %2487
      %2489 = vrot.lane.b32.xlu0 %v2412, 8
      %v2490 = vpop.permute.xlu0 %2489
      %2491 = vrot.lane.b32.xlu0 %v2414, 8
      %v2492 = vpop.permute.xlu0 %2491
      %2493 = vrot.lane.b32.xlu0 %v2417, 8
      %v2494 = vpop.permute.xlu0 %2493
      %2495 = vrot.lane.b32.xlu0 %v2419, 8
      %v2496 = vpop.permute.xlu0 %2495
      %2497 = vrot.lane.b32.xlu0 %v2422, 8
      %v2498 = vpop.permute.xlu0 %2497
      %2499 = vrot.lane.b32.xlu0 %v2424, 8
      %v2500 = vpop.permute.xlu0 %2499
      %2501 = vrot.lane.b32.xlu0 %v2427, 8
      %v2502 = vpop.permute.xlu0 %2501
      %2503 = vrot.lane.b32.xlu0 %v2429, 8
      %v2504 = vpop.permute.xlu0 %2503
      %2505 = vrot.lane.b32.xlu0 %v2432, 8
      %v2506 = vpop.permute.xlu0 %2505
      %2507 = vrot.lane.b32.xlu0 %v2434, 8
      %v2508 = vpop.permute.xlu0 %2507
      %2509 = vrot.lane.b32.xlu0 %v2437, 8
      %v2510 = vpop.permute.xlu0 %2509
      %2511 = vrot.lane.b32.xlu0 %v2439, 8
      %v2512 = vpop.permute.xlu0 %2511
      %2513 = vrot.lane.b32.xlu0 %v2442, 8
      %v2514 = vpop.permute.xlu0 %2513
      %2515 = vrot.lane.b32.xlu0 %v2444, 8
      %v2516 = vpop.permute.xlu0 %2515
      %2517 = vrot.lane.b32.xlu0 %v2447, 8
      %v2518 = vpop.permute.xlu0 %2517
      %2519 = vrot.lane.b32.xlu0 %v2449, 8
      %v2520 = vpop.permute.xlu0 %2519
      %2521 = vrot.lane.b32.xlu0 %v2452, 8
      %v2522 = vpop.permute.xlu0 %2521
      %2523 = vrot.lane.b32.xlu0 %v2454, 8
      %v2524 = vpop.permute.xlu0 %2523
      %2525 = vrot.lane.b32.xlu0 %v2457, 8
      %v2526 = vpop.permute.xlu0 %2525
      %2527 = vrot.lane.b32.xlu0 %v2459, 8
      %v2528 = vpop.permute.xlu0 %2527
      %2529 = vrot.lane.b32.xlu0 %v2462, 8
      %v2530 = vpop.permute.xlu0 %2529
      %2531 = vrot.lane.b32.xlu0 %v2464, 8
      %v2532 = vpop.permute.xlu0 %2531
      %2533 = vrot.lane.b32.xlu0 %v2467, 8
      %v2534 = vpop.permute.xlu0 %2533
      %2535 = vrot.lane.b32.xlu0 %v2469, 8
      %v2536 = vpop.permute.xlu0 %2535
      %2537 = vrot.lane.b32.xlu0 %v2472, 8
      %v2538 = vpop.permute.xlu0 %2537
      %2539 = vrot.lane.b32.xlu0 %v2474, 8
      %v2540 = vpop.permute.xlu0 %2539
      %2541 = vrot.lane.b32.xlu0 %v2477, 8
      %v2542 = vpop.permute.xlu0 %2541
      %2543 = vrot.lane.b32.xlu0 %v2479, 8
      %v2544 = vpop.permute.xlu0 %2543
      %2545 = vrot.lane.b32.xlu0 %v2482, 8
      %v2546 = vpop.permute.xlu0 %2545
      %2547 = vrot.lane.b32.xlu0 %v2484, 8
      %v2548 = vpop.permute.xlu0 %2547
      %v2581 = vsel %vm814, %v2166, %v2310
      %v2582 = vsel %vm814, %v2042, %v2312
      %v2583 = vsel %vm814, %v2165, %v2314
      %v2584 = vsel %vm814, %v2039, %v2316
      %v2585 = vsel %vm814, %v2167, %v2318
      %v2586 = vsel %vm814, %v2045, %v2320
      %v2587 = vsel %vm814, %v2168, %v2322
      %v2588 = vsel %vm814, %v2048, %v2324
      %v2589 = vsel %vm814, %v2169, %v2326
      %v2590 = vsel %vm814, %v2051, %v2328
      %v2591 = vsel %vm814, %v2170, %v2330
      %v2592 = vsel %vm814, %v2054, %v2332
      %v2593 = vsel %vm814, %v2171, %v2334
      %v2594 = vsel %vm814, %v2057, %v2336
      %v2595 = vsel %vm814, %v2172, %v2338
      %v2596 = vsel %vm814, %v2060, %v2340
      %v2597 = vsel %vm814, %v2173, %v2342
      %v2598 = vsel %vm814, %v2063, %v2344
      %v2599 = vsel %vm814, %v2174, %v2346
      %v2600 = vsel %vm814, %v2066, %v2348
      %v2601 = vsel %vm814, %v2175, %v2350
      %v2602 = vsel %vm814, %v2069, %v2352
      %v2603 = vsel %vm814, %v2176, %v2354
      %v2604 = vsel %vm814, %v2072, %v2356
      %v2605 = vsel %vm814, %v2177, %v2358
      %v2606 = vsel %vm814, %v2075, %v2360
      %v2607 = vsel %vm814, %v2178, %v2362
      %v2608 = vsel %vm814, %v2078, %v2364
      %v2609 = vsel %vm814, %v2179, %v2366
      %v2610 = vsel %vm814, %v2081, %v2368
      %v2611 = vsel %vm814, %v2180, %v2370
      %v2612 = vsel %vm814, %v2084, %v2372
      %v2613 = vsel %vm847, %v2581, %v2486
      %v2614 = vsel %vm847, %v2582, %v2488
      %v2615 = vsel %vm847, %v2583, %v2490
      %v2616 = vsel %vm847, %v2584, %v2492
      %v2617 = vsel %vm847, %v2585, %v2494
      %v2618 = vsel %vm847, %v2586, %v2496
      %v2619 = vsel %vm847, %v2587, %v2498
      %v2620 = vsel %vm847, %v2588, %v2500
      %v2621 = vsel %vm847, %v2589, %v2502
      %v2622 = vsel %vm847, %v2590, %v2504
      %v2623 = vsel %vm847, %v2591, %v2506
      %v2624 = vsel %vm847, %v2592, %v2508
      %v2625 = vsel %vm847, %v2593, %v2510
      %v2626 = vsel %vm847, %v2594, %v2512
      %v2627 = vsel %vm847, %v2595, %v2514
      %v2628 = vsel %vm847, %v2596, %v2516
      %v2629 = vsel %vm847, %v2597, %v2518
      %v2630 = vsel %vm847, %v2598, %v2520
      %v2631 = vsel %vm847, %v2599, %v2522
      %v2632 = vsel %vm847, %v2600, %v2524
      %v2633 = vsel %vm847, %v2601, %v2526
      %v2634 = vsel %vm847, %v2602, %v2528
      %v2635 = vsel %vm847, %v2603, %v2530
      %v2636 = vsel %vm847, %v2604, %v2532
      %v2637 = vsel %vm847, %v2605, %v2534
      %v2638 = vsel %vm847, %v2606, %v2536
      %v2639 = vsel %vm847, %v2607, %v2538
      %v2640 = vsel %vm847, %v2608, %v2540
      %v2641 = vsel %vm847, %v2609, %v2542
      %v2642 = vsel %vm847, %v2610, %v2544
      %v2643 = vsel %vm847, %v2611, %v2546
      %v2644 = vsel %vm847, %v2612, %v2548
      %v2645 = vld [vmem:[%s2] sm:$0xff]
      %v2646 = vld [vmem:[%s2 + $0x8] sm:$0xf]
      %s2647 = scalar_lea.vmem %s2, 16
      %v2648 = vld [vmem:[%s2647] sm:$0xff]
      %v2649 = vld [vmem:[%s2647 + $0x8] sm:$0xf]
      %v2651 = vsel %vm885, %v2615, 0
      %v2654 = vsel %vm885, %v2616, 0
      %v2657 = vsel %vm885, %v2613, 0
      %v2660 = vsel %vm885, %v2614, 0
      %v2663 = vsel %vm885, %v2617, 0
      %v2666 = vsel %vm885, %v2618, 0
      %v2669 = vsel %vm885, %v2619, 0
      %v2672 = vsel %vm885, %v2620, 0
      %v2675 = vsel %vm885, %v2621, 0
      %v2678 = vsel %vm885, %v2622, 0
      %v2681 = vsel %vm885, %v2623, 0
      %v2684 = vsel %vm885, %v2624, 0
      %v2687 = vsel %vm885, %v2625, 0
      %v2690 = vsel %vm885, %v2626, 0
      %v2693 = vsel %vm885, %v2627, 0
      %v2696 = vsel %vm885, %v2628, 0
      %v2699 = vsel %vm885, %v2629, 0
      %v2702 = vsel %vm885, %v2630, 0
      %v2705 = vsel %vm885, %v2631, 0
      %v2708 = vsel %vm885, %v2632, 0
      %v2711 = vsel %vm885, %v2633, 0
      %v2714 = vsel %vm885, %v2634, 0
      %v2717 = vsel %vm885, %v2635, 0
      %v2720 = vsel %vm885, %v2636, 0
      %v2723 = vsel %vm885, %v2637, 0
      %v2726 = vsel %vm885, %v2638, 0
      %v2729 = vsel %vm885, %v2639, 0
      %v2732 = vsel %vm885, %v2640, 0
      %v2735 = vsel %vm885, %v2641, 0
      %v2738 = vsel %vm885, %v2642, 0
      %v2741 = vsel %vm885, %v2643, 0
      %v2744 = vsel %vm885, %v2644, 0
      %v2747 = vsel %vm982, %v2649, 0
      %2749 = vmatprep.subr.mxu0 0.0
      %2750 = vmatpush1.msra.mxu0 0.0
      %2751 = vmatprep.subr.mxu0 0.0
      %2752 = vmatpush1.msra.mxu0 0.0
      %2753 = vmatprep.subr.mxu0 0.0
      %2754 = vmatpush1.msra.mxu0 0.0
      %2755 = vmatprep.subr.mxu0 0.0
      %2756 = vmatpush1.msra.mxu0 0.0
      %2757 = vmatprep.subr.mxu0 0.0
      %2758 = vmatpush1.msra.mxu0 0.0
      %2759 = vmatprep.subr.mxu0 0.0
      %2760 = vmatpush1.msra.mxu0 0.0
      %2761 = vmatprep.subr.mxu0 0.0
      %2762 = vmatpush1.msra.mxu0 0.0
      %2763 = vmatprep.subr.mxu0 0.0
      %2764 = vmatpush1.msra.mxu0 0.0
      %2765 = vmatprep.subr.mxu0 0.0
      %2766 = vmatpush1.msra.mxu0 0.0
      %2767 = vmatprep.subr.mxu0 0.0
      %2768 = vmatpush1.msra.mxu0 0.0
      %2769 = vmatprep.subr.mxu0 0.0
      %2770 = vmatpush1.msra.mxu0 0.0
      %2771 = vmatprep.subr.mxu0 0.0
      %2772 = vmatpush1.msra.mxu0 0.0
      %2773 = vmatprep.subr.mxu0 0.0
      %2774 = vmatpush1.msra.mxu0 0.0
      %2775 = vmatprep.subr.mxu0 0.0
      %2776 = vmatpush1.msra.mxu0 0.0
      %2777 = vmatprep.subr.mxu0 0.0
      %2778 = vmatpush1.msra.mxu0 %v2747
      %2779 = vmatprep.subr.mxu0 0.0
      %2780 = vmatpush1.msra.mxu0 %v2648
      %2781 = vmatprep.subr.mxu0 0.0
      %2782 = vmatpush2.msra.mxu0 0.0
      %2783 = vmatprep.subr.mxu0 0.0
      %2784 = vmatpush2.msra.mxu0 0.0
      %2785 = vmatprep.subr.mxu0 0.0
      %2786 = vmatpush2.msra.mxu0 0.0
      %2787 = vmatprep.subr.mxu0 0.0
      %2788 = vmatpush2.msra.mxu0 0.0
      %2789 = vmatprep.subr.mxu0 0.0
      %2790 = vmatpush2.msra.mxu0 0.0
      %2791 = vmatprep.subr.mxu0 0.0
      %2792 = vmatpush2.msra.mxu0 0.0
      %2793 = vmatprep.subr.mxu0 0.0
      %2794 = vmatpush2.msra.mxu0 0.0
      %2795 = vmatprep.subr.mxu0 0.0
      %2796 = vmatpush2.msra.mxu0 0.0
      %2797 = vmatprep.subr.mxu0 0.0
      %2798 = vmatpush2.msra.mxu0 0.0
      %2799 = vmatprep.subr.mxu0 0.0
      %2800 = vmatpush2.msra.mxu0 0.0
      %2801 = vmatprep.subr.mxu0 0.0
      %2802 = vmatpush2.msra.mxu0 0.0
      %2803 = vmatprep.subr.mxu0 0.0
      %2804 = vmatpush2.msra.mxu0 0.0
      %2805 = vmatprep.subr.mxu0 0.0
      %2806 = vmatpush2.msra.mxu0 0.0
      %2807 = vmatprep.subr.mxu0 0.0
      %2808 = vmatpush2.msra.mxu0 0.0
      %2809 = vmatprep.subr.mxu0 0.0
      %2810 = vmatpush2.msra.mxu0 0.0
      %2811 = vmatprep.subr.mxu0 0.0
      %2812 = vmatpush2.msra.mxu0 0.0
      %2813 = vmatprep.mubr.f32.mxu0 0.0
      %2814 = vmatmul.mubr.f32.gmra.mxu0 %v2651
      %v2815 = vpop.f32.mrf.mxu0
      %v2816 = vadd.f32 0.0, %v2815
      %v2817 = vpop.f32.mrf.mxu0
      %2818 = vmatprep.mubr.f32.mxu0 0.0
      %2819 = vmatmul.mubr.f32.gmra.mxu0 %v2654
      %v2820 = vpop.f32.mrf.mxu0
      %v2821 = vadd.f32 0.0, %v2820
      %v2822 = vpop.f32.mrf.mxu0
      %2823 = vmatprep.mubr.f32.mxu0 0.0
      %2824 = vmatmul.mubr.f32.gmra.mxu0 %v2657
      %v2825 = vpop.f32.mrf.mxu0
      %v2826 = vadd.f32 0.0, %v2825
      %v2827 = vpop.f32.mrf.mxu0
      %2828 = vmatprep.mubr.f32.mxu0 0.0
      %2829 = vmatmul.mubr.f32.gmra.mxu0 %v2660
      %v2830 = vpop.f32.mrf.mxu0
      %v2831 = vadd.f32 0.0, %v2830
      %v2832 = vpop.f32.mrf.mxu0
      %2833 = vmatprep.mubr.f32.mxu0 0.0
      %2834 = vmatmul.mubr.f32.gmra.mxu0 %v2663
      %v2835 = vpop.f32.mrf.mxu0
      %v2836 = vadd.f32 0.0, %v2835
      %v2837 = vpop.f32.mrf.mxu0
      %2838 = vmatprep.mubr.f32.mxu0 0.0
      %2839 = vmatmul.mubr.f32.gmra.mxu0 %v2666
      %v2840 = vpop.f32.mrf.mxu0
      %v2841 = vadd.f32 0.0, %v2840
      %v2842 = vpop.f32.mrf.mxu0
      %2843 = vmatprep.mubr.f32.mxu0 0.0
      %2844 = vmatmul.mubr.f32.gmra.mxu0 %v2669
      %v2845 = vpop.f32.mrf.mxu0
      %v2846 = vadd.f32 0.0, %v2845
      %v2847 = vpop.f32.mrf.mxu0
      %2848 = vmatprep.mubr.f32.mxu0 0.0
      %2849 = vmatmul.mubr.f32.gmra.mxu0 %v2672
      %v2850 = vpop.f32.mrf.mxu0
      %v2851 = vadd.f32 0.0, %v2850
      %v2852 = vpop.f32.mrf.mxu0
      %2853 = vmatprep.mubr.f32.mxu0 0.0
      %2854 = vmatmul.mubr.f32.gmra.mxu0 %v2675
      %v2855 = vpop.f32.mrf.mxu0
      %v2856 = vadd.f32 0.0, %v2855
      %v2857 = vpop.f32.mrf.mxu0
      %2858 = vmatprep.mubr.f32.mxu0 0.0
      %2859 = vmatmul.mubr.f32.gmra.mxu0 %v2678
      %v2860 = vpop.f32.mrf.mxu0
      %v2861 = vadd.f32 0.0, %v2860
      %v2862 = vpop.f32.mrf.mxu0
      %2863 = vmatprep.mubr.f32.mxu0 0.0
      %2864 = vmatmul.mubr.f32.gmra.mxu0 %v2681
      %v2865 = vpop.f32.mrf.mxu0
      %v2866 = vadd.f32 0.0, %v2865
      %v2867 = vpop.f32.mrf.mxu0
      %2868 = vmatprep.mubr.f32.mxu0 0.0
      %2869 = vmatmul.mubr.f32.gmra.mxu0 %v2684
      %v2870 = vpop.f32.mrf.mxu0
      %v2871 = vadd.f32 0.0, %v2870
      %v2872 = vpop.f32.mrf.mxu0
      %2873 = vmatprep.mubr.f32.mxu0 0.0
      %2874 = vmatmul.mubr.f32.gmra.mxu0 %v2687
      %v2875 = vpop.f32.mrf.mxu0
      %v2876 = vadd.f32 0.0, %v2875
      %v2877 = vpop.f32.mrf.mxu0
      %2878 = vmatprep.mubr.f32.mxu0 0.0
      %2879 = vmatmul.mubr.f32.gmra.mxu0 %v2690
      %v2880 = vpop.f32.mrf.mxu0
      %v2881 = vadd.f32 0.0, %v2880
      %v2882 = vpop.f32.mrf.mxu0
      %2883 = vmatprep.mubr.f32.mxu0 0.0
      %2884 = vmatmul.mubr.f32.gmra.mxu0 %v2693
      %v2885 = vpop.f32.mrf.mxu0
      %v2886 = vadd.f32 0.0, %v2885
      %v2887 = vpop.f32.mrf.mxu0
      %2888 = vmatprep.mubr.f32.mxu0 0.0
      %2889 = vmatmul.mubr.f32.gmra.mxu0 %v2696
      %v2890 = vpop.f32.mrf.mxu0
      %v2891 = vadd.f32 0.0, %v2890
      %v2892 = vpop.f32.mrf.mxu0
      %2893 = vmatprep.mubr.f32.mxu0 0.0
      %2894 = vmatmul.mubr.f32.gmra.mxu0 %v2699
      %v2895 = vpop.f32.mrf.mxu0
      %v2896 = vadd.f32 0.0, %v2895
      %v2897 = vpop.f32.mrf.mxu0
      %2898 = vmatprep.mubr.f32.mxu0 0.0
      %2899 = vmatmul.mubr.f32.gmra.mxu0 %v2702
      %v2900 = vpop.f32.mrf.mxu0
      %v2901 = vadd.f32 0.0, %v2900
      %v2902 = vpop.f32.mrf.mxu0
      %2903 = vmatprep.mubr.f32.mxu0 0.0
      %2904 = vmatmul.mubr.f32.gmra.mxu0 %v2705
      %v2905 = vpop.f32.mrf.mxu0
      %v2906 = vadd.f32 0.0, %v2905
      %v2907 = vpop.f32.mrf.mxu0
      %2908 = vmatprep.mubr.f32.mxu0 0.0
      %2909 = vmatmul.mubr.f32.gmra.mxu0 %v2708
      %v2910 = vpop.f32.mrf.mxu0
      %v2911 = vadd.f32 0.0, %v2910
      %v2912 = vpop.f32.mrf.mxu0
      %2913 = vmatprep.mubr.f32.mxu0 0.0
      %2914 = vmatmul.mubr.f32.gmra.mxu0 %v2711
      %v2915 = vpop.f32.mrf.mxu0
      %v2916 = vadd.f32 0.0, %v2915
      %v2917 = vpop.f32.mrf.mxu0
      %2918 = vmatprep.mubr.f32.mxu0 0.0
      %2919 = vmatmul.mubr.f32.gmra.mxu0 %v2714
      %v2920 = vpop.f32.mrf.mxu0
      %v2921 = vadd.f32 0.0, %v2920
      %v2922 = vpop.f32.mrf.mxu0
      %2923 = vmatprep.mubr.f32.mxu0 0.0
      %2924 = vmatmul.mubr.f32.gmra.mxu0 %v2717
      %v2925 = vpop.f32.mrf.mxu0
      %v2926 = vadd.f32 0.0, %v2925
      %v2927 = vpop.f32.mrf.mxu0
      %2928 = vmatprep.mubr.f32.mxu0 0.0
      %2929 = vmatmul.mubr.f32.gmra.mxu0 %v2720
      %v2930 = vpop.f32.mrf.mxu0
      %v2931 = vadd.f32 0.0, %v2930
      %v2932 = vpop.f32.mrf.mxu0
      %2933 = vmatprep.mubr.f32.mxu0 0.0
      %2934 = vmatmul.mubr.f32.gmra.mxu0 %v2723
      %v2935 = vpop.f32.mrf.mxu0
      %v2936 = vadd.f32 0.0, %v2935
      %v2937 = vpop.f32.mrf.mxu0
      %2938 = vmatprep.mubr.f32.mxu0 0.0
      %2939 = vmatmul.mubr.f32.gmra.mxu0 %v2726
      %v2940 = vpop.f32.mrf.mxu0
      %v2941 = vadd.f32 0.0, %v2940
      %v2942 = vpop.f32.mrf.mxu0
      %2943 = vmatprep.mubr.f32.mxu0 0.0
      %2944 = vmatmul.mubr.f32.gmra.mxu0 %v2729
      %v2945 = vpop.f32.mrf.mxu0
      %v2946 = vadd.f32 0.0, %v2945
      %v2947 = vpop.f32.mrf.mxu0
      %2948 = vmatprep.mubr.f32.mxu0 0.0
      %2949 = vmatmul.mubr.f32.gmra.mxu0 %v2732
      %v2950 = vpop.f32.mrf.mxu0
      %v2951 = vadd.f32 0.0, %v2950
      %v2952 = vpop.f32.mrf.mxu0
      %2953 = vmatprep.mubr.f32.mxu0 0.0
      %2954 = vmatmul.mubr.f32.gmra.mxu0 %v2735
      %v2955 = vpop.f32.mrf.mxu0
      %v2956 = vadd.f32 0.0, %v2955
      %v2957 = vpop.f32.mrf.mxu0
      %2958 = vmatprep.mubr.f32.mxu0 0.0
      %2959 = vmatmul.mubr.f32.gmra.mxu0 %v2738
      %v2960 = vpop.f32.mrf.mxu0
      %v2961 = vadd.f32 0.0, %v2960
      %v2962 = vpop.f32.mrf.mxu0
      %2963 = vmatprep.mubr.f32.mxu0 0.0
      %2964 = vmatmul.mubr.f32.gmra.mxu0 %v2741
      %v2965 = vpop.f32.mrf.mxu0
      %v2966 = vadd.f32 0.0, %v2965
      %v2967 = vpop.f32.mrf.mxu0
      %2968 = vmatprep.mubr.f32.mxu0 0.0
      %2969 = vmatmul.mubr.f32.gmra.mxu0 %v2744
      %v2970 = vpop.f32.mrf.mxu0
      %v2971 = vadd.f32 0.0, %v2970
      %v2972 = vpop.f32.mrf.mxu0
      %2973 = vdwg.mxu0
      %v2975 = vsel %vm982, %v2646, 0
      %2977 = vmatprep.subr.mxu0 0.0
      %2978 = vmatpush1.msra.mxu0 0.0
      %2979 = vmatprep.subr.mxu0 0.0
      %2980 = vmatpush1.msra.mxu0 0.0
      %2981 = vmatprep.subr.mxu0 0.0
      %2982 = vmatpush1.msra.mxu0 0.0
      %2983 = vmatprep.subr.mxu0 0.0
      %2984 = vmatpush1.msra.mxu0 0.0
      %2985 = vmatprep.subr.mxu0 0.0
      %2986 = vmatpush1.msra.mxu0 0.0
      %2987 = vmatprep.subr.mxu0 0.0
      %2988 = vmatpush1.msra.mxu0 0.0
      %2989 = vmatprep.subr.mxu0 0.0
      %2990 = vmatpush1.msra.mxu0 0.0
      %2991 = vmatprep.subr.mxu0 0.0
      %2992 = vmatpush1.msra.mxu0 0.0
      %2993 = vmatprep.subr.mxu0 0.0
      %2994 = vmatpush1.msra.mxu0 0.0
      %2995 = vmatprep.subr.mxu0 0.0
      %2996 = vmatpush1.msra.mxu0 0.0
      %2997 = vmatprep.subr.mxu0 0.0
      %2998 = vmatpush1.msra.mxu0 0.0
      %2999 = vmatprep.subr.mxu0 0.0
      %3000 = vmatpush1.msra.mxu0 0.0
      %3001 = vmatprep.subr.mxu0 0.0
      %3002 = vmatpush1.msra.mxu0 0.0
      %3003 = vmatprep.subr.mxu0 0.0
      %3004 = vmatpush1.msra.mxu0 0.0
      %3005 = vmatprep.subr.mxu0 0.0
      %3006 = vmatpush1.msra.mxu0 %v2975
      %3007 = vmatprep.subr.mxu0 0.0
      %3008 = vmatpush1.msra.mxu0 %v2645
      %3009 = vmatprep.subr.mxu0 0.0
      %3010 = vmatpush2.msra.mxu0 0.0
      %3011 = vmatprep.subr.mxu0 0.0
      %3012 = vmatpush2.msra.mxu0 0.0
      %3013 = vmatprep.subr.mxu0 0.0
      %3014 = vmatpush2.msra.mxu0 0.0
      %3015 = vmatprep.subr.mxu0 0.0
      %3016 = vmatpush2.msra.mxu0 0.0
      %3017 = vmatprep.subr.mxu0 0.0
      %3018 = vmatpush2.msra.mxu0 0.0
      %3019 = vmatprep.subr.mxu0 0.0
      %3020 = vmatpush2.msra.mxu0 0.0
      %3021 = vmatprep.subr.mxu0 0.0
      %3022 = vmatpush2.msra.mxu0 0.0
      %3023 = vmatprep.subr.mxu0 0.0
      %3024 = vmatpush2.msra.mxu0 0.0
      %3025 = vmatprep.subr.mxu0 0.0
      %3026 = vmatpush2.msra.mxu0 0.0
      %3027 = vmatprep.subr.mxu0 0.0
      %3028 = vmatpush2.msra.mxu0 0.0
      %3029 = vmatprep.subr.mxu0 0.0
      %3030 = vmatpush2.msra.mxu0 0.0
      %3031 = vmatprep.subr.mxu0 0.0
      %3032 = vmatpush2.msra.mxu0 0.0
      %3033 = vmatprep.subr.mxu0 0.0
      %3034 = vmatpush2.msra.mxu0 0.0
      %3035 = vmatprep.subr.mxu0 0.0
      %3036 = vmatpush2.msra.mxu0 0.0
      %3037 = vmatprep.subr.mxu0 0.0
      %3038 = vmatpush2.msra.mxu0 0.0
      %3039 = vmatprep.subr.mxu0 0.0
      %3040 = vmatpush2.msra.mxu0 0.0
      %3041 = vmatprep.mubr.f32.mxu0 0.0
      %3042 = vmatmul.mubr.f32.gmra.mxu0 %v2657
      %v3043 = vpop.f32.mrf.mxu0
      %v3044 = vadd.f32 %v2816, %v3043
      %v3045 = vpop.f32.mrf.mxu0
      %3046 = vmatprep.mubr.f32.mxu0 0.0
      %3047 = vmatmul.mubr.f32.gmra.mxu0 %v2660
      %v3048 = vpop.f32.mrf.mxu0
      %v3049 = vadd.f32 %v2821, %v3048
      %v3050 = vpop.f32.mrf.mxu0
      %3051 = vmatprep.mubr.f32.mxu0 0.0
      %3052 = vmatmul.mubr.f32.gmra.mxu0 %v2651
      %v3053 = vpop.f32.mrf.mxu0
      %v3054 = vadd.f32 %v2826, %v3053
      %v3055 = vpop.f32.mrf.mxu0
      %3056 = vmatprep.mubr.f32.mxu0 0.0
      %3057 = vmatmul.mubr.f32.gmra.mxu0 %v2654
      %v3058 = vpop.f32.mrf.mxu0
      %v3059 = vadd.f32 %v2831, %v3058
      %v3060 = vpop.f32.mrf.mxu0
      %3061 = vmatprep.mubr.f32.mxu0 0.0
      %3062 = vmatmul.mubr.f32.gmra.mxu0 %v2657
      %v3063 = vpop.f32.mrf.mxu0
      %v3064 = vadd.f32 %v2836, %v3063
      %v3065 = vpop.f32.mrf.mxu0
      %3066 = vmatprep.mubr.f32.mxu0 0.0
      %3067 = vmatmul.mubr.f32.gmra.mxu0 %v2660
      %v3068 = vpop.f32.mrf.mxu0
      %v3069 = vadd.f32 %v2841, %v3068
      %v3070 = vpop.f32.mrf.mxu0
      %3071 = vmatprep.mubr.f32.mxu0 0.0
      %3072 = vmatmul.mubr.f32.gmra.mxu0 %v2663
      %v3073 = vpop.f32.mrf.mxu0
      %v3074 = vadd.f32 %v2846, %v3073
      %v3075 = vpop.f32.mrf.mxu0
      %3076 = vmatprep.mubr.f32.mxu0 0.0
      %3077 = vmatmul.mubr.f32.gmra.mxu0 %v2666
      %v3078 = vpop.f32.mrf.mxu0
      %v3079 = vadd.f32 %v2851, %v3078
      %v3080 = vpop.f32.mrf.mxu0
      %3081 = vmatprep.mubr.f32.mxu0 0.0
      %3082 = vmatmul.mubr.f32.gmra.mxu0 %v2669
      %v3083 = vpop.f32.mrf.mxu0
      %v3084 = vadd.f32 %v2856, %v3083
      %v3085 = vpop.f32.mrf.mxu0
      %3086 = vmatprep.mubr.f32.mxu0 0.0
      %3087 = vmatmul.mubr.f32.gmra.mxu0 %v2672
      %v3088 = vpop.f32.mrf.mxu0
      %v3089 = vadd.f32 %v2861, %v3088
      %v3090 = vpop.f32.mrf.mxu0
      %3091 = vmatprep.mubr.f32.mxu0 0.0
      %3092 = vmatmul.mubr.f32.gmra.mxu0 %v2675
      %v3093 = vpop.f32.mrf.mxu0
      %v3094 = vadd.f32 %v2866, %v3093
      %v3095 = vpop.f32.mrf.mxu0
      %3096 = vmatprep.mubr.f32.mxu0 0.0
      %3097 = vmatmul.mubr.f32.gmra.mxu0 %v2678
      %v3098 = vpop.f32.mrf.mxu0
      %v3099 = vadd.f32 %v2871, %v3098
      %v3100 = vpop.f32.mrf.mxu0
      %3101 = vmatprep.mubr.f32.mxu0 0.0
      %3102 = vmatmul.mubr.f32.gmra.mxu0 %v2681
      %v3103 = vpop.f32.mrf.mxu0
      %v3104 = vadd.f32 %v2876, %v3103
      %v3105 = vpop.f32.mrf.mxu0
      %3106 = vmatprep.mubr.f32.mxu0 0.0
      %3107 = vmatmul.mubr.f32.gmra.mxu0 %v2684
      %v3108 = vpop.f32.mrf.mxu0
      %v3109 = vadd.f32 %v2881, %v3108
      %v3110 = vpop.f32.mrf.mxu0
      %3111 = vmatprep.mubr.f32.mxu0 0.0
      %3112 = vmatmul.mubr.f32.gmra.mxu0 %v2687
      %v3113 = vpop.f32.mrf.mxu0
      %v3114 = vadd.f32 %v2886, %v3113
      %v3115 = vpop.f32.mrf.mxu0
      %3116 = vmatprep.mubr.f32.mxu0 0.0
      %3117 = vmatmul.mubr.f32.gmra.mxu0 %v2690
      %v3118 = vpop.f32.mrf.mxu0
      %v3119 = vadd.f32 %v2891, %v3118
      %v3120 = vpop.f32.mrf.mxu0
      %3121 = vmatprep.mubr.f32.mxu0 0.0
      %3122 = vmatmul.mubr.f32.gmra.mxu0 %v2693
      %v3123 = vpop.f32.mrf.mxu0
      %v3124 = vadd.f32 %v2896, %v3123
      %v3125 = vpop.f32.mrf.mxu0
      %3126 = vmatprep.mubr.f32.mxu0 0.0
      %3127 = vmatmul.mubr.f32.gmra.mxu0 %v2696
      %v3128 = vpop.f32.mrf.mxu0
      %v3129 = vadd.f32 %v2901, %v3128
      %v3130 = vpop.f32.mrf.mxu0
      %3131 = vmatprep.mubr.f32.mxu0 0.0
      %3132 = vmatmul.mubr.f32.gmra.mxu0 %v2699
      %v3133 = vpop.f32.mrf.mxu0
      %v3134 = vadd.f32 %v2906, %v3133
      %v3135 = vpop.f32.mrf.mxu0
      %3136 = vmatprep.mubr.f32.mxu0 0.0
      %3137 = vmatmul.mubr.f32.gmra.mxu0 %v2702
      %v3138 = vpop.f32.mrf.mxu0
      %v3139 = vadd.f32 %v2911, %v3138
      %v3140 = vpop.f32.mrf.mxu0
      %3141 = vmatprep.mubr.f32.mxu0 0.0
      %3142 = vmatmul.mubr.f32.gmra.mxu0 %v2705
      %v3143 = vpop.f32.mrf.mxu0
      %v3144 = vadd.f32 %v2916, %v3143
      %v3145 = vpop.f32.mrf.mxu0
      %3146 = vmatprep.mubr.f32.mxu0 0.0
      %3147 = vmatmul.mubr.f32.gmra.mxu0 %v2708
      %v3148 = vpop.f32.mrf.mxu0
      %v3149 = vadd.f32 %v2921, %v3148
      %v3150 = vpop.f32.mrf.mxu0
      %3151 = vmatprep.mubr.f32.mxu0 0.0
      %3152 = vmatmul.mubr.f32.gmra.mxu0 %v2711
      %v3153 = vpop.f32.mrf.mxu0
      %v3154 = vadd.f32 %v2926, %v3153
      %v3155 = vpop.f32.mrf.mxu0
      %3156 = vmatprep.mubr.f32.mxu0 0.0
      %3157 = vmatmul.mubr.f32.gmra.mxu0 %v2714
      %v3158 = vpop.f32.mrf.mxu0
      %v3159 = vadd.f32 %v2931, %v3158
      %v3160 = vpop.f32.mrf.mxu0
      %3161 = vmatprep.mubr.f32.mxu0 0.0
      %3162 = vmatmul.mubr.f32.gmra.mxu0 %v2717
      %v3163 = vpop.f32.mrf.mxu0
      %v3164 = vadd.f32 %v2936, %v3163
      %v3165 = vpop.f32.mrf.mxu0
      %3166 = vmatprep.mubr.f32.mxu0 0.0
      %3167 = vmatmul.mubr.f32.gmra.mxu0 %v2720
      %v3168 = vpop.f32.mrf.mxu0
      %v3169 = vadd.f32 %v2941, %v3168
      %v3170 = vpop.f32.mrf.mxu0
      %3171 = vmatprep.mubr.f32.mxu0 0.0
      %3172 = vmatmul.mubr.f32.gmra.mxu0 %v2723
      %v3173 = vpop.f32.mrf.mxu0
      %v3174 = vadd.f32 %v2946, %v3173
      %v3175 = vpop.f32.mrf.mxu0
      %3176 = vmatprep.mubr.f32.mxu0 0.0
      %3177 = vmatmul.mubr.f32.gmra.mxu0 %v2726
      %v3178 = vpop.f32.mrf.mxu0
      %v3179 = vadd.f32 %v2951, %v3178
      %v3180 = vpop.f32.mrf.mxu0
      %3181 = vmatprep.mubr.f32.mxu0 0.0
      %3182 = vmatmul.mubr.f32.gmra.mxu0 %v2729
      %v3183 = vpop.f32.mrf.mxu0
      %v3184 = vadd.f32 %v2956, %v3183
      %v3185 = vpop.f32.mrf.mxu0
      %3186 = vmatprep.mubr.f32.mxu0 0.0
      %3187 = vmatmul.mubr.f32.gmra.mxu0 %v2732
      %v3188 = vpop.f32.mrf.mxu0
      %v3189 = vadd.f32 %v2961, %v3188
      %v3190 = vpop.f32.mrf.mxu0
      %3191 = vmatprep.mubr.f32.mxu0 0.0
      %3192 = vmatmul.mubr.f32.gmra.mxu0 %v2735
      %v3193 = vpop.f32.mrf.mxu0
      %v3194 = vadd.f32 %v2966, %v3193
      %v3195 = vpop.f32.mrf.mxu0
      %3196 = vmatprep.mubr.f32.mxu0 0.0
      %3197 = vmatmul.mubr.f32.gmra.mxu0 %v2738
      %v3198 = vpop.f32.mrf.mxu0
      %v3199 = vadd.f32 %v2971, %v3198
      %v3200 = vpop.f32.mrf.mxu0
      %3201 = vdwg.mxu0
      %s3202 = scalar_lea.vmem %s2, 32
      %v3203 = vld [vmem:[%s3202] sm:$0xff]
      %v3204 = vld [vmem:[%s3202 + $0x8] sm:$0xf]
      %v3206 = vsel %vm982, %v3204, 0
      %3208 = vmatprep.subr.mxu0 0.0
      %3209 = vmatpush1.msra.mxu0 0.0
      %3210 = vmatprep.subr.mxu0 0.0
      %3211 = vmatpush1.msra.mxu0 0.0
      %3212 = vmatprep.subr.mxu0 0.0
      %3213 = vmatpush1.msra.mxu0 0.0
      %3214 = vmatprep.subr.mxu0 0.0
      %3215 = vmatpush1.msra.mxu0 0.0
      %3216 = vmatprep.subr.mxu0 0.0
      %3217 = vmatpush1.msra.mxu0 0.0
      %3218 = vmatprep.subr.mxu0 0.0
      %3219 = vmatpush1.msra.mxu0 0.0
      %3220 = vmatprep.subr.mxu0 0.0
      %3221 = vmatpush1.msra.mxu0 0.0
      %3222 = vmatprep.subr.mxu0 0.0
      %3223 = vmatpush1.msra.mxu0 0.0
      %3224 = vmatprep.subr.mxu0 0.0
      %3225 = vmatpush1.msra.mxu0 0.0
      %3226 = vmatprep.subr.mxu0 0.0
      %3227 = vmatpush1.msra.mxu0 0.0
      %3228 = vmatprep.subr.mxu0 0.0
      %3229 = vmatpush1.msra.mxu0 0.0
      %3230 = vmatprep.subr.mxu0 0.0
      %3231 = vmatpush1.msra.mxu0 0.0
      %3232 = vmatprep.subr.mxu0 0.0
      %3233 = vmatpush1.msra.mxu0 0.0
      %3234 = vmatprep.subr.mxu0 0.0
      %3235 = vmatpush1.msra.mxu0 0.0
      %3236 = vmatprep.subr.mxu0 0.0
      %3237 = vmatpush1.msra.mxu0 %v3206
      %3238 = vmatprep.subr.mxu0 0.0
      %3239 = vmatpush1.msra.mxu0 %v3203
      %3240 = vmatprep.subr.mxu0 0.0
      %3241 = vmatpush2.msra.mxu0 0.0
      %3242 = vmatprep.subr.mxu0 0.0
      %3243 = vmatpush2.msra.mxu0 0.0
      %3244 = vmatprep.subr.mxu0 0.0
      %3245 = vmatpush2.msra.mxu0 0.0
      %3246 = vmatprep.subr.mxu0 0.0
      %3247 = vmatpush2.msra.mxu0 0.0
      %3248 = vmatprep.subr.mxu0 0.0
      %3249 = vmatpush2.msra.mxu0 0.0
      %3250 = vmatprep.subr.mxu0 0.0
      %3251 = vmatpush2.msra.mxu0 0.0
      %3252 = vmatprep.subr.mxu0 0.0
      %3253 = vmatpush2.msra.mxu0 0.0
      %3254 = vmatprep.subr.mxu0 0.0
      %3255 = vmatpush2.msra.mxu0 0.0
      %3256 = vmatprep.subr.mxu0 0.0
      %3257 = vmatpush2.msra.mxu0 0.0
      %3258 = vmatprep.subr.mxu0 0.0
      %3259 = vmatpush2.msra.mxu0 0.0
      %3260 = vmatprep.subr.mxu0 0.0
      %3261 = vmatpush2.msra.mxu0 0.0
      %3262 = vmatprep.subr.mxu0 0.0
      %3263 = vmatpush2.msra.mxu0 0.0
      %3264 = vmatprep.subr.mxu0 0.0
      %3265 = vmatpush2.msra.mxu0 0.0
      %3266 = vmatprep.subr.mxu0 0.0
      %3267 = vmatpush2.msra.mxu0 0.0
      %3268 = vmatprep.subr.mxu0 0.0
      %3269 = vmatpush2.msra.mxu0 0.0
      %3270 = vmatprep.subr.mxu0 0.0
      %3271 = vmatpush2.msra.mxu0 0.0
      %3272 = vmatprep.mubr.f32.mxu0 0.0
      %3273 = vmatmul.mubr.f32.gmra.mxu0 %v2657
      %v3274 = vpop.f32.mrf.mxu0
      %v3275 = vadd.f32 0.0, %v3274
      %v3276 = vpop.f32.mrf.mxu0
      %3277 = vmatprep.mubr.f32.mxu0 0.0
      %3278 = vmatmul.mubr.f32.gmra.mxu0 %v2660
      %v3279 = vpop.f32.mrf.mxu0
      %v3280 = vadd.f32 0.0, %v3279
      %v3281 = vpop.f32.mrf.mxu0
      %3282 = vmatprep.mubr.f32.mxu0 0.0
      %3283 = vmatmul.mubr.f32.gmra.mxu0 %v2663
      %v3284 = vpop.f32.mrf.mxu0
      %v3285 = vadd.f32 0.0, %v3284
      %v3286 = vpop.f32.mrf.mxu0
      %3287 = vmatprep.mubr.f32.mxu0 0.0
      %3288 = vmatmul.mubr.f32.gmra.mxu0 %v2666
      %v3289 = vpop.f32.mrf.mxu0
      %v3290 = vadd.f32 0.0, %v3289
      %v3291 = vpop.f32.mrf.mxu0
      %3292 = vmatprep.mubr.f32.mxu0 0.0
      %3293 = vmatmul.mubr.f32.gmra.mxu0 %v2669
      %v3294 = vpop.f32.mrf.mxu0
      %v3295 = vadd.f32 0.0, %v3294
      %v3296 = vpop.f32.mrf.mxu0
      %3297 = vmatprep.mubr.f32.mxu0 0.0
      %3298 = vmatmul.mubr.f32.gmra.mxu0 %v2672
      %v3299 = vpop.f32.mrf.mxu0
      %v3300 = vadd.f32 0.0, %v3299
      %v3301 = vpop.f32.mrf.mxu0
      %3302 = vmatprep.mubr.f32.mxu0 0.0
      %3303 = vmatmul.mubr.f32.gmra.mxu0 %v2675
      %v3304 = vpop.f32.mrf.mxu0
      %v3305 = vadd.f32 0.0, %v3304
      %v3306 = vpop.f32.mrf.mxu0
      %3307 = vmatprep.mubr.f32.mxu0 0.0
      %3308 = vmatmul.mubr.f32.gmra.mxu0 %v2678
      %v3309 = vpop.f32.mrf.mxu0
      %v3310 = vadd.f32 0.0, %v3309
      %v3311 = vpop.f32.mrf.mxu0
      %3312 = vmatprep.mubr.f32.mxu0 0.0
      %3313 = vmatmul.mubr.f32.gmra.mxu0 %v2681
      %v3314 = vpop.f32.mrf.mxu0
      %v3315 = vadd.f32 0.0, %v3314
      %v3316 = vpop.f32.mrf.mxu0
      %3317 = vmatprep.mubr.f32.mxu0 0.0
      %3318 = vmatmul.mubr.f32.gmra.mxu0 %v2684
      %v3319 = vpop.f32.mrf.mxu0
      %v3320 = vadd.f32 0.0, %v3319
      %v3321 = vpop.f32.mrf.mxu0
      %3322 = vmatprep.mubr.f32.mxu0 0.0
      %3323 = vmatmul.mubr.f32.gmra.mxu0 %v2687
      %v3324 = vpop.f32.mrf.mxu0
      %v3325 = vadd.f32 0.0, %v3324
      %v3326 = vpop.f32.mrf.mxu0
      %3327 = vmatprep.mubr.f32.mxu0 0.0
      %3328 = vmatmul.mubr.f32.gmra.mxu0 %v2690
      %v3329 = vpop.f32.mrf.mxu0
      %v3330 = vadd.f32 0.0, %v3329
      %v3331 = vpop.f32.mrf.mxu0
      %3332 = vmatprep.mubr.f32.mxu0 0.0
      %3333 = vmatmul.mubr.f32.gmra.mxu0 %v2693
      %v3334 = vpop.f32.mrf.mxu0
      %v3335 = vadd.f32 0.0, %v3334
      %v3336 = vpop.f32.mrf.mxu0
      %3337 = vmatprep.mubr.f32.mxu0 0.0
      %3338 = vmatmul.mubr.f32.gmra.mxu0 %v2696
      %v3339 = vpop.f32.mrf.mxu0
      %v3340 = vadd.f32 0.0, %v3339
      %v3341 = vpop.f32.mrf.mxu0
      %3342 = vmatprep.mubr.f32.mxu0 0.0
      %3343 = vmatmul.mubr.f32.gmra.mxu0 %v2699
      %v3344 = vpop.f32.mrf.mxu0
      %v3345 = vadd.f32 0.0, %v3344
      %v3346 = vpop.f32.mrf.mxu0
      %3347 = vmatprep.mubr.f32.mxu0 0.0
      %3348 = vmatmul.mubr.f32.gmra.mxu0 %v2702
      %v3349 = vpop.f32.mrf.mxu0
      %v3350 = vadd.f32 0.0, %v3349
      %v3351 = vpop.f32.mrf.mxu0
      %3352 = vmatprep.mubr.f32.mxu0 0.0
      %3353 = vmatmul.mubr.f32.gmra.mxu0 %v2705
      %v3354 = vpop.f32.mrf.mxu0
      %v3355 = vadd.f32 0.0, %v3354
      %v3356 = vpop.f32.mrf.mxu0
      %3357 = vmatprep.mubr.f32.mxu0 0.0
      %3358 = vmatmul.mubr.f32.gmra.mxu0 %v2708
      %v3359 = vpop.f32.mrf.mxu0
      %v3360 = vadd.f32 0.0, %v3359
      %v3361 = vpop.f32.mrf.mxu0
      %3362 = vmatprep.mubr.f32.mxu0 0.0
      %3363 = vmatmul.mubr.f32.gmra.mxu0 %v2711
      %v3364 = vpop.f32.mrf.mxu0
      %v3365 = vadd.f32 0.0, %v3364
      %v3366 = vpop.f32.mrf.mxu0
      %3367 = vmatprep.mubr.f32.mxu0 0.0
      %3368 = vmatmul.mubr.f32.gmra.mxu0 %v2714
      %v3369 = vpop.f32.mrf.mxu0
      %v3370 = vadd.f32 0.0, %v3369
      %v3371 = vpop.f32.mrf.mxu0
      %3372 = vmatprep.mubr.f32.mxu0 0.0
      %3373 = vmatmul.mubr.f32.gmra.mxu0 %v2717
      %v3374 = vpop.f32.mrf.mxu0
      %v3375 = vadd.f32 0.0, %v3374
      %v3376 = vpop.f32.mrf.mxu0
      %3377 = vmatprep.mubr.f32.mxu0 0.0
      %3378 = vmatmul.mubr.f32.gmra.mxu0 %v2720
      %v3379 = vpop.f32.mrf.mxu0
      %v3380 = vadd.f32 0.0, %v3379
      %v3381 = vpop.f32.mrf.mxu0
      %3382 = vmatprep.mubr.f32.mxu0 0.0
      %3383 = vmatmul.mubr.f32.gmra.mxu0 %v2723
      %v3384 = vpop.f32.mrf.mxu0
      %v3385 = vadd.f32 0.0, %v3384
      %v3386 = vpop.f32.mrf.mxu0
      %3387 = vmatprep.mubr.f32.mxu0 0.0
      %3388 = vmatmul.mubr.f32.gmra.mxu0 %v2726
      %v3389 = vpop.f32.mrf.mxu0
      %v3390 = vadd.f32 0.0, %v3389
      %v3391 = vpop.f32.mrf.mxu0
      %3392 = vmatprep.mubr.f32.mxu0 0.0
      %3393 = vmatmul.mubr.f32.gmra.mxu0 %v2729
      %v3394 = vpop.f32.mrf.mxu0
      %v3395 = vadd.f32 0.0, %v3394
      %v3396 = vpop.f32.mrf.mxu0
      %3397 = vmatprep.mubr.f32.mxu0 0.0
      %3398 = vmatmul.mubr.f32.gmra.mxu0 %v2732
      %v3399 = vpop.f32.mrf.mxu0
      %v3400 = vadd.f32 0.0, %v3399
      %v3401 = vpop.f32.mrf.mxu0
      %3402 = vmatprep.mubr.f32.mxu0 0.0
      %3403 = vmatmul.mubr.f32.gmra.mxu0 %v2735
      %v3404 = vpop.f32.mrf.mxu0
      %v3405 = vadd.f32 0.0, %v3404
      %v3406 = vpop.f32.mrf.mxu0
      %3407 = vmatprep.mubr.f32.mxu0 0.0
      %3408 = vmatmul.mubr.f32.gmra.mxu0 %v2738
      %v3409 = vpop.f32.mrf.mxu0
      %v3410 = vadd.f32 0.0, %v3409
      %v3411 = vpop.f32.mrf.mxu0
      %3412 = vmatprep.mubr.f32.mxu0 0.0
      %3413 = vmatmul.mubr.f32.gmra.mxu0 %v2741
      %v3414 = vpop.f32.mrf.mxu0
      %v3415 = vadd.f32 0.0, %v3414
      %v3416 = vpop.f32.mrf.mxu0
      %3417 = vmatprep.mubr.f32.mxu0 0.0
      %3418 = vmatmul.mubr.f32.gmra.mxu0 %v2744
      %v3419 = vpop.f32.mrf.mxu0
      %v3420 = vadd.f32 0.0, %v3419
      %v3421 = vpop.f32.mrf.mxu0
      %3422 = vmatprep.mubr.f32.mxu0 0.0
      %3423 = vmatmul.mubr.f32.gmra.mxu0 %v2735
      %v3424 = vpop.f32.mrf.mxu0
      %v3425 = vadd.f32 0.0, %v3424
      %v3426 = vpop.f32.mrf.mxu0
      %3427 = vmatprep.mubr.f32.mxu0 0.0
      %3428 = vmatmul.mubr.f32.gmra.mxu0 %v2738
      %v3429 = vpop.f32.mrf.mxu0
      %v3430 = vadd.f32 0.0, %v3429
      %v3431 = vpop.f32.mrf.mxu0
      %3432 = vdwg.mxu0
      %v3433 = vadd.f32 %v3044, %v3275
      %v3434 = vadd.f32 %v3049, %v3280
      %v3435 = vadd.f32 %v3054, %v3285
      %v3436 = vadd.f32 %v3059, %v3290
      %v3437 = vadd.f32 %v3064, %v3295
      %v3438 = vadd.f32 %v3069, %v3300
      %v3439 = vadd.f32 %v3074, %v3305
      %v3440 = vadd.f32 %v3079, %v3310
      %v3441 = vadd.f32 %v3084, %v3315
      %v3442 = vadd.f32 %v3089, %v3320
      %v3443 = vadd.f32 %v3094, %v3325
      %v3444 = vadd.f32 %v3099, %v3330
      %v3445 = vadd.f32 %v3104, %v3335
      %v3446 = vadd.f32 %v3109, %v3340
      %v3447 = vadd.f32 %v3114, %v3345
      %v3448 = vadd.f32 %v3119, %v3350
      %v3449 = vadd.f32 %v3124, %v3355
      %v3450 = vadd.f32 %v3129, %v3360
      %v3451 = vadd.f32 %v3134, %v3365
      %v3452 = vadd.f32 %v3139, %v3370
      %v3453 = vadd.f32 %v3144, %v3375
      %v3454 = vadd.f32 %v3149, %v3380
      %v3455 = vadd.f32 %v3154, %v3385
      %v3456 = vadd.f32 %v3159, %v3390
      %v3457 = vadd.f32 %v3164, %v3395
      %v3458 = vadd.f32 %v3169, %v3400
      %v3459 = vadd.f32 %v3174, %v3405
      %v3460 = vadd.f32 %v3179, %v3410
      %v3461 = vadd.f32 %v3184, %v3415
      %v3462 = vadd.f32 %v3189, %v3420
      %v3463 = vadd.f32 %v3194, %v3425
      %v3464 = vadd.f32 %v3199, %v3430
      %v3465 = vsel %vm814, %v3433, 0.0
      %v3466 = vsel %vm814, %v3434, 0.0
      %v3467 = vadd.f32 %v3465, %v3466
      %v3468 = vsel %vm814, %v3435, 0.0
      %v3469 = vadd.f32 %v3467, %v3468
      %v3470 = vsel %vm814, %v3436, 0.0
      %v3471 = vadd.f32 %v3469, %v3470
      %v3472 = vsel %vm814, %v3437, 0.0
      %v3473 = vadd.f32 %v3471, %v3472
      %v3474 = vsel %vm814, %v3438, 0.0
      %v3475 = vadd.f32 %v3473, %v3474
      %v3476 = vsel %vm814, %v3439, 0.0
      %v3477 = vadd.f32 %v3475, %v3476
      %v3478 = vsel %vm814, %v3440, 0.0
      %v3479 = vadd.f32 %v3477, %v3478
      %v3480 = vsel %vm814, %v3441, 0.0
      %v3481 = vadd.f32 %v3479, %v3480
      %v3482 = vsel %vm814, %v3442, 0.0
      %v3483 = vadd.f32 %v3481, %v3482
      %v3484 = vsel %vm814, %v3443, 0.0
      %v3485 = vadd.f32 %v3483, %v3484
      %v3486 = vsel %vm814, %v3444, 0.0
      %v3487 = vadd.f32 %v3485, %v3486
      %v3488 = vsel %vm814, %v3445, 0.0
      %v3489 = vadd.f32 %v3487, %v3488
      %v3490 = vsel %vm814, %v3446, 0.0
      %v3491 = vadd.f32 %v3489, %v3490
      %v3492 = vsel %vm814, %v3447, 0.0
      %v3493 = vadd.f32 %v3491, %v3492
      %v3494 = vsel %vm814, %v3448, 0.0
      %v3495 = vadd.f32 %v3493, %v3494
      %v3496 = vsel %vm814, %v3449, 0.0
      %v3497 = vadd.f32 %v3495, %v3496
      %v3498 = vsel %vm814, %v3450, 0.0
      %v3499 = vadd.f32 %v3497, %v3498
      %v3500 = vsel %vm814, %v3451, 0.0
      %v3501 = vadd.f32 %v3499, %v3500
      %v3502 = vsel %vm814, %v3452, 0.0
      %v3503 = vadd.f32 %v3501, %v3502
      %v3504 = vsel %vm814, %v3453, 0.0
      %v3505 = vadd.f32 %v3503, %v3504
      %v3506 = vsel %vm814, %v3454, 0.0
      %v3507 = vadd.f32 %v3505, %v3506
      %v3508 = vsel %vm814, %v3455, 0.0
      %v3509 = vadd.f32 %v3507, %v3508
      %v3510 = vsel %vm814, %v3456, 0.0
      %v3511 = vadd.f32 %v3509, %v3510
      %v3512 = vsel %vm814, %v3457, 0.0
      %v3513 = vadd.f32 %v3511, %v3512
      %v3514 = vsel %vm814, %v3458, 0.0
      %v3515 = vadd.f32 %v3513, %v3514
      %v3516 = vsel %vm814, %v3459, 0.0
      %v3517 = vadd.f32 %v3515, %v3516
      %v3518 = vsel %vm814, %v3460, 0.0
      %v3519 = vadd.f32 %v3517, %v3518
      %v3520 = vsel %vm814, %v3461, 0.0
      %v3521 = vadd.f32 %v3519, %v3520
      %v3522 = vsel %vm814, %v3462, 0.0
      %v3523 = vadd.f32 %v3521, %v3522
      %v3524 = vsel %vm814, %v3463, 0.0
      %v3525 = vadd.f32 %v3523, %v3524
      %v3526 = vsel %vm814, %v3464, 0.0
      %v3527 = vadd.f32 %v3525, %v3526
      %v3528 = vrot.slane %v3527, 4
      %v3529 = vadd.f32 %v3527, %v3528
      %v3530 = vrot.slane %v3529, 2
      %v3531 = vadd.f32 %v3529, %v3530
      %v3532 = vrot.slane %v3531, 1
      %v3533 = vadd.f32 %v3531, %v3532
      %v3534 = vmul.f32 %v3533, %v1771
      %v3535 = vsub.f32 %v3433, %v3534
      %v3536 = vsub.f32 %v3434, %v3534
      %v3537 = vsub.f32 %v3435, %v3534
      %v3538 = vsub.f32 %v3436, %v3534
      %v3539 = vsub.f32 %v3437, %v3534
      %v3540 = vsub.f32 %v3438, %v3534
      %v3541 = vsub.f32 %v3439, %v3534
      %v3542 = vsub.f32 %v3440, %v3534
      %v3543 = vsub.f32 %v3441, %v3534
      %v3544 = vsub.f32 %v3442, %v3534
      %v3545 = vsub.f32 %v3443, %v3534
      %v3546 = vsub.f32 %v3444, %v3534
      %v3547 = vsub.f32 %v3445, %v3534
      %v3548 = vsub.f32 %v3446, %v3534
      %v3549 = vsub.f32 %v3447, %v3534
      %v3550 = vsub.f32 %v3448, %v3534
      %v3551 = vsub.f32 %v3449, %v3534
      %v3552 = vsub.f32 %v3450, %v3534
      %v3553 = vsub.f32 %v3451, %v3534
      %v3554 = vsub.f32 %v3452, %v3534
      %v3555 = vsub.f32 %v3453, %v3534
      %v3556 = vsub.f32 %v3454, %v3534
      %v3557 = vsub.f32 %v3455, %v3534
      %v3558 = vsub.f32 %v3456, %v3534
      %v3559 = vsub.f32 %v3457, %v3534
      %v3560 = vsub.f32 %v3458, %v3534
      %v3561 = vsub.f32 %v3459, %v3534
      %v3562 = vsub.f32 %v3460, %v3534
      %v3563 = vsub.f32 %v3461, %v3534
      %v3564 = vsub.f32 %v3462, %v3534
      %v3565 = vsub.f32 %v3463, %v3534
      %v3566 = vsub.f32 %v3464, %v3534
      %v3567 = vmul.f32 %v3535, %v3535
      %v3568 = vmul.f32 %v3536, %v3536
      %v3569 = vmul.f32 %v3537, %v3537
      %v3570 = vmul.f32 %v3538, %v3538
      %v3571 = vmul.f32 %v3539, %v3539
      %v3572 = vmul.f32 %v3540, %v3540
      %v3573 = vmul.f32 %v3541, %v3541
      %v3574 = vmul.f32 %v3542, %v3542
      %v3575 = vmul.f32 %v3543, %v3543
      %v3576 = vmul.f32 %v3544, %v3544
      %v3577 = vmul.f32 %v3545, %v3545
      %v3578 = vmul.f32 %v3546, %v3546
      %v3579 = vmul.f32 %v3547, %v3547
      %v3580 = vmul.f32 %v3548, %v3548
      %v3581 = vmul.f32 %v3549, %v3549
      %v3582 = vmul.f32 %v3550, %v3550
      %v3583 = vmul.f32 %v3551, %v3551
      %v3584 = vmul.f32 %v3552, %v3552
      %v3585 = vmul.f32 %v3553, %v3553
      %v3586 = vmul.f32 %v3554, %v3554
      %v3587 = vmul.f32 %v3555, %v3555
      %v3588 = vmul.f32 %v3556, %v3556
      %v3589 = vmul.f32 %v3557, %v3557
      %v3590 = vmul.f32 %v3558, %v3558
      %v3591 = vmul.f32 %v3559, %v3559
      %v3592 = vmul.f32 %v3560, %v3560
      %v3593 = vmul.f32 %v3561, %v3561
      %v3594 = vmul.f32 %v3562, %v3562
      %v3595 = vmul.f32 %v3563, %v3563
      %v3596 = vmul.f32 %v3564, %v3564
      %v3597 = vmul.f32 %v3565, %v3565
      %v3598 = vmul.f32 %v3566, %v3566
      %v3599 = vsel %vm814, %v3567, 0.0
      %v3600 = vsel %vm814, %v3568, 0.0
      %v3601 = vadd.f32 %v3599, %v3600
      %v3602 = vsel %vm814, %v3569, 0.0
      %v3603 = vadd.f32 %v3601, %v3602
      %v3604 = vsel %vm814, %v3570, 0.0
      %v3605 = vadd.f32 %v3603, %v3604
      %v3606 = vsel %vm814, %v3571, 0.0
      %v3607 = vadd.f32 %v3605, %v3606
      %v3608 = vsel %vm814, %v3572, 0.0
      %v3609 = vadd.f32 %v3607, %v3608
      %v3610 = vsel %vm814, %v3573, 0.0
      %v3611 = vadd.f32 %v3609, %v3610
      %v3612 = vsel %vm814, %v3574, 0.0
      %v3613 = vadd.f32 %v3611, %v3612
      %v3614 = vsel %vm814, %v3575, 0.0
      %v3615 = vadd.f32 %v3613, %v3614
      %v3616 = vsel %vm814, %v3576, 0.0
      %v3617 = vadd.f32 %v3615, %v3616
      %v3618 = vsel %vm814, %v3577, 0.0
      %v3619 = vadd.f32 %v3617, %v3618
      %v3620 = vsel %vm814, %v3578, 0.0
      %v3621 = vadd.f32 %v3619, %v3620
      %v3622 = vsel %vm814, %v3579, 0.0
      %v3623 = vadd.f32 %v3621, %v3622
      %v3624 = vsel %vm814, %v3580, 0.0
      %v3625 = vadd.f32 %v3623, %v3624
      %v3626 = vsel %vm814, %v3581, 0.0
      %v3627 = vadd.f32 %v3625, %v3626
      %v3628 = vsel %vm814, %v3582, 0.0
      %v3629 = vadd.f32 %v3627, %v3628
      %v3630 = vsel %vm814, %v3583, 0.0
      %v3631 = vadd.f32 %v3629, %v3630
      %v3632 = vsel %vm814, %v3584, 0.0
      %v3633 = vadd.f32 %v3631, %v3632
      %v3634 = vsel %vm814, %v3585, 0.0
      %v3635 = vadd.f32 %v3633, %v3634
      %v3636 = vsel %vm814, %v3586, 0.0
      %v3637 = vadd.f32 %v3635, %v3636
      %v3638 = vsel %vm814, %v3587, 0.0
      %v3639 = vadd.f32 %v3637, %v3638
      %v3640 = vsel %vm814, %v3588, 0.0
      %v3641 = vadd.f32 %v3639, %v3640
      %v3642 = vsel %vm814, %v3589, 0.0
      %v3643 = vadd.f32 %v3641, %v3642
      %v3644 = vsel %vm814, %v3590, 0.0
      %v3645 = vadd.f32 %v3643, %v3644
      %v3646 = vsel %vm814, %v3591, 0.0
      %v3647 = vadd.f32 %v3645, %v3646
      %v3648 = vsel %vm814, %v3592, 0.0
      %v3649 = vadd.f32 %v3647, %v3648
      %v3650 = vsel %vm814, %v3593, 0.0
      %v3651 = vadd.f32 %v3649, %v3650
      %v3652 = vsel %vm814, %v3594, 0.0
      %v3653 = vadd.f32 %v3651, %v3652
      %v3654 = vsel %vm814, %v3595, 0.0
      %v3655 = vadd.f32 %v3653, %v3654
      %v3656 = vsel %vm814, %v3596, 0.0
      %v3657 = vadd.f32 %v3655, %v3656
      %v3658 = vsel %vm814, %v3597, 0.0
      %v3659 = vadd.f32 %v3657, %v3658
      %v3660 = vsel %vm814, %v3598, 0.0
      %v3661 = vadd.f32 %v3659, %v3660
      %v3662 = vrot.slane %v3661, 4
      %v3663 = vadd.f32 %v3661, %v3662
      %v3664 = vrot.slane %v3663, 2
      %v3665 = vadd.f32 %v3663, %v3664
      %v3666 = vrot.slane %v3665, 1
      %v3667 = vadd.f32 %v3665, %v3666
      %v3668 = vmul.f32 %v3667, %v1771
      %v3669 = vadd.f32 %v3668, 1e-05
      %v3670 = vrsqrt.pop %v3669
      %v3671 = vmul.f32 %v3535, %v3670
      %v3672 = vmul.f32 %v3536, %v3670
      %v3673 = vmul.f32 %v3537, %v3670
      %v3674 = vmul.f32 %v3538, %v3670
      %v3675 = vmul.f32 %v3539, %v3670
      %v3676 = vmul.f32 %v3540, %v3670
      %v3677 = vmul.f32 %v3541, %v3670
      %v3678 = vmul.f32 %v3542, %v3670
      %v3679 = vmul.f32 %v3543, %v3670
      %v3680 = vmul.f32 %v3544, %v3670
      %v3681 = vmul.f32 %v3545, %v3670
      %v3682 = vmul.f32 %v3546, %v3670
      %v3683 = vmul.f32 %v3547, %v3670
      %v3684 = vmul.f32 %v3548, %v3670
      %v3685 = vmul.f32 %v3549, %v3670
      %v3686 = vmul.f32 %v3550, %v3670
      %v3687 = vmul.f32 %v3551, %v3670
      %v3688 = vmul.f32 %v3552, %v3670
      %v3689 = vmul.f32 %v3553, %v3670
      %v3690 = vmul.f32 %v3554, %v3670
      %v3691 = vmul.f32 %v3555, %v3670
      %v3692 = vmul.f32 %v3556, %v3670
      %v3693 = vmul.f32 %v3557, %v3670
      %v3694 = vmul.f32 %v3558, %v3670
      %v3695 = vmul.f32 %v3559, %v3670
      %v3696 = vmul.f32 %v3560, %v3670
      %v3697 = vmul.f32 %v3561, %v3670
      %v3698 = vmul.f32 %v3562, %v3670
      %v3699 = vmul.f32 %v3563, %v3670
      %v3700 = vmul.f32 %v3564, %v3670
      %v3701 = vmul.f32 %v3565, %v3670
      %v3702 = vmul.f32 %v3566, %v3670
      %3703 = vst.msk [vmem:[%s170] sm:$0xff] %vm814, %v3671
      %3704 = vst.msk [vmem:[%s170 + $0x8] sm:$0xff] %vm814, %v3672
      %3705 = vst.msk [vmem:[%s170 + $0x10] sm:$0xff] %vm814, %v3673
      %3706 = vst.msk [vmem:[%s170 + $0x18] sm:$0xff] %vm814, %v3674
      %3707 = vst.msk [vmem:[%s170 + $0x20] sm:$0xff] %vm814, %v3675
      %3708 = vst.msk [vmem:[%s170 + $0x28] sm:$0xff] %vm814, %v3676
      %3709 = vst.msk [vmem:[%s170 + $0x30] sm:$0xff] %vm814, %v3677
      %3710 = vst.msk [vmem:[%s170 + $0x38] sm:$0xff] %vm814, %v3678
      %3711 = vst.msk [vmem:[%s170 + $0x40] sm:$0xff] %vm814, %v3679
      %3712 = vst.msk [vmem:[%s170 + $0x48] sm:$0xff] %vm814, %v3680
      %3713 = vst.msk [vmem:[%s170 + $0x50] sm:$0xff] %vm814, %v3681
      %3714 = vst.msk [vmem:[%s170 + $0x58] sm:$0xff] %vm814, %v3682
      %3715 = vst.msk [vmem:[%s170 + $0x60] sm:$0xff] %vm814, %v3683
      %3716 = vst.msk [vmem:[%s170 + $0x68] sm:$0xff] %vm814, %v3684
      %3717 = vst.msk [vmem:[%s170 + $0x70] sm:$0xff] %vm814, %v3685
      %3718 = vst.msk [vmem:[%s170 + $0x78] sm:$0xff] %vm814, %v3686
      %3719 = vst.msk [vmem:[%s170 + $0x80] sm:$0xff] %vm814, %v3687
      %3720 = vst.msk [vmem:[%s170 + $0x88] sm:$0xff] %vm814, %v3688
      %3721 = vst.msk [vmem:[%s170 + $0x90] sm:$0xff] %vm814, %v3689
      %3722 = vst.msk [vmem:[%s170 + $0x98] sm:$0xff] %vm814, %v3690
      %3723 = vst.msk [vmem:[%s170 + $0xa0] sm:$0xff] %vm814, %v3691
      %3724 = vst.msk [vmem:[%s170 + $0xa8] sm:$0xff] %vm814, %v3692
      %3725 = vst.msk [vmem:[%s170 + $0xb0] sm:$0xff] %vm814, %v3693
      %3726 = vst.msk [vmem:[%s170 + $0xb8] sm:$0xff] %vm814, %v3694
      %3727 = vst.msk [vmem:[%s170 + $0xc0] sm:$0xff] %vm814, %v3695
      %3728 = vst.msk [vmem:[%s170 + $0xc8] sm:$0xff] %vm814, %v3696
      %3729 = vst.msk [vmem:[%s170 + $0xd0] sm:$0xff] %vm814, %v3697
      %3730 = vst.msk [vmem:[%s170 + $0xd8] sm:$0xff] %vm814, %v3698
      %3731 = vst.msk [vmem:[%s170 + $0xe0] sm:$0xff] %vm814, %v3699
      %3732 = vst.msk [vmem:[%s170 + $0xe8] sm:$0xff] %vm814, %v3700
      %3733 = vst.msk [vmem:[%s170 + $0xf0] sm:$0xff] %vm814, %v3701
      %3734 = vst.msk [vmem:[%s170 + $0xf8] sm:$0xff] %vm814, %v3702
      %p3735 = scmp.lt.s32.totalorder %s14, 1
      %s3736 = scalar_select %p3735, %s14, 1
      %s3737 = smul.addr %s3736, 32
      %s3738 = smul.addr %s3737, 8
      %s3739 = scalar_lea.vmem %s3, %s3738
      // Predicated region
      $region33: #{resnet_block_forward.1} parent=31 // pred_check
        %p3740 = pneg %p100
      $region34: #{resnet_block_forward.1} parent=31 // pred_check_branch
        %3742 = sbr.rel (%p3740) target = $region36
      $region35: #{resnet_block_forward.1} parent=31 // pred_region
        _
      $region36: #{resnet_block_forward.1} parent=31 // pred_fallthru
        _
    $region32: #{resnet_block_forward.1} parent=5 // pred_fallthru
      _
    %p3743 = scmp.le.s32.totalorder 2, %s9
    // Predicated region
    $region37: #{resnet_block_forward.1} parent=5 // pred_check
      %p3744 = pneg %p3743
    $region38: #{resnet_block_forward.1} parent=5 // pred_check_branch
      %3746 = sbr.rel (%p3744) target = $region40
    $region39: #{resnet_block_forward.1} parent=5 // pred_region
      %s3747 = ssub.s32 %s9, 2
      // Predicated region
      $region41: #{resnet_block_forward.1} parent=39 // pred_check
        %p3748 = pneg %p106
      $region42: #{resnet_block_forward.1} parent=39 // pred_check_branch
        %3750 = sbr.rel (%p3748) target = $region44
      $region43: #{resnet_block_forward.1} parent=39 // pred_region
        %p3751 = scmp.lt.s32.totalorder %s15, 1
        %s3752 = scalar_select %p3751, %s15, 1
        %s3753 = smul.addr %s3752, 32
        %s3754 = smul.addr %s3753, 8
        %s3755 = scalar_lea.vmem %s3, %s3754
      $region44: #{resnet_block_forward.1} parent=39 // pred_fallthru
        _
    $region40: #{resnet_block_forward.1} parent=5 // pred_fallthru
      _
  $region6: #{resnet_block_forward.1} parent=0 // loop_footer
    %s13 = sadd.s32 1, %s9
  $region7: #{resnet_block_forward.1} parent=0 // loop_footer_branch
    %8 = sbr.rel target = $region3
  $region8: #{resnet_block_forward.1} parent=0 // loop_exit
    _

</llo_original>
